<compile_context>
chip_gen: v7x
topology: tpu7x:2x2x1
jax: 0.10.0
libtpu: 0.0.40
codegen_flags: <defaults>
</compile_context>

<pallas_src>
import jax
import jax.numpy as jnp
import numpy as np
from jax.experimental import pallas as pl
from jax.experimental.pallas import tpu as pltpu

EPS = 1e-5


def _round_up(a, m):
    return (a + m - 1) // m * m


def _num_tensorcores_per_device():
    """Best-effort TensorCore count per JAX device (v5e/v6e -> 1, v4/v5p/v7x -> 2)."""
    try:
        kind = jax.devices()[0].device_kind.lower()
    except Exception:
        return 2
    for tag in ("v5 lite", "v5lite", "v5e", "v6 lite", "v6lite", "v6e", "v4 lite"):
        if tag in kind:
            return 1
    return 2


# ----------------------------- fused kernel ---------------------------------
def _make_dense_block_kernel(*, H, W, HW, LW, NPER, C0, C0p, G, Gp, Cm, L, Cs,
                             C_final):
    taps = [(dy, dx) for dy in range(3) for dx in range(3)]

    def kernel(x_ref, bn1s_ref, w1t_ref, t2_ref, w2t_ref, masks_ref,
               o_ref, scr_ref):
        # Zero the working feature map so the constant-K matmuls below can
        # safely read not-yet-written rows (zero weight cols * 0, never 0*NaN),
        # then drop x0 into its sublane-aligned slot (aligned 8-row stores).
        scr_ref[...] = jnp.zeros_like(scr_ref)
        for n in range(NPER):
            scr_ref[0:C0, n * HW:(n + 1) * HW] = x_ref[n].astype(jnp.float32)

        # Layers unrolled in Python: every slice offset is static and every
        # layer has identical shapes (one codegen pattern).
        for i in range(L):
            # BN1 shift + ReLU (BN1/BN2 scales are folded into w1).
            h = jnp.maximum(scr_ref[...] + bn1s_ref[i, :, :], 0.0)      # (Cs, LW)

            # 1x1 conv, full K = Cs with zero-padded weight columns, + BN2
            # shift + ReLU.  Operands kept f32 (see header: bf16 rejected).
            z = jnp.dot(w1t_ref[i, :, :], h,
                        preferred_element_type=jnp.float32)             # (Cm, LW)
            z = jnp.maximum(z + t2_ref[i, :, :], 0.0)

            # 3x3 conv (pad=1): 9 accumulating tap matmuls.  The spatial edge
            # mask is applied to the (Gp, LW) tap OUTPUT (it commutes with the
            # channel reduction), so no im2col tensor is ever materialized and
            # the masks stay VMEM-resident instead of living in vregs.
            acc = jnp.zeros((Gp, LW), jnp.float32)
            for t, (dy, dx) in enumerate(taps):
                off = (dy - 1) * W + (dx - 1)          # flattened source offset
                zr = z if off == 0 else pltpu.roll(z, (-off) % LW, axis=1)
                p = jnp.dot(w2t_ref[i * 9 + t, :, :], zr,
                            preferred_element_type=jnp.float32)         # (Gp, LW)
                if off != 0:                            # center tap: mask == 1
                    p = p * masks_ref[t:t + 1, :]
                acc = acc + p

            # Aligned 8-row store of this layer's (zero-padded) output slot.
            row = C0p + i * Gp
            scr_ref[row:row + Gp, :] = acc

        # Single repack into the torch concat order [out_{L-1},...,out_0,x0].
        # These are the only sub-tile / misaligned stores, done once per step.
        for n in range(NPER):
            lo = n * HW
            o_ref[n, C_final - C0:, :] = scr_ref[0:C0, lo:lo + HW].astype(o_ref.dtype)
            for i in range(L):
                src = C0p + i * Gp
                dst = (L - 1 - i) * G
                o_ref[n, dst:dst + G, :] = (
                    scr_ref[src:src + G, lo:lo + HW].astype(o_ref.dtype))

    return kernel


# --------------------- one-time host-side param folding ----------------------
def prepare_dense_block(params, c0, grow_rate, H, W, N, fold_batch=None):
    """Fold BN constants, stack per-layer weights into padded/aligned arrays,
    and build the edge masks.  Pure numpy, run once (not in the per-call path)."""
    L = len(params)
    G = grow_rate
    Cmid = int(params[0]["w1"].shape[1])
    C0p = _round_up(c0, 8)
    Gp = _round_up(G, 8)
    Cm = _round_up(Cmid, 8)
    Cs = C0p + L * Gp
    C_final = c0 + L * G
    HW = H * W

    if fold_batch is None:
        # Single-TC chips (v5e/v6e): one grid step, batch folded into lanes.
        # 2-TC chips (v7x/v4/v5p): one image per grid step, cores take images.
        # (For v7x with N==1/odd a lane-split grid axis would recover the idle
        #  core; not needed for N=2.)
        fold_batch = (_num_tensorcores_per_device() == 1)
    NB = 1 if fold_batch else N
    NPER = N // NB
    LW = NPER * HW
    assert HW % 128 == 0, "spatial size must be lane-aligned (H*W % 128 == 0)"
    assert NB * NPER == N

    # scratch row layout: [x0 (C0p rows)] [out_0 (Gp rows)] ... [out_{L-1} (Gp)]
    def srow(c, i):
        # torch channel c of layer-i input -> scratch row
        if c >= i * G:
            return c - i * G                      # x0 channel
        j = i - 1 - c // G                        # out_j channel
        return C0p + j * Gp + (c % G)

    bn1s = np.zeros((L, Cs, 1), np.float32)       # BN1 shift only (scale folded)
    w1t = np.zeros((L, Cm, Cs), np.float32)       # (s1*s2)-folded 1x1 weights^T
    t2a = np.zeros((L, Cm, 1), np.float32)        # BN2 shift
    w2t = np.zeros((L * 9, Gp, Cm), np.float32)   # [i*9+t, g, c] = w2[t, c, g]

    for i, p in enumerate(params):
        cin = c0 + i * G
        g1 = np.asarray(p["g1"], np.float32).reshape(cin)
        b1 = np.asarray(p["b1"], np.float32).reshape(cin)
        m1 = np.asarray(p["m1"], np.float32).reshape(cin)
        v1 = np.asarray(p["v1"], np.float32).reshape(cin)
        g2 = np.asarray(p["g2"], np.float32).reshape(Cmid)
        b2 = np.asarray(p["b2"], np.float32).reshape(Cmid)
        m2 = np.asarray(p["m2"], np.float32).reshape(Cmid)
        v2 = np.asarray(p["v2"], np.float32).reshape(Cmid)
        w1 = np.asarray(p["w1"], np.float32)       # (cin, Cmid)
        w2 = np.asarray(p["w2"], np.float32)       # (9, Cmid, G)

        s1 = g1 / np.sqrt(v1 + EPS)
        # ReLU(s1*x + t1) = s1 * ReLU(x + t1/s1) only for s1 > 0 (review guard).
        assert np.all(s1 > 0), "BN1 scale fold requires gamma1 > 0"
        shift1 = b1 / s1 - m1
        s2 = g2 / np.sqrt(v2 + EPS)
        t2 = b2 - m2 * s2
        w1f = w1 * s1[:, None] * s2[None, :]       # fold BN1 & BN2 scales

        for c in range(cin):
            r = srow(c, i)
            bn1s[i, r, 0] = shift1[c]
            w1t[i, :Cmid, r] = w1f[c]
        t2a[i, :Cmid, 0] = t2
        w2t[i * 9:(i + 1) * 9, :G, :Cmid] = np.transpose(w2, (0, 2, 1))

    # Host-built spatial edge masks for the 3x3 taps, tiled over folded images.
    yy = np.arange(HW) // W
    xx = np.arange(HW) % W
    mask = np.ones((9, HW), np.float32)
    for t, (dy, dx) in enumerate([(a, b) for a in range(3) for b in range(3)]):
        m = np.ones(HW, np.float32)
        if dy == 0:
            m *= (yy >= 1).astype(np.float32)
        elif dy == 2:
            m *= (yy <= H - 2).astype(np.float32)
        if dx == 0:
            m *= (xx >= 1).astype(np.float32)
        elif dx == 2:
            m *= (xx <= W - 2).astype(np.float32)
        mask[t] = m
    masks = np.tile(mask, (1, NPER))               # (9, LW)

    return dict(
        bn1s=jnp.asarray(bn1s), w1t=jnp.asarray(w1t), t2=jnp.asarray(t2a),
        w2t=jnp.asarray(w2t), masks=jnp.asarray(masks),
        L=L, G=G, Gp=Gp, Cm=Cm, C0=c0, C0p=C0p, Cs=Cs, C_final=C_final,
        H=H, W=W, HW=HW, N=N, NB=NB, NPER=NPER, LW=LW,
    )


# ------------------------------- wrapper -------------------------------------
def dense_block_pallas(x_nchw, prep):
    N, C0, H, W = x_nchw.shape
    assert (N, C0, H, W) == (prep["N"], prep["C0"], prep["H"], prep["W"])
    HW, NB, NPER, LW = prep["HW"], prep["NB"], prep["NPER"], prep["LW"]
    C_final, Cs, L = prep["C_final"], prep["Cs"], prep["L"]

    # NCHW flattens directly to lane-dense (N, C, H*W): no transposes anywhere.
    x_flat = x_nchw.reshape(N, C0, HW)

    kernel = _make_dense_block_kernel(
        H=H, W=W, HW=HW, LW=LW, NPER=NPER,
        C0=C0, C0p=prep["C0p"], G=prep["G"], Gp=prep["Gp"],
        Cm=prep["Cm"], L=L, Cs=Cs, C_final=C_final)

    out = pl.pallas_call(
        kernel,
        grid=(NB,),
        in_specs=[
            pl.BlockSpec((NPER, C0, HW), lambda b: (b, 0, 0)),          # x
            pl.BlockSpec(prep["bn1s"].shape, lambda b: (0, 0, 0)),      # BN1 shift
            pl.BlockSpec(prep["w1t"].shape, lambda b: (0, 0, 0)),       # folded w1^T
            pl.BlockSpec(prep["t2"].shape, lambda b: (0, 0, 0)),        # BN2 shift
            pl.BlockSpec(prep["w2t"].shape, lambda b: (0, 0, 0)),       # 3x3 tap weights
            pl.BlockSpec(prep["masks"].shape, lambda b: (0, 0)),        # edge masks
        ],
        out_specs=pl.BlockSpec((NPER, C_final, HW), lambda b: (b, 0, 0)),
        out_shape=jax.ShapeDtypeStruct((N, C_final, HW), x_nchw.dtype),
        scratch_shapes=[pltpu.VMEM((Cs, LW), jnp.float32)],
        compiler_params=pltpu.CompilerParams(
            dimension_semantics=("parallel",),
            # Footprint is ~0.2 MiB; limit set explicitly so a scaled-up config
            # (larger H*W / L / growth) fails loudly on v7x's 64 MiB VMEM
            # instead of silently overshooting the default scoped limit.
            vmem_limit_bytes=32 * 1024 * 1024),
    )(x_flat, prep["bn1s"], prep["w1t"], prep["t2"], prep["w2t"], prep["masks"])

    return out.reshape(N, C_final, H, W)


# --------------------------- pure-JAX reference ------------------------------
def dense_layer_ref(x_nhwc, p, grow_rate):
    Cmid = p["w1"].shape[1]
    h = (x_nhwc - p["m1"]) / jnp.sqrt(p["v1"] + EPS) * p["g1"] + p["b1"]
    h = jax.nn.relu(h)
    h = jnp.einsum("nhwc,cd->nhwd", h, p["w1"])
    h = (h - p["m2"]) / jnp.sqrt(p["v2"] + EPS) * p["g2"] + p["b2"]
    h = jax.nn.relu(h)
    w2 = p["w2"].reshape(3, 3, Cmid, grow_rate)
    out = jax.lax.conv_general_dilated(
        h, w2, window_strides=(1, 1), padding="SAME",
        dimension_numbers=("NHWC", "HWIO", "NHWC"))
    return jnp.concatenate([out, x_nhwc], axis=-1)


def dense_block_ref(x_nchw, params, grow_rate):
    x = jnp.transpose(x_nchw, (0, 2, 3, 1))
    for p in params:
        x = dense_layer_ref(x, p, grow_rate)
    return jnp.transpose(x, (0, 3, 1, 2))


# ------------------------ deterministic param init ---------------------------
def init_params(key, num_layers, c0, grow_rate, bn_size):
    params = []
    cmid = bn_size * grow_rate
    for i in range(num_layers):
        cin = c0 + i * grow_rate
        ks = jax.random.split(jax.random.fold_in(key, i), 10)
        p = {
            "g1": jax.random.uniform(ks[0], (1, cin), jnp.float32, 0.5, 1.5),
            "b1": 0.1 * jax.random.normal(ks[1], (1, cin), jnp.float32),
            "m1": 0.1 * jax.random.normal(ks[2], (1, cin), jnp.float32),
            "v1": jax.random.uniform(ks[3], (1, cin), jnp.float32, 0.5, 1.5),
            "w1": jax.random.normal(ks[4], (cin, cmid), jnp.float32) / jnp.sqrt(cin),
            "g2": jax.random.uniform(ks[5], (1, cmid), jnp.float32, 0.5, 1.5),
            "b2": 0.1 * jax.random.normal(ks[6], (1, cmid), jnp.float32),
            "m2": 0.1 * jax.random.normal(ks[7], (1, cmid), jnp.float32),
            "v2": jax.random.uniform(ks[8], (1, cmid), jnp.float32, 0.5, 1.5),
            "w2": jax.random.normal(ks[9], (9, cmid, grow_rate), jnp.float32)
                  / jnp.sqrt(9.0 * cmid),
        }
        params.append(p)
    return params


if __name__ == "__main__":
    # DenseBlock(num_layers=3, input_features_num=8, grow_rate=4, bn_size=2, drop_rate=0.0)
    num_layers, c0, grow_rate, bn_size = 3, 8, 4, 2
    N, H, W = 2, 16, 16

    key = jax.random.PRNGKey(0)
    kx, kp = jax.random.split(key)
    x = jax.random.normal(kx, (N, c0, H, W), jnp.float32)   # NCHW, like PyTorch
    params = init_params(kp, num_layers, c0, grow_rate, bn_size)

    # One-time host-side folding/stacking (out of the per-call path).
    prep = prepare_dense_block(params, c0, grow_rate, H, W, N)

    out = jax.block_until_ready(dense_block_pallas(x, prep))
    ref = jax.block_until_ready(dense_block_ref(x, params, grow_rate))

    expected_channels = c0 + num_layers * grow_rate
    assert out.shape == (N, expected_channels, H, W), out.shape
    assert jnp.allclose(out, ref, rtol=1e-3, atol=1e-3), float(jnp.max(jnp.abs(out - ref)))

    print("KERNEL_OK")
</pallas_src>

<mosaic_0001>
module attributes {stable_mosaic.version = 11 : i64} {
  func.func @kernel(%arg0: i32, %arg1: memref<1x8x256xf32, #tpu.memory_space<vmem>>, %arg2: memref<3x32x1xf32, #tpu.memory_space<vmem>>, %arg3: memref<3x8x32xf32, #tpu.memory_space<vmem>>, %arg4: memref<3x8x1xf32, #tpu.memory_space<vmem>>, %arg5: memref<27x8x8xf32, #tpu.memory_space<vmem>>, %arg6: memref<9x256xf32, #tpu.memory_space<vmem>>, %arg7: memref<1x20x256xf32, #tpu.memory_space<vmem>>, %arg8: memref<32x256xf32, #tpu.memory_space<vmem>>) attributes {dimension_semantics = [#tpu.dimension_semantics<parallel>], iteration_bounds = array<i64: 2>, scalar_prefetch = 0 : i64, scratch_operands = 1 : i64, tpu.core_type = #tpu.core_type<tc>, window_params = [{transform_indices = @transform_0, window_bounds = array<i64: 1, 8, 256>}, {pipeline_mode = #tpu.pipeline_mode<synchronous>, transform_indices = @transform_1, window_bounds = array<i64: 3, 32, 1>}, {pipeline_mode = #tpu.pipeline_mode<synchronous>, transform_indices = @transform_2, window_bounds = array<i64: 3, 8, 32>}, {pipeline_mode = #tpu.pipeline_mode<synchronous>, transform_indices = @transform_3, window_bounds = array<i64: 3, 8, 1>}, {pipeline_mode = #tpu.pipeline_mode<synchronous>, transform_indices = @transform_4, window_bounds = array<i64: 27, 8, 8>}, {pipeline_mode = #tpu.pipeline_mode<synchronous>, transform_indices = @transform_5, window_bounds = array<i64: 9, 256>}, {transform_indices = @transform_6, window_bounds = array<i64: 1, 20, 256>}]} {
    %cst = arith.constant 0.000000e+00 : f32
    %0 = vector.broadcast %cst : f32 to vector<32x256xf32>
    %c0 = arith.constant 0 : index
    %c0_0 = arith.constant 0 : index
    %1 = vector.load %arg8[%c0, %c0_0] : memref<32x256xf32, #tpu.memory_space<vmem>>, vector<32x256xf32>
    tpu.vector_store %arg8[%c0, %c0_0], %0 {strides = array<i32>} : memref<32x256xf32, #tpu.memory_space<vmem>>, vector<32x256xf32>,
    %c0_1 = arith.constant 0 : index
    %c0_2 = arith.constant 0 : index
    %c0_3 = arith.constant 0 : index
    %2 = vector.load %arg1[%c0_1, %c0_2, %c0_3] : memref<1x8x256xf32, #tpu.memory_space<vmem>>, vector<1x8x256xf32>
    %3 = vector.shape_cast %2 : vector<1x8x256xf32> to vector<8x256xf32>
    %c0_4 = arith.constant 0 : index
    %c0_5 = arith.constant 0 : index
    %4 = vector.load %arg8[%c0_4, %c0_5] : memref<32x256xf32, #tpu.memory_space<vmem>>, vector<8x256xf32>
    tpu.vector_store %arg8[%c0_4, %c0_5], %3 {strides = array<i32>} : memref<32x256xf32, #tpu.memory_space<vmem>>, vector<8x256xf32>,
    %c0_6 = arith.constant 0 : index
    %c0_7 = arith.constant 0 : index
    %5 = vector.load %arg8[%c0_6, %c0_7] : memref<32x256xf32, #tpu.memory_space<vmem>>, vector<32x256xf32>
    %c0_8 = arith.constant 0 : index
    %c0_9 = arith.constant 0 : index
    %c0_10 = arith.constant 0 : index
    %6 = vector.load %arg2[%c0_8, %c0_9, %c0_10] : memref<3x32x1xf32, #tpu.memory_space<vmem>>, vector<1x32x1xf32>
    %7 = vector.shape_cast %6 : vector<1x32x1xf32> to vector<32x1xf32>
    %8 = vector.broadcast %7 : vector<32x1xf32> to vector<32x256xf32>
    %9 = arith.addf %5, %8 : vector<32x256xf32>
    %cst_11 = arith.constant 0.000000e+00 : f32
    %10 = vector.broadcast %cst_11 : f32 to vector<32x256xf32>
    %11 = arith.maximumf %9, %10 : vector<32x256xf32>
    %c0_12 = arith.constant 0 : index
    %c0_13 = arith.constant 0 : index
    %c0_14 = arith.constant 0 : index
    %12 = vector.load %arg3[%c0_12, %c0_13, %c0_14] : memref<3x8x32xf32, #tpu.memory_space<vmem>>, vector<1x8x32xf32>
    %13 = vector.shape_cast %12 : vector<1x8x32xf32> to vector<8x32xf32>
    %cst_15 = arith.constant dense<0.000000e+00> : vector<8x256xf32>
    %14 = tpu.matmul %13, %11, %cst_15 {dimension_numbers = #tpu.dot_dimension_numbers<[1], [0], [0], [1], [0, 0, 1, 1], [], []>} : vector<8x32xf32>, vector<32x256xf32>, vector<8x256xf32> -> vector<8x256xf32>
    %c0_16 = arith.constant 0 : index
    %c0_17 = arith.constant 0 : index
    %c0_18 = arith.constant 0 : index
    %15 = vector.load %arg4[%c0_16, %c0_17, %c0_18] : memref<3x8x1xf32, #tpu.memory_space<vmem>>, vector<1x8x1xf32>
    %16 = vector.shape_cast %15 : vector<1x8x1xf32> to vector<8x1xf32>
    %17 = vector.broadcast %16 : vector<8x1xf32> to vector<8x256xf32>
    %18 = arith.addf %14, %17 : vector<8x256xf32>
    %cst_19 = arith.constant 0.000000e+00 : f32
    %19 = vector.broadcast %cst_19 : f32 to vector<8x256xf32>
    %20 = arith.maximumf %18, %19 : vector<8x256xf32>
    %cst_20 = arith.constant 0.000000e+00 : f32
    %21 = vector.broadcast %cst_20 : f32 to vector<8x256xf32>
    %c17_i32 = arith.constant 17 : i32
    %22 = tpu.dynamic_rotate %20 by %c17_i32 dim 1 : vector<8x256xf32>, i32 -> vector<8x256xf32>
    %c0_21 = arith.constant 0 : index
    %c0_22 = arith.constant 0 : index
    %c0_23 = arith.constant 0 : index
    %23 = vector.load %arg5[%c0_21, %c0_22, %c0_23] : memref<27x8x8xf32, #tpu.memory_space<vmem>>, vector<1x8x8xf32>
    %24 = vector.shape_cast %23 : vector<1x8x8xf32> to vector<8x8xf32>
    %cst_24 = arith.constant dense<0.000000e+00> : vector<8x256xf32>
    %25 = tpu.matmul %24, %22, %cst_24 {dimension_numbers = #tpu.dot_dimension_numbers<[1], [0], [0], [1], [0, 0, 1, 1], [], []>} : vector<8x8xf32>, vector<8x256xf32>, vector<8x256xf32> -> vector<8x256xf32>
    %c0_25 = arith.constant 0 : index
    %c0_26 = arith.constant 0 : index
    %26 = vector.load %arg6[%c0_25, %c0_26] : memref<9x256xf32, #tpu.memory_space<vmem>>, vector<1x256xf32>
    %27 = vector.broadcast %26 : vector<1x256xf32> to vector<8x256xf32>
    %28 = arith.mulf %25, %27 : vector<8x256xf32>
    %29 = arith.addf %21, %28 : vector<8x256xf32>
    %c16_i32 = arith.constant 16 : i32
    %30 = tpu.dynamic_rotate %20 by %c16_i32 dim 1 : vector<8x256xf32>, i32 -> vector<8x256xf32>
    %c1 = arith.constant 1 : index
    %c0_27 = arith.constant 0 : index
    %c0_28 = arith.constant 0 : index
    %31 = vector.load %arg5[%c1, %c0_27, %c0_28] : memref<27x8x8xf32, #tpu.memory_space<vmem>>, vector<1x8x8xf32>
    %32 = vector.shape_cast %31 : vector<1x8x8xf32> to vector<8x8xf32>
    %cst_29 = arith.constant dense<0.000000e+00> : vector<8x256xf32>
    %33 = tpu.matmul %32, %30, %cst_29 {dimension_numbers = #tpu.dot_dimension_numbers<[1], [0], [0], [1], [0, 0, 1, 1], [], []>} : vector<8x8xf32>, vector<8x256xf32>, vector<8x256xf32> -> vector<8x256xf32>
    %c1_30 = arith.constant 1 : index
    %c0_31 = arith.constant 0 : index
    %34 = vector.load %arg6[%c1_30, %c0_31] : memref<9x256xf32, #tpu.memory_space<vmem>>, vector<1x256xf32>
    %35 = vector.broadcast %34 : vector<1x256xf32> to vector<8x256xf32>
    %36 = arith.mulf %33, %35 : vector<8x256xf32>
    %37 = arith.addf %29, %36 : vector<8x256xf32>
    %c15_i32 = arith.constant 15 : i32
    %38 = tpu.dynamic_rotate %20 by %c15_i32 dim 1 : vector<8x256xf32>, i32 -> vector<8x256xf32>
    %c2 = arith.constant 2 : index
    %c0_32 = arith.constant 0 : index
    %c0_33 = arith.constant 0 : index
    %39 = vector.load %arg5[%c2, %c0_32, %c0_33] : memref<27x8x8xf32, #tpu.memory_space<vmem>>, vector<1x8x8xf32>
    %40 = vector.shape_cast %39 : vector<1x8x8xf32> to vector<8x8xf32>
    %cst_34 = arith.constant dense<0.000000e+00> : vector<8x256xf32>
    %41 = tpu.matmul %40, %38, %cst_34 {dimension_numbers = #tpu.dot_dimension_numbers<[1], [0], [0], [1], [0, 0, 1, 1], [], []>} : vector<8x8xf32>, vector<8x256xf32>, vector<8x256xf32> -> vector<8x256xf32>
    %c2_35 = arith.constant 2 : index
    %c0_36 = arith.constant 0 : index
    %42 = vector.load %arg6[%c2_35, %c0_36] : memref<9x256xf32, #tpu.memory_space<vmem>>, vector<1x256xf32>
    %43 = vector.broadcast %42 : vector<1x256xf32> to vector<8x256xf32>
    %44 = arith.mulf %41, %43 : vector<8x256xf32>
    %45 = arith.addf %37, %44 : vector<8x256xf32>
    %c1_i32 = arith.constant 1 : i32
    %46 = tpu.dynamic_rotate %20 by %c1_i32 dim 1 : vector<8x256xf32>, i32 -> vector<8x256xf32>
    %c3 = arith.constant 3 : index
    %c0_37 = arith.constant 0 : index
    %c0_38 = arith.constant 0 : index
    %47 = vector.load %arg5[%c3, %c0_37, %c0_38] : memref<27x8x8xf32, #tpu.memory_space<vmem>>, vector<1x8x8xf32>
    %48 = vector.shape_cast %47 : vector<1x8x8xf32> to vector<8x8xf32>
    %cst_39 = arith.constant dense<0.000000e+00> : vector<8x256xf32>
    %49 = tpu.matmul %48, %46, %cst_39 {dimension_numbers = #tpu.dot_dimension_numbers<[1], [0], [0], [1], [0, 0, 1, 1], [], []>} : vector<8x8xf32>, vector<8x256xf32>, vector<8x256xf32> -> vector<8x256xf32>
    %c3_40 = arith.constant 3 : index
    %c0_41 = arith.constant 0 : index
    %50 = vector.load %arg6[%c3_40, %c0_41] : memref<9x256xf32, #tpu.memory_space<vmem>>, vector<1x256xf32>
    %51 = vector.broadcast %50 : vector<1x256xf32> to vector<8x256xf32>
    %52 = arith.mulf %49, %51 : vector<8x256xf32>
    %53 = arith.addf %45, %52 : vector<8x256xf32>
    %c4 = arith.constant 4 : index
    %c0_42 = arith.constant 0 : index
    %c0_43 = arith.constant 0 : index
    %54 = vector.load %arg5[%c4, %c0_42, %c0_43] : memref<27x8x8xf32, #tpu.memory_space<vmem>>, vector<1x8x8xf32>
    %55 = vector.shape_cast %54 : vector<1x8x8xf32> to vector<8x8xf32>
    %cst_44 = arith.constant dense<0.000000e+00> : vector<8x256xf32>
    %56 = tpu.matmul %55, %20, %cst_44 {dimension_numbers = #tpu.dot_dimension_numbers<[1], [0], [0], [1], [0, 0, 1, 1], [], []>} : vector<8x8xf32>, vector<8x256xf32>, vector<8x256xf32> -> vector<8x256xf32>
    %57 = arith.addf %53, %56 : vector<8x256xf32>
    %c255_i32 = arith.constant 255 : i32
    %58 = tpu.dynamic_rotate %20 by %c255_i32 dim 1 : vector<8x256xf32>, i32 -> vector<8x256xf32>
    %c5 = arith.constant 5 : index
    %c0_45 = arith.constant 0 : index
    %c0_46 = arith.constant 0 : index
    %59 = vector.load %arg5[%c5, %c0_45, %c0_46] : memref<27x8x8xf32, #tpu.memory_space<vmem>>, vector<1x8x8xf32>
    %60 = vector.shape_cast %59 : vector<1x8x8xf32> to vector<8x8xf32>
    %cst_47 = arith.constant dense<0.000000e+00> : vector<8x256xf32>
    %61 = tpu.matmul %60, %58, %cst_47 {dimension_numbers = #tpu.dot_dimension_numbers<[1], [0], [0], [1], [0, 0, 1, 1], [], []>} : vector<8x8xf32>, vector<8x256xf32>, vector<8x256xf32> -> vector<8x256xf32>
    %c5_48 = arith.constant 5 : index
    %c0_49 = arith.constant 0 : index
    %62 = vector.load %arg6[%c5_48, %c0_49] : memref<9x256xf32, #tpu.memory_space<vmem>>, vector<1x256xf32>
    %63 = vector.broadcast %62 : vector<1x256xf32> to vector<8x256xf32>
    %64 = arith.mulf %61, %63 : vector<8x256xf32>
    %65 = arith.addf %57, %64 : vector<8x256xf32>
    %c241_i32 = arith.constant 241 : i32
    %66 = tpu.dynamic_rotate %20 by %c241_i32 dim 1 : vector<8x256xf32>, i32 -> vector<8x256xf32>
    %c6 = arith.constant 6 : index
    %c0_50 = arith.constant 0 : index
    %c0_51 = arith.constant 0 : index
    %67 = vector.load %arg5[%c6, %c0_50, %c0_51] : memref<27x8x8xf32, #tpu.memory_space<vmem>>, vector<1x8x8xf32>
    %68 = vector.shape_cast %67 : vector<1x8x8xf32> to vector<8x8xf32>
    %cst_52 = arith.constant dense<0.000000e+00> : vector<8x256xf32>
    %69 = tpu.matmul %68, %66, %cst_52 {dimension_numbers = #tpu.dot_dimension_numbers<[1], [0], [0], [1], [0, 0, 1, 1], [], []>} : vector<8x8xf32>, vector<8x256xf32>, vector<8x256xf32> -> vector<8x256xf32>
    %c6_53 = arith.constant 6 : index
    %c0_54 = arith.constant 0 : index
    %70 = vector.load %arg6[%c6_53, %c0_54] : memref<9x256xf32, #tpu.memory_space<vmem>>, vector<1x256xf32>
    %71 = vector.broadcast %70 : vector<1x256xf32> to vector<8x256xf32>
    %72 = arith.mulf %69, %71 : vector<8x256xf32>
    %73 = arith.addf %65, %72 : vector<8x256xf32>
    %c240_i32 = arith.constant 240 : i32
    %74 = tpu.dynamic_rotate %20 by %c240_i32 dim 1 : vector<8x256xf32>, i32 -> vector<8x256xf32>
    %c7 = arith.constant 7 : index
    %c0_55 = arith.constant 0 : index
    %c0_56 = arith.constant 0 : index
    %75 = vector.load %arg5[%c7, %c0_55, %c0_56] : memref<27x8x8xf32, #tpu.memory_space<vmem>>, vector<1x8x8xf32>
    %76 = vector.shape_cast %75 : vector<1x8x8xf32> to vector<8x8xf32>
    %cst_57 = arith.constant dense<0.000000e+00> : vector<8x256xf32>
    %77 = tpu.matmul %76, %74, %cst_57 {dimension_numbers = #tpu.dot_dimension_numbers<[1], [0], [0], [1], [0, 0, 1, 1], [], []>} : vector<8x8xf32>, vector<8x256xf32>, vector<8x256xf32> -> vector<8x256xf32>
    %c7_58 = arith.constant 7 : index
    %c0_59 = arith.constant 0 : index
    %78 = vector.load %arg6[%c7_58, %c0_59] : memref<9x256xf32, #tpu.memory_space<vmem>>, vector<1x256xf32>
    %79 = vector.broadcast %78 : vector<1x256xf32> to vector<8x256xf32>
    %80 = arith.mulf %77, %79 : vector<8x256xf32>
    %81 = arith.addf %73, %80 : vector<8x256xf32>
    %c239_i32 = arith.constant 239 : i32
    %82 = tpu.dynamic_rotate %20 by %c239_i32 dim 1 : vector<8x256xf32>, i32 -> vector<8x256xf32>
    %c8 = arith.constant 8 : index
    %c0_60 = arith.constant 0 : index
    %c0_61 = arith.constant 0 : index
    %83 = vector.load %arg5[%c8, %c0_60, %c0_61] : memref<27x8x8xf32, #tpu.memory_space<vmem>>, vector<1x8x8xf32>
    %84 = vector.shape_cast %83 : vector<1x8x8xf32> to vector<8x8xf32>
    %cst_62 = arith.constant dense<0.000000e+00> : vector<8x256xf32>
    %85 = tpu.matmul %84, %82, %cst_62 {dimension_numbers = #tpu.dot_dimension_numbers<[1], [0], [0], [1], [0, 0, 1, 1], [], []>} : vector<8x8xf32>, vector<8x256xf32>, vector<8x256xf32> -> vector<8x256xf32>
    %c8_63 = arith.constant 8 : index
    %c0_64 = arith.constant 0 : index
    %86 = vector.load %arg6[%c8_63, %c0_64] : memref<9x256xf32, #tpu.memory_space<vmem>>, vector<1x256xf32>
    %87 = vector.broadcast %86 : vector<1x256xf32> to vector<8x256xf32>
    %88 = arith.mulf %85, %87 : vector<8x256xf32>
    %89 = arith.addf %81, %88 : vector<8x256xf32>
    %c8_65 = arith.constant 8 : index
    %c0_66 = arith.constant 0 : index
    %90 = vector.load %arg8[%c8_65, %c0_66] : memref<32x256xf32, #tpu.memory_space<vmem>>, vector<8x256xf32>
    tpu.vector_store %arg8[%c8_65, %c0_66], %89 {strides = array<i32>} : memref<32x256xf32, #tpu.memory_space<vmem>>, vector<8x256xf32>,
    %c0_67 = arith.constant 0 : index
    %c0_68 = arith.constant 0 : index
    %91 = vector.load %arg8[%c0_67, %c0_68] : memref<32x256xf32, #tpu.memory_space<vmem>>, vector<32x256xf32>
    %c1_69 = arith.constant 1 : index
    %c0_70 = arith.constant 0 : index
    %c0_71 = arith.constant 0 : index
    %92 = vector.load %arg2[%c1_69, %c0_70, %c0_71] : memref<3x32x1xf32, #tpu.memory_space<vmem>>, vector<1x32x1xf32>
    %93 = vector.shape_cast %92 : vector<1x32x1xf32> to vector<32x1xf32>
    %94 = vector.broadcast %93 : vector<32x1xf32> to vector<32x256xf32>
    %95 = arith.addf %91, %94 : vector<32x256xf32>
    %cst_72 = arith.constant 0.000000e+00 : f32
    %96 = vector.broadcast %cst_72 : f32 to vector<32x256xf32>
    %97 = arith.maximumf %95, %96 : vector<32x256xf32>
    %c1_73 = arith.constant 1 : index
    %c0_74 = arith.constant 0 : index
    %c0_75 = arith.constant 0 : index
    %98 = vector.load %arg3[%c1_73, %c0_74, %c0_75] : memref<3x8x32xf32, #tpu.memory_space<vmem>>, vector<1x8x32xf32>
    %99 = vector.shape_cast %98 : vector<1x8x32xf32> to vector<8x32xf32>
    %cst_76 = arith.constant dense<0.000000e+00> : vector<8x256xf32>
    %100 = tpu.matmul %99, %97, %cst_76 {dimension_numbers = #tpu.dot_dimension_numbers<[1], [0], [0], [1], [0, 0, 1, 1], [], []>} : vector<8x32xf32>, vector<32x256xf32>, vector<8x256xf32> -> vector<8x256xf32>
    %c1_77 = arith.constant 1 : index
    %c0_78 = arith.constant 0 : index
    %c0_79 = arith.constant 0 : index
    %101 = vector.load %arg4[%c1_77, %c0_78, %c0_79] : memref<3x8x1xf32, #tpu.memory_space<vmem>>, vector<1x8x1xf32>
    %102 = vector.shape_cast %101 : vector<1x8x1xf32> to vector<8x1xf32>
    %103 = vector.broadcast %102 : vector<8x1xf32> to vector<8x256xf32>
    %104 = arith.addf %100, %103 : vector<8x256xf32>
    %cst_80 = arith.constant 0.000000e+00 : f32
    %105 = vector.broadcast %cst_80 : f32 to vector<8x256xf32>
    %106 = arith.maximumf %104, %105 : vector<8x256xf32>
    %cst_81 = arith.constant 0.000000e+00 : f32
    %107 = vector.broadcast %cst_81 : f32 to vector<8x256xf32>
    %c17_i32_82 = arith.constant 17 : i32
    %108 = tpu.dynamic_rotate %106 by %c17_i32_82 dim 1 : vector<8x256xf32>, i32 -> vector<8x256xf32>
    %c9 = arith.constant 9 : index
    %c0_83 = arith.constant 0 : index
    %c0_84 = arith.constant 0 : index
    %109 = vector.load %arg5[%c9, %c0_83, %c0_84] : memref<27x8x8xf32, #tpu.memory_space<vmem>>, vector<1x8x8xf32>
    %110 = vector.shape_cast %109 : vector<1x8x8xf32> to vector<8x8xf32>
    %cst_85 = arith.constant dense<0.000000e+00> : vector<8x256xf32>
    %111 = tpu.matmul %110, %108, %cst_85 {dimension_numbers = #tpu.dot_dimension_numbers<[1], [0], [0], [1], [0, 0, 1, 1], [], []>} : vector<8x8xf32>, vector<8x256xf32>, vector<8x256xf32> -> vector<8x256xf32>
    %c0_86 = arith.constant 0 : index
    %c0_87 = arith.constant 0 : index
    %112 = vector.load %arg6[%c0_86, %c0_87] : memref<9x256xf32, #tpu.memory_space<vmem>>, vector<1x256xf32>
    %113 = vector.broadcast %112 : vector<1x256xf32> to vector<8x256xf32>
    %114 = arith.mulf %111, %113 : vector<8x256xf32>
    %115 = arith.addf %107, %114 : vector<8x256xf32>
    %c16_i32_88 = arith.constant 16 : i32
    %116 = tpu.dynamic_rotate %106 by %c16_i32_88 dim 1 : vector<8x256xf32>, i32 -> vector<8x256xf32>
    %c10 = arith.constant 10 : index
    %c0_89 = arith.constant 0 : index
    %c0_90 = arith.constant 0 : index
    %117 = vector.load %arg5[%c10, %c0_89, %c0_90] : memref<27x8x8xf32, #tpu.memory_space<vmem>>, vector<1x8x8xf32>
    %118 = vector.shape_cast %117 : vector<1x8x8xf32> to vector<8x8xf32>
    %cst_91 = arith.constant dense<0.000000e+00> : vector<8x256xf32>
    %119 = tpu.matmul %118, %116, %cst_91 {dimension_numbers = #tpu.dot_dimension_numbers<[1], [0], [0], [1], [0, 0, 1, 1], [], []>} : vector<8x8xf32>, vector<8x256xf32>, vector<8x256xf32> -> vector<8x256xf32>
    %c1_92 = arith.constant 1 : index
    %c0_93 = arith.constant 0 : index
    %120 = vector.load %arg6[%c1_92, %c0_93] : memref<9x256xf32, #tpu.memory_space<vmem>>, vector<1x256xf32>
    %121 = vector.broadcast %120 : vector<1x256xf32> to vector<8x256xf32>
    %122 = arith.mulf %119, %121 : vector<8x256xf32>
    %123 = arith.addf %115, %122 : vector<8x256xf32>
    %c15_i32_94 = arith.constant 15 : i32
    %124 = tpu.dynamic_rotate %106 by %c15_i32_94 dim 1 : vector<8x256xf32>, i32 -> vector<8x256xf32>
    %c11 = arith.constant 11 : index
    %c0_95 = arith.constant 0 : index
    %c0_96 = arith.constant 0 : index
    %125 = vector.load %arg5[%c11, %c0_95, %c0_96] : memref<27x8x8xf32, #tpu.memory_space<vmem>>, vector<1x8x8xf32>
    %126 = vector.shape_cast %125 : vector<1x8x8xf32> to vector<8x8xf32>
    %cst_97 = arith.constant dense<0.000000e+00> : vector<8x256xf32>
    %127 = tpu.matmul %126, %124, %cst_97 {dimension_numbers = #tpu.dot_dimension_numbers<[1], [0], [0], [1], [0, 0, 1, 1], [], []>} : vector<8x8xf32>, vector<8x256xf32>, vector<8x256xf32> -> vector<8x256xf32>
    %c2_98 = arith.constant 2 : index
    %c0_99 = arith.constant 0 : index
    %128 = vector.load %arg6[%c2_98, %c0_99] : memref<9x256xf32, #tpu.memory_space<vmem>>, vector<1x256xf32>
    %129 = vector.broadcast %128 : vector<1x256xf32> to vector<8x256xf32>
    %130 = arith.mulf %127, %129 : vector<8x256xf32>
    %131 = arith.addf %123, %130 : vector<8x256xf32>
    %c1_i32_100 = arith.constant 1 : i32
    %132 = tpu.dynamic_rotate %106 by %c1_i32_100 dim 1 : vector<8x256xf32>, i32 -> vector<8x256xf32>
    %c12 = arith.constant 12 : index
    %c0_101 = arith.constant 0 : index
    %c0_102 = arith.constant 0 : index
    %133 = vector.load %arg5[%c12, %c0_101, %c0_102] : memref<27x8x8xf32, #tpu.memory_space<vmem>>, vector<1x8x8xf32>
    %134 = vector.shape_cast %133 : vector<1x8x8xf32> to vector<8x8xf32>
    %cst_103 = arith.constant dense<0.000000e+00> : vector<8x256xf32>
    %135 = tpu.matmul %134, %132, %cst_103 {dimension_numbers = #tpu.dot_dimension_numbers<[1], [0], [0], [1], [0, 0, 1, 1], [], []>} : vector<8x8xf32>, vector<8x256xf32>, vector<8x256xf32> -> vector<8x256xf32>
    %c3_104 = arith.constant 3 : index
    %c0_105 = arith.constant 0 : index
    %136 = vector.load %arg6[%c3_104, %c0_105] : memref<9x256xf32, #tpu.memory_space<vmem>>, vector<1x256xf32>
    %137 = vector.broadcast %136 : vector<1x256xf32> to vector<8x256xf32>
    %138 = arith.mulf %135, %137 : vector<8x256xf32>
    %139 = arith.addf %131, %138 : vector<8x256xf32>
    %c13 = arith.constant 13 : index
    %c0_106 = arith.constant 0 : index
    %c0_107 = arith.constant 0 : index
    %140 = vector.load %arg5[%c13, %c0_106, %c0_107] : memref<27x8x8xf32, #tpu.memory_space<vmem>>, vector<1x8x8xf32>
    %141 = vector.shape_cast %140 : vector<1x8x8xf32> to vector<8x8xf32>
    %cst_108 = arith.constant dense<0.000000e+00> : vector<8x256xf32>
    %142 = tpu.matmul %141, %106, %cst_108 {dimension_numbers = #tpu.dot_dimension_numbers<[1], [0], [0], [1], [0, 0, 1, 1], [], []>} : vector<8x8xf32>, vector<8x256xf32>, vector<8x256xf32> -> vector<8x256xf32>
    %143 = arith.addf %139, %142 : vector<8x256xf32>
    %c255_i32_109 = arith.constant 255 : i32
    %144 = tpu.dynamic_rotate %106 by %c255_i32_109 dim 1 : vector<8x256xf32>, i32 -> vector<8x256xf32>
    %c14 = arith.constant 14 : index
    %c0_110 = arith.constant 0 : index
    %c0_111 = arith.constant 0 : index
    %145 = vector.load %arg5[%c14, %c0_110, %c0_111] : memref<27x8x8xf32, #tpu.memory_space<vmem>>, vector<1x8x8xf32>
    %146 = vector.shape_cast %145 : vector<1x8x8xf32> to vector<8x8xf32>
    %cst_112 = arith.constant dense<0.000000e+00> : vector<8x256xf32>
    %147 = tpu.matmul %146, %144, %cst_112 {dimension_numbers = #tpu.dot_dimension_numbers<[1], [0], [0], [1], [0, 0, 1, 1], [], []>} : vector<8x8xf32>, vector<8x256xf32>, vector<8x256xf32> -> vector<8x256xf32>
    %c5_113 = arith.constant 5 : index
    %c0_114 = arith.constant 0 : index
    %148 = vector.load %arg6[%c5_113, %c0_114] : memref<9x256xf32, #tpu.memory_space<vmem>>, vector<1x256xf32>
    %149 = vector.broadcast %148 : vector<1x256xf32> to vector<8x256xf32>
    %150 = arith.mulf %147, %149 : vector<8x256xf32>
    %151 = arith.addf %143, %150 : vector<8x256xf32>
    %c241_i32_115 = arith.constant 241 : i32
    %152 = tpu.dynamic_rotate %106 by %c241_i32_115 dim 1 : vector<8x256xf32>, i32 -> vector<8x256xf32>
    %c15 = arith.constant 15 : index
    %c0_116 = arith.constant 0 : index
    %c0_117 = arith.constant 0 : index
    %153 = vector.load %arg5[%c15, %c0_116, %c0_117] : memref<27x8x8xf32, #tpu.memory_space<vmem>>, vector<1x8x8xf32>
    %154 = vector.shape_cast %153 : vector<1x8x8xf32> to vector<8x8xf32>
    %cst_118 = arith.constant dense<0.000000e+00> : vector<8x256xf32>
    %155 = tpu.matmul %154, %152, %cst_118 {dimension_numbers = #tpu.dot_dimension_numbers<[1], [0], [0], [1], [0, 0, 1, 1], [], []>} : vector<8x8xf32>, vector<8x256xf32>, vector<8x256xf32> -> vector<8x256xf32>
    %c6_119 = arith.constant 6 : index
    %c0_120 = arith.constant 0 : index
    %156 = vector.load %arg6[%c6_119, %c0_120] : memref<9x256xf32, #tpu.memory_space<vmem>>, vector<1x256xf32>
    %157 = vector.broadcast %156 : vector<1x256xf32> to vector<8x256xf32>
    %158 = arith.mulf %155, %157 : vector<8x256xf32>
    %159 = arith.addf %151, %158 : vector<8x256xf32>
    %c240_i32_121 = arith.constant 240 : i32
    %160 = tpu.dynamic_rotate %106 by %c240_i32_121 dim 1 : vector<8x256xf32>, i32 -> vector<8x256xf32>
    %c16 = arith.constant 16 : index
    %c0_122 = arith.constant 0 : index
    %c0_123 = arith.constant 0 : index
    %161 = vector.load %arg5[%c16, %c0_122, %c0_123] : memref<27x8x8xf32, #tpu.memory_space<vmem>>, vector<1x8x8xf32>
    %162 = vector.shape_cast %161 : vector<1x8x8xf32> to vector<8x8xf32>
    %cst_124 = arith.constant dense<0.000000e+00> : vector<8x256xf32>
    %163 = tpu.matmul %162, %160, %cst_124 {dimension_numbers = #tpu.dot_dimension_numbers<[1], [0], [0], [1], [0, 0, 1, 1], [], []>} : vector<8x8xf32>, vector<8x256xf32>, vector<8x256xf32> -> vector<8x256xf32>
    %c7_125 = arith.constant 7 : index
    %c0_126 = arith.constant 0 : index
    %164 = vector.load %arg6[%c7_125, %c0_126] : memref<9x256xf32, #tpu.memory_space<vmem>>, vector<1x256xf32>
    %165 = vector.broadcast %164 : vector<1x256xf32> to vector<8x256xf32>
    %166 = arith.mulf %163, %165 : vector<8x256xf32>
    %167 = arith.addf %159, %166 : vector<8x256xf32>
    %c239_i32_127 = arith.constant 239 : i32
    %168 = tpu.dynamic_rotate %106 by %c239_i32_127 dim 1 : vector<8x256xf32>, i32 -> vector<8x256xf32>
    %c17 = arith.constant 17 : index
    %c0_128 = arith.constant 0 : index
    %c0_129 = arith.constant 0 : index
    %169 = vector.load %arg5[%c17, %c0_128, %c0_129] : memref<27x8x8xf32, #tpu.memory_space<vmem>>, vector<1x8x8xf32>
    %170 = vector.shape_cast %169 : vector<1x8x8xf32> to vector<8x8xf32>
    %cst_130 = arith.constant dense<0.000000e+00> : vector<8x256xf32>
    %171 = tpu.matmul %170, %168, %cst_130 {dimension_numbers = #tpu.dot_dimension_numbers<[1], [0], [0], [1], [0, 0, 1, 1], [], []>} : vector<8x8xf32>, vector<8x256xf32>, vector<8x256xf32> -> vector<8x256xf32>
    %c8_131 = arith.constant 8 : index
    %c0_132 = arith.constant 0 : index
    %172 = vector.load %arg6[%c8_131, %c0_132] : memref<9x256xf32, #tpu.memory_space<vmem>>, vector<1x256xf32>
    %173 = vector.broadcast %172 : vector<1x256xf32> to vector<8x256xf32>
    %174 = arith.mulf %171, %173 : vector<8x256xf32>
    %175 = arith.addf %167, %174 : vector<8x256xf32>
    %c16_133 = arith.constant 16 : index
    %c0_134 = arith.constant 0 : index
    %176 = vector.load %arg8[%c16_133, %c0_134] : memref<32x256xf32, #tpu.memory_space<vmem>>, vector<8x256xf32>
    tpu.vector_store %arg8[%c16_133, %c0_134], %175 {strides = array<i32>} : memref<32x256xf32, #tpu.memory_space<vmem>>, vector<8x256xf32>,
    %c0_135 = arith.constant 0 : index
    %c0_136 = arith.constant 0 : index
    %177 = vector.load %arg8[%c0_135, %c0_136] : memref<32x256xf32, #tpu.memory_space<vmem>>, vector<32x256xf32>
    %c2_137 = arith.constant 2 : index
    %c0_138 = arith.constant 0 : index
    %c0_139 = arith.constant 0 : index
    %178 = vector.load %arg2[%c2_137, %c0_138, %c0_139] : memref<3x32x1xf32, #tpu.memory_space<vmem>>, vector<1x32x1xf32>
    %179 = vector.shape_cast %178 : vector<1x32x1xf32> to vector<32x1xf32>
    %180 = vector.broadcast %179 : vector<32x1xf32> to vector<32x256xf32>
    %181 = arith.addf %177, %180 : vector<32x256xf32>
    %cst_140 = arith.constant 0.000000e+00 : f32
    %182 = vector.broadcast %cst_140 : f32 to vector<32x256xf32>
    %183 = arith.maximumf %181, %182 : vector<32x256xf32>
    %c2_141 = arith.constant 2 : index
    %c0_142 = arith.constant 0 : index
    %c0_143 = arith.constant 0 : index
    %184 = vector.load %arg3[%c2_141, %c0_142, %c0_143] : memref<3x8x32xf32, #tpu.memory_space<vmem>>, vector<1x8x32xf32>
    %185 = vector.shape_cast %184 : vector<1x8x32xf32> to vector<8x32xf32>
    %cst_144 = arith.constant dense<0.000000e+00> : vector<8x256xf32>
    %186 = tpu.matmul %185, %183, %cst_144 {dimension_numbers = #tpu.dot_dimension_numbers<[1], [0], [0], [1], [0, 0, 1, 1], [], []>} : vector<8x32xf32>, vector<32x256xf32>, vector<8x256xf32> -> vector<8x256xf32>
    %c2_145 = arith.constant 2 : index
    %c0_146 = arith.constant 0 : index
    %c0_147 = arith.constant 0 : index
    %187 = vector.load %arg4[%c2_145, %c0_146, %c0_147] : memref<3x8x1xf32, #tpu.memory_space<vmem>>, vector<1x8x1xf32>
    %188 = vector.shape_cast %187 : vector<1x8x1xf32> to vector<8x1xf32>
    %189 = vector.broadcast %188 : vector<8x1xf32> to vector<8x256xf32>
    %190 = arith.addf %186, %189 : vector<8x256xf32>
    %cst_148 = arith.constant 0.000000e+00 : f32
    %191 = vector.broadcast %cst_148 : f32 to vector<8x256xf32>
    %192 = arith.maximumf %190, %191 : vector<8x256xf32>
    %cst_149 = arith.constant 0.000000e+00 : f32
    %193 = vector.broadcast %cst_149 : f32 to vector<8x256xf32>
    %c17_i32_150 = arith.constant 17 : i32
    %194 = tpu.dynamic_rotate %192 by %c17_i32_150 dim 1 : vector<8x256xf32>, i32 -> vector<8x256xf32>
    %c18 = arith.constant 18 : index
    %c0_151 = arith.constant 0 : index
    %c0_152 = arith.constant 0 : index
    %195 = vector.load %arg5[%c18, %c0_151, %c0_152] : memref<27x8x8xf32, #tpu.memory_space<vmem>>, vector<1x8x8xf32>
    %196 = vector.shape_cast %195 : vector<1x8x8xf32> to vector<8x8xf32>
    %cst_153 = arith.constant dense<0.000000e+00> : vector<8x256xf32>
    %197 = tpu.matmul %196, %194, %cst_153 {dimension_numbers = #tpu.dot_dimension_numbers<[1], [0], [0], [1], [0, 0, 1, 1], [], []>} : vector<8x8xf32>, vector<8x256xf32>, vector<8x256xf32> -> vector<8x256xf32>
    %c0_154 = arith.constant 0 : index
    %c0_155 = arith.constant 0 : index
    %198 = vector.load %arg6[%c0_154, %c0_155] : memref<9x256xf32, #tpu.memory_space<vmem>>, vector<1x256xf32>
    %199 = vector.broadcast %198 : vector<1x256xf32> to vector<8x256xf32>
    %200 = arith.mulf %197, %199 : vector<8x256xf32>
    %201 = arith.addf %193, %200 : vector<8x256xf32>
    %c16_i32_156 = arith.constant 16 : i32
    %202 = tpu.dynamic_rotate %192 by %c16_i32_156 dim 1 : vector<8x256xf32>, i32 -> vector<8x256xf32>
    %c19 = arith.constant 19 : index
    %c0_157 = arith.constant 0 : index
    %c0_158 = arith.constant 0 : index
    %203 = vector.load %arg5[%c19, %c0_157, %c0_158] : memref<27x8x8xf32, #tpu.memory_space<vmem>>, vector<1x8x8xf32>
    %204 = vector.shape_cast %203 : vector<1x8x8xf32> to vector<8x8xf32>
    %cst_159 = arith.constant dense<0.000000e+00> : vector<8x256xf32>
    %205 = tpu.matmul %204, %202, %cst_159 {dimension_numbers = #tpu.dot_dimension_numbers<[1], [0], [0], [1], [0, 0, 1, 1], [], []>} : vector<8x8xf32>, vector<8x256xf32>, vector<8x256xf32> -> vector<8x256xf32>
    %c1_160 = arith.constant 1 : index
    %c0_161 = arith.constant 0 : index
    %206 = vector.load %arg6[%c1_160, %c0_161] : memref<9x256xf32, #tpu.memory_space<vmem>>, vector<1x256xf32>
    %207 = vector.broadcast %206 : vector<1x256xf32> to vector<8x256xf32>
    %208 = arith.mulf %205, %207 : vector<8x256xf32>
    %209 = arith.addf %201, %208 : vector<8x256xf32>
    %c15_i32_162 = arith.constant 15 : i32
    %210 = tpu.dynamic_rotate %192 by %c15_i32_162 dim 1 : vector<8x256xf32>, i32 -> vector<8x256xf32>
    %c20 = arith.constant 20 : index
    %c0_163 = arith.constant 0 : index
    %c0_164 = arith.constant 0 : index
    %211 = vector.load %arg5[%c20, %c0_163, %c0_164] : memref<27x8x8xf32, #tpu.memory_space<vmem>>, vector<1x8x8xf32>
    %212 = vector.shape_cast %211 : vector<1x8x8xf32> to vector<8x8xf32>
    %cst_165 = arith.constant dense<0.000000e+00> : vector<8x256xf32>
    %213 = tpu.matmul %212, %210, %cst_165 {dimension_numbers = #tpu.dot_dimension_numbers<[1], [0], [0], [1], [0, 0, 1, 1], [], []>} : vector<8x8xf32>, vector<8x256xf32>, vector<8x256xf32> -> vector<8x256xf32>
    %c2_166 = arith.constant 2 : index
    %c0_167 = arith.constant 0 : index
    %214 = vector.load %arg6[%c2_166, %c0_167] : memref<9x256xf32, #tpu.memory_space<vmem>>, vector<1x256xf32>
    %215 = vector.broadcast %214 : vector<1x256xf32> to vector<8x256xf32>
    %216 = arith.mulf %213, %215 : vector<8x256xf32>
    %217 = arith.addf %209, %216 : vector<8x256xf32>
    %c1_i32_168 = arith.constant 1 : i32
    %218 = tpu.dynamic_rotate %192 by %c1_i32_168 dim 1 : vector<8x256xf32>, i32 -> vector<8x256xf32>
    %c21 = arith.constant 21 : index
    %c0_169 = arith.constant 0 : index
    %c0_170 = arith.constant 0 : index
    %219 = vector.load %arg5[%c21, %c0_169, %c0_170] : memref<27x8x8xf32, #tpu.memory_space<vmem>>, vector<1x8x8xf32>
    %220 = vector.shape_cast %219 : vector<1x8x8xf32> to vector<8x8xf32>
    %cst_171 = arith.constant dense<0.000000e+00> : vector<8x256xf32>
    %221 = tpu.matmul %220, %218, %cst_171 {dimension_numbers = #tpu.dot_dimension_numbers<[1], [0], [0], [1], [0, 0, 1, 1], [], []>} : vector<8x8xf32>, vector<8x256xf32>, vector<8x256xf32> -> vector<8x256xf32>
    %c3_172 = arith.constant 3 : index
    %c0_173 = arith.constant 0 : index
    %222 = vector.load %arg6[%c3_172, %c0_173] : memref<9x256xf32, #tpu.memory_space<vmem>>, vector<1x256xf32>
    %223 = vector.broadcast %222 : vector<1x256xf32> to vector<8x256xf32>
    %224 = arith.mulf %221, %223 : vector<8x256xf32>
    %225 = arith.addf %217, %224 : vector<8x256xf32>
    %c22 = arith.constant 22 : index
    %c0_174 = arith.constant 0 : index
    %c0_175 = arith.constant 0 : index
    %226 = vector.load %arg5[%c22, %c0_174, %c0_175] : memref<27x8x8xf32, #tpu.memory_space<vmem>>, vector<1x8x8xf32>
    %227 = vector.shape_cast %226 : vector<1x8x8xf32> to vector<8x8xf32>
    %cst_176 = arith.constant dense<0.000000e+00> : vector<8x256xf32>
    %228 = tpu.matmul %227, %192, %cst_176 {dimension_numbers = #tpu.dot_dimension_numbers<[1], [0], [0], [1], [0, 0, 1, 1], [], []>} : vector<8x8xf32>, vector<8x256xf32>, vector<8x256xf32> -> vector<8x256xf32>
    %229 = arith.addf %225, %228 : vector<8x256xf32>
    %c255_i32_177 = arith.constant 255 : i32
    %230 = tpu.dynamic_rotate %192 by %c255_i32_177 dim 1 : vector<8x256xf32>, i32 -> vector<8x256xf32>
    %c23 = arith.constant 23 : index
    %c0_178 = arith.constant 0 : index
    %c0_179 = arith.constant 0 : index
    %231 = vector.load %arg5[%c23, %c0_178, %c0_179] : memref<27x8x8xf32, #tpu.memory_space<vmem>>, vector<1x8x8xf32>
    %232 = vector.shape_cast %231 : vector<1x8x8xf32> to vector<8x8xf32>
    %cst_180 = arith.constant dense<0.000000e+00> : vector<8x256xf32>
    %233 = tpu.matmul %232, %230, %cst_180 {dimension_numbers = #tpu.dot_dimension_numbers<[1], [0], [0], [1], [0, 0, 1, 1], [], []>} : vector<8x8xf32>, vector<8x256xf32>, vector<8x256xf32> -> vector<8x256xf32>
    %c5_181 = arith.constant 5 : index
    %c0_182 = arith.constant 0 : index
    %234 = vector.load %arg6[%c5_181, %c0_182] : memref<9x256xf32, #tpu.memory_space<vmem>>, vector<1x256xf32>
    %235 = vector.broadcast %234 : vector<1x256xf32> to vector<8x256xf32>
    %236 = arith.mulf %233, %235 : vector<8x256xf32>
    %237 = arith.addf %229, %236 : vector<8x256xf32>
    %c241_i32_183 = arith.constant 241 : i32
    %238 = tpu.dynamic_rotate %192 by %c241_i32_183 dim 1 : vector<8x256xf32>, i32 -> vector<8x256xf32>
    %c24 = arith.constant 24 : index
    %c0_184 = arith.constant 0 : index
    %c0_185 = arith.constant 0 : index
    %239 = vector.load %arg5[%c24, %c0_184, %c0_185] : memref<27x8x8xf32, #tpu.memory_space<vmem>>, vector<1x8x8xf32>
    %240 = vector.shape_cast %239 : vector<1x8x8xf32> to vector<8x8xf32>
    %cst_186 = arith.constant dense<0.000000e+00> : vector<8x256xf32>
    %241 = tpu.matmul %240, %238, %cst_186 {dimension_numbers = #tpu.dot_dimension_numbers<[1], [0], [0], [1], [0, 0, 1, 1], [], []>} : vector<8x8xf32>, vector<8x256xf32>, vector<8x256xf32> -> vector<8x256xf32>
    %c6_187 = arith.constant 6 : index
    %c0_188 = arith.constant 0 : index
    %242 = vector.load %arg6[%c6_187, %c0_188] : memref<9x256xf32, #tpu.memory_space<vmem>>, vector<1x256xf32>
    %243 = vector.broadcast %242 : vector<1x256xf32> to vector<8x256xf32>
    %244 = arith.mulf %241, %243 : vector<8x256xf32>
    %245 = arith.addf %237, %244 : vector<8x256xf32>
    %c240_i32_189 = arith.constant 240 : i32
    %246 = tpu.dynamic_rotate %192 by %c240_i32_189 dim 1 : vector<8x256xf32>, i32 -> vector<8x256xf32>
    %c25 = arith.constant 25 : index
    %c0_190 = arith.constant 0 : index
    %c0_191 = arith.constant 0 : index
    %247 = vector.load %arg5[%c25, %c0_190, %c0_191] : memref<27x8x8xf32, #tpu.memory_space<vmem>>, vector<1x8x8xf32>
    %248 = vector.shape_cast %247 : vector<1x8x8xf32> to vector<8x8xf32>
    %cst_192 = arith.constant dense<0.000000e+00> : vector<8x256xf32>
    %249 = tpu.matmul %248, %246, %cst_192 {dimension_numbers = #tpu.dot_dimension_numbers<[1], [0], [0], [1], [0, 0, 1, 1], [], []>} : vector<8x8xf32>, vector<8x256xf32>, vector<8x256xf32> -> vector<8x256xf32>
    %c7_193 = arith.constant 7 : index
    %c0_194 = arith.constant 0 : index
    %250 = vector.load %arg6[%c7_193, %c0_194] : memref<9x256xf32, #tpu.memory_space<vmem>>, vector<1x256xf32>
    %251 = vector.broadcast %250 : vector<1x256xf32> to vector<8x256xf32>
    %252 = arith.mulf %249, %251 : vector<8x256xf32>
    %253 = arith.addf %245, %252 : vector<8x256xf32>
    %c239_i32_195 = arith.constant 239 : i32
    %254 = tpu.dynamic_rotate %192 by %c239_i32_195 dim 1 : vector<8x256xf32>, i32 -> vector<8x256xf32>
    %c26 = arith.constant 26 : index
    %c0_196 = arith.constant 0 : index
    %c0_197 = arith.constant 0 : index
    %255 = vector.load %arg5[%c26, %c0_196, %c0_197] : memref<27x8x8xf32, #tpu.memory_space<vmem>>, vector<1x8x8xf32>
    %256 = vector.shape_cast %255 : vector<1x8x8xf32> to vector<8x8xf32>
    %cst_198 = arith.constant dense<0.000000e+00> : vector<8x256xf32>
    %257 = tpu.matmul %256, %254, %cst_198 {dimension_numbers = #tpu.dot_dimension_numbers<[1], [0], [0], [1], [0, 0, 1, 1], [], []>} : vector<8x8xf32>, vector<8x256xf32>, vector<8x256xf32> -> vector<8x256xf32>
    %c8_199 = arith.constant 8 : index
    %c0_200 = arith.constant 0 : index
    %258 = vector.load %arg6[%c8_199, %c0_200] : memref<9x256xf32, #tpu.memory_space<vmem>>, vector<1x256xf32>
    %259 = vector.broadcast %258 : vector<1x256xf32> to vector<8x256xf32>
    %260 = arith.mulf %257, %259 : vector<8x256xf32>
    %261 = arith.addf %253, %260 : vector<8x256xf32>
    %c24_201 = arith.constant 24 : index
    %c0_202 = arith.constant 0 : index
    %262 = vector.load %arg8[%c24_201, %c0_202] : memref<32x256xf32, #tpu.memory_space<vmem>>, vector<8x256xf32>
    tpu.vector_store %arg8[%c24_201, %c0_202], %261 {strides = array<i32>} : memref<32x256xf32, #tpu.memory_space<vmem>>, vector<8x256xf32>,
    %c0_203 = arith.constant 0 : index
    %c0_204 = arith.constant 0 : index
    %263 = vector.load %arg8[%c0_203, %c0_204] : memref<32x256xf32, #tpu.memory_space<vmem>>, vector<8x256xf32>
    %c0_205 = arith.constant 0 : index
    %c12_206 = arith.constant 12 : index
    %c0_207 = arith.constant 0 : index
    %264 = vector.load %arg7[%c0_205, %c12_206, %c0_207] : memref<1x20x256xf32, #tpu.memory_space<vmem>>, vector<1x8x256xf32>
    %265 = vector.shape_cast %264 : vector<1x8x256xf32> to vector<8x256xf32>
    %266 = vector.shape_cast %263 : vector<8x256xf32> to vector<1x8x256xf32>
    tpu.vector_store %arg7[%c0_205, %c12_206, %c0_207], %266 {strides = array<i32>} : memref<1x20x256xf32, #tpu.memory_space<vmem>>, vector<1x8x256xf32>,
    %c8_208 = arith.constant 8 : index
    %c0_209 = arith.constant 0 : index
    %267 = vector.load %arg8[%c8_208, %c0_209] : memref<32x256xf32, #tpu.memory_space<vmem>>, vector<4x256xf32>
    %c0_210 = arith.constant 0 : index
    %c8_211 = arith.constant 8 : index
    %c0_212 = arith.constant 0 : index
    %268 = vector.load %arg7[%c0_210, %c8_211, %c0_212] : memref<1x20x256xf32, #tpu.memory_space<vmem>>, vector<1x4x256xf32>
    %269 = vector.shape_cast %268 : vector<1x4x256xf32> to vector<4x256xf32>
    %270 = vector.shape_cast %267 : vector<4x256xf32> to vector<1x4x256xf32>
    tpu.vector_store %arg7[%c0_210, %c8_211, %c0_212], %270 {strides = array<i32>} : memref<1x20x256xf32, #tpu.memory_space<vmem>>, vector<1x4x256xf32>,
    %c16_213 = arith.constant 16 : index
    %c0_214 = arith.constant 0 : index
    %271 = vector.load %arg8[%c16_213, %c0_214] : memref<32x256xf32, #tpu.memory_space<vmem>>, vector<4x256xf32>
    %c0_215 = arith.constant 0 : index
    %c4_216 = arith.constant 4 : index
    %c0_217 = arith.constant 0 : index
    %272 = vector.load %arg7[%c0_215, %c4_216, %c0_217] : memref<1x20x256xf32, #tpu.memory_space<vmem>>, vector<1x4x256xf32>
    %273 = vector.shape_cast %272 : vector<1x4x256xf32> to vector<4x256xf32>
    %274 = vector.shape_cast %271 : vector<4x256xf32> to vector<1x4x256xf32>
    tpu.vector_store %arg7[%c0_215, %c4_216, %c0_217], %274 {strides = array<i32>} : memref<1x20x256xf32, #tpu.memory_space<vmem>>, vector<1x4x256xf32>,
    %c24_218 = arith.constant 24 : index
    %c0_219 = arith.constant 0 : index
    %275 = vector.load %arg8[%c24_218, %c0_219] : memref<32x256xf32, #tpu.memory_space<vmem>>, vector<4x256xf32>
    %c0_220 = arith.constant 0 : index
    %c0_221 = arith.constant 0 : index
    %c0_222 = arith.constant 0 : index
    %276 = vector.load %arg7[%c0_220, %c0_221, %c0_222] : memref<1x20x256xf32, #tpu.memory_space<vmem>>, vector<1x4x256xf32>
    %277 = vector.shape_cast %276 : vector<1x4x256xf32> to vector<4x256xf32>
    %278 = vector.shape_cast %275 : vector<4x256xf32> to vector<1x4x256xf32>
    tpu.vector_store %arg7[%c0_220, %c0_221, %c0_222], %278 {strides = array<i32>} : memref<1x20x256xf32, #tpu.memory_space<vmem>>, vector<1x4x256xf32>,
    return
  }
  func.func @transform_0(%arg0: i32) -> (i32, i32, i32) {
    %c0_i32 = arith.constant 0 : i32
    %c0_i32_0 = arith.constant 0 : i32
    %c0_i32_1 = arith.constant 0 : i32
    return %arg0, %c0_i32, %c0_i32_0 : i32, i32, i32
  }
  func.func @transform_1(%arg0: i32) -> (i32, i32, i32) {
    %c0_i32 = arith.constant 0 : i32
    %c0_i32_0 = arith.constant 0 : i32
    %c0_i32_1 = arith.constant 0 : i32
    %c0_i32_2 = arith.constant 0 : i32
    return %c0_i32, %c0_i32_0, %c0_i32_1 : i32, i32, i32
  }
  func.func @transform_2(%arg0: i32) -> (i32, i32, i32) {
    %c0_i32 = arith.constant 0 : i32
    %c0_i32_0 = arith.constant 0 : i32
    %c0_i32_1 = arith.constant 0 : i32
    %c0_i32_2 = arith.constant 0 : i32
    return %c0_i32, %c0_i32_0, %c0_i32_1 : i32, i32, i32
  }
  func.func @transform_3(%arg0: i32) -> (i32, i32, i32) {
    %c0_i32 = arith.constant 0 : i32
    %c0_i32_0 = arith.constant 0 : i32
    %c0_i32_1 = arith.constant 0 : i32
    %c0_i32_2 = arith.constant 0 : i32
    return %c0_i32, %c0_i32_0, %c0_i32_1 : i32, i32, i32
  }
  func.func @transform_4(%arg0: i32) -> (i32, i32, i32) {
    %c0_i32 = arith.constant 0 : i32
    %c0_i32_0 = arith.constant 0 : i32
    %c0_i32_1 = arith.constant 0 : i32
    %c0_i32_2 = arith.constant 0 : i32
    return %c0_i32, %c0_i32_0, %c0_i32_1 : i32, i32, i32
  }
  func.func @transform_5(%arg0: i32) -> (i32, i32) {
    %c0_i32 = arith.constant 0 : i32
    %c0_i32_0 = arith.constant 0 : i32
    %c0_i32_1 = arith.constant 0 : i32
    return %c0_i32, %c0_i32_0 : i32, i32
  }
  func.func @transform_6(%arg0: i32) -> (i32, i32, i32) {
    %c0_i32 = arith.constant 0 : i32
    %c0_i32_0 = arith.constant 0 : i32
    %c0_i32_1 = arith.constant 0 : i32
    return %arg0, %c0_i32, %c0_i32_0 : i32, i32, i32
  }
}

</mosaic_0001>

<llo_original>
// kernel: tpu_custom_call.1
$region0: #{tpu_custom_call.1}
  #allocation0 [shape = 'u32[]', space=smem, size = 0x4, offset = 0x4, fixed_abs, tag = 'smem constant byte address 0x4 - core index']
  #allocation1 [shape = 'u32[144,128]{1,0:T(1,128)}', space=vmem, size = 0x12000, scoped, tag = 'internal scratch']
  #allocation2 [shape = 'f32[32,256]{1,0:T(8,128)}', space=vmem, size = 0x8000, scoped, tag = 'scratch operand']
  %s0 = inlined_call_operand.vmem [shape: f32[2,8,256], index: 0, kind: input, shape index: {}]
  %s1 = inlined_call_operand.vmem [shape: f32[3,32,1], index: 1, kind: input, shape index: {}]
  %s2 = inlined_call_operand.vmem [shape: f32[3,8,32], index: 2, kind: input, shape index: {}]
  %s3 = inlined_call_operand.vmem [shape: f32[3,8,1], index: 3, kind: input, shape index: {}]
  %s4 = inlined_call_operand.vmem [shape: f32[27,8,8], index: 4, kind: input, shape index: {}]
  %s5 = inlined_call_operand.vmem [shape: f32[9,256], index: 5, kind: input, shape index: {}]
  %s6 = inlined_call_operand.vmem [shape: f32[2,20,256], index: 6, kind: output, shape index: {}]
  %s7 = sld [smem:[#allocation0]]
  $region57: #{tpu_custom_call.1} parent=0
    _
  %s9 = ssub.s32 1, %s7
  %s10 = scalar_select 0, %s9, %s7
  loop: start=0, step=1, limit=4
  $region2: #{tpu_custom_call.1} parent=0 // loop_pre_header
    _
  $region3: #{tpu_custom_call.1} parent=0 // loop_header
    %s12 = sphi 0, %s16
    %p13 = scmp.ge.s32.totalorder %s12, 4
    %s22 = sphi 0, %s24
    %s25 = sphi 0, %s22
    %s26 = sphi 0, %s25
    %s42 = sphi 0, %s26
    %s46 = sphi 0, %s46
    %s48 = sphi 0, %s46
    %s49 = sphi 0, %s48
    %s63 = sphi 0, %s49
    %s67 = sphi 0, %s67
    %s69 = sphi 0, %s67
    %s70 = sphi 0, %s69
    %s84 = sphi 0, %s70
    %s88 = sphi 0, %s88
    %s90 = sphi 0, %s88
    %s91 = sphi 0, %s90
    %s105 = sphi 0, %s91
    %s109 = sphi 0, %s109
    %s111 = sphi 0, %s109
    %s112 = sphi 0, %s111
    %s126 = sphi 0, %s112
    %s130 = sphi 0, %s130
    %s132 = sphi 0, %s130
    %s133 = sphi 0, %s132
    %s147 = sphi 0, %s133
    %s153 = sphi 0, %s155
    %s156 = sphi 0, %s153
    %s157 = sphi 0, %s156
    %s173 = sphi 0, %s157
  $region4: #{tpu_custom_call.1} parent=0 // loop_header_branch
    %15 = sbr.rel (%p13) target = $region8
  $region5: #{tpu_custom_call.1} parent=0 // loop_body
    %s17 = ssub.s32 %s12, 1
    %s18 = ssub.s32 %s12, 2
    %s19 = sadd.s32 %s12, 1
    %s20 = ssub.s32 %s12, %s19
    %p21 = scmp.eq.s32.totalorder %s20, 0
    %s23 = sadd.s32 %s22, 1
    %s24 = scalar_select %p21, %s22, %s23
    %p27 = pneg %p21
    %p28 = scmp.eq.s32.totalorder %s12, 1
    %p29 = por %p27, %p28
    %p30 = scmp.ne.s32.totalorder %s22, %s25
    %p31 = scmp.eq.s32.totalorder %s12, 0
    %p32 = por %p30, %p31
    %p33 = scmp.ne.s32.totalorder %s22, %s25
    %p34 = scmp.eq.s32.totalorder %s17, 1
    %p35 = por %p33, %p34
    %p36 = scmp.ne.s32.totalorder %s25, %s26
    %p37 = scmp.eq.s32.totalorder %s17, 0
    %p38 = por %p36, %p37
    %p39 = scmp.ne.s32.totalorder %s25, %s26
    %p40 = scmp.eq.s32.totalorder %s18, 1
    %p41 = por %p39, %p40
    %p43 = scmp.ne.s32.totalorder %s26, %s42
    %p44 = scmp.eq.s32.totalorder %s18, 0
    %p45 = por %p43, %p44
    %s47 = sadd.s32 %s46, 1
    %p50 = scmp.eq.s32.totalorder %s12, 1
    %p51 = scmp.ne.s32.totalorder %s46, %s48
    %p52 = scmp.eq.s32.totalorder %s12, 0
    %p53 = por %p51, %p52
    %p54 = scmp.ne.s32.totalorder %s46, %s48
    %p55 = scmp.eq.s32.totalorder %s17, 1
    %p56 = por %p54, %p55
    %p57 = scmp.ne.s32.totalorder %s48, %s49
    %p58 = scmp.eq.s32.totalorder %s17, 0
    %p59 = por %p57, %p58
    %p60 = scmp.ne.s32.totalorder %s48, %s49
    %p61 = scmp.eq.s32.totalorder %s18, 1
    %p62 = por %p60, %p61
    %p64 = scmp.ne.s32.totalorder %s49, %s63
    %p65 = scmp.eq.s32.totalorder %s18, 0
    %p66 = por %p64, %p65
    %s68 = sadd.s32 %s67, 1
    %p71 = scmp.eq.s32.totalorder %s12, 1
    %p72 = scmp.ne.s32.totalorder %s67, %s69
    %p73 = scmp.eq.s32.totalorder %s12, 0
    %p74 = por %p72, %p73
    %p75 = scmp.ne.s32.totalorder %s67, %s69
    %p76 = scmp.eq.s32.totalorder %s17, 1
    %p77 = por %p75, %p76
    %p78 = scmp.ne.s32.totalorder %s69, %s70
    %p79 = scmp.eq.s32.totalorder %s17, 0
    %p80 = por %p78, %p79
    %p81 = scmp.ne.s32.totalorder %s69, %s70
    %p82 = scmp.eq.s32.totalorder %s18, 1
    %p83 = por %p81, %p82
    %p85 = scmp.ne.s32.totalorder %s70, %s84
    %p86 = scmp.eq.s32.totalorder %s18, 0
    %p87 = por %p85, %p86
    %s89 = sadd.s32 %s88, 1
    %p92 = scmp.eq.s32.totalorder %s12, 1
    %p93 = scmp.ne.s32.totalorder %s88, %s90
    %p94 = scmp.eq.s32.totalorder %s12, 0
    %p95 = por %p93, %p94
    %p96 = scmp.ne.s32.totalorder %s88, %s90
    %p97 = scmp.eq.s32.totalorder %s17, 1
    %p98 = por %p96, %p97
    %p99 = scmp.ne.s32.totalorder %s90, %s91
    %p100 = scmp.eq.s32.totalorder %s17, 0
    %p101 = por %p99, %p100
    %p102 = scmp.ne.s32.totalorder %s90, %s91
    %p103 = scmp.eq.s32.totalorder %s18, 1
    %p104 = por %p102, %p103
    %p106 = scmp.ne.s32.totalorder %s91, %s105
    %p107 = scmp.eq.s32.totalorder %s18, 0
    %p108 = por %p106, %p107
    %s110 = sadd.s32 %s109, 1
    %p113 = scmp.eq.s32.totalorder %s12, 1
    %p114 = scmp.ne.s32.totalorder %s109, %s111
    %p115 = scmp.eq.s32.totalorder %s12, 0
    %p116 = por %p114, %p115
    %p117 = scmp.ne.s32.totalorder %s109, %s111
    %p118 = scmp.eq.s32.totalorder %s17, 1
    %p119 = por %p117, %p118
    %p120 = scmp.ne.s32.totalorder %s111, %s112
    %p121 = scmp.eq.s32.totalorder %s17, 0
    %p122 = por %p120, %p121
    %p123 = scmp.ne.s32.totalorder %s111, %s112
    %p124 = scmp.eq.s32.totalorder %s18, 1
    %p125 = por %p123, %p124
    %p127 = scmp.ne.s32.totalorder %s112, %s126
    %p128 = scmp.eq.s32.totalorder %s18, 0
    %p129 = por %p127, %p128
    %s131 = sadd.s32 %s130, 1
    %p134 = scmp.eq.s32.totalorder %s12, 1
    %p135 = scmp.ne.s32.totalorder %s130, %s132
    %p136 = scmp.eq.s32.totalorder %s12, 0
    %p137 = por %p135, %p136
    %p138 = scmp.ne.s32.totalorder %s130, %s132
    %p139 = scmp.eq.s32.totalorder %s17, 1
    %p140 = por %p138, %p139
    %p141 = scmp.ne.s32.totalorder %s132, %s133
    %p142 = scmp.eq.s32.totalorder %s17, 0
    %p143 = por %p141, %p142
    %p144 = scmp.ne.s32.totalorder %s132, %s133
    %p145 = scmp.eq.s32.totalorder %s18, 1
    %p146 = por %p144, %p145
    %p148 = scmp.ne.s32.totalorder %s133, %s147
    %p149 = scmp.eq.s32.totalorder %s18, 0
    %p150 = por %p148, %p149
    %s151 = ssub.s32 %s12, %s19
    %p152 = scmp.eq.s32.totalorder %s151, 0
    %s154 = sadd.s32 %s153, 1
    %s155 = scalar_select %p152, %s153, %s154
    %p158 = pneg %p152
    %p159 = scmp.eq.s32.totalorder %s12, 1
    %p160 = por %p158, %p159
    %p161 = scmp.ne.s32.totalorder %s153, %s156
    %p162 = scmp.eq.s32.totalorder %s12, 0
    %p163 = por %p161, %p162
    %p164 = scmp.ne.s32.totalorder %s153, %s156
    %p165 = scmp.eq.s32.totalorder %s17, 1
    %p166 = por %p164, %p165
    %p167 = scmp.ne.s32.totalorder %s156, %s157
    %p168 = scmp.eq.s32.totalorder %s17, 0
    %p169 = por %p167, %p168
    %p170 = scmp.ne.s32.totalorder %s156, %s157
    %p171 = scmp.eq.s32.totalorder %s18, 1
    %p172 = por %p170, %p171
    %p174 = scmp.ne.s32.totalorder %s157, %s173
    %p175 = scmp.eq.s32.totalorder %s18, 0
    %p176 = por %p174, %p175
    %p177 = scmp.le.s32.totalorder 1, %s12
    %p178 = scmp.lt.s32.totalorder %s12, 3
    %p179 = pnand %p177, %p178
    %p180 = pneg %p179
    // Predicated region
    $region9: #{tpu_custom_call.1} parent=5 // pred_check
      _
    $region10: #{tpu_custom_call.1} parent=5 // pred_check_branch
      %182 = sbr.rel (%p179) target = $region12
    $region11: #{tpu_custom_call.1} parent=5 // pred_region
      %s183 = ssub.s32 %s12, 1
      // Predicated region
      $region13: #{tpu_custom_call.1} parent=11 // pred_check
        %p184 = pneg %p59
      $region14: #{tpu_custom_call.1} parent=11 // pred_check_branch
        %186 = sbr.rel (%p184) target = $region16
      $region15: #{tpu_custom_call.1} parent=11 // pred_region
        _
      $region16: #{tpu_custom_call.1} parent=11 // pred_fallthru
        _
      // Predicated region
      $region17: #{tpu_custom_call.1} parent=11 // pred_check
        %p187 = pneg %p80
      $region18: #{tpu_custom_call.1} parent=11 // pred_check_branch
        %189 = sbr.rel (%p187) target = $region20
      $region19: #{tpu_custom_call.1} parent=11 // pred_region
        _
      $region20: #{tpu_custom_call.1} parent=11 // pred_fallthru
        _
      // Predicated region
      $region21: #{tpu_custom_call.1} parent=11 // pred_check
        %p190 = pneg %p101
      $region22: #{tpu_custom_call.1} parent=11 // pred_check_branch
        %192 = sbr.rel (%p190) target = $region24
      $region23: #{tpu_custom_call.1} parent=11 // pred_region
        _
      $region24: #{tpu_custom_call.1} parent=11 // pred_fallthru
        _
      // Predicated region
      $region25: #{tpu_custom_call.1} parent=11 // pred_check
        %p193 = pneg %p122
      $region26: #{tpu_custom_call.1} parent=11 // pred_check_branch
        %195 = sbr.rel (%p193) target = $region28
      $region27: #{tpu_custom_call.1} parent=11 // pred_region
        _
      $region28: #{tpu_custom_call.1} parent=11 // pred_fallthru
        _
      // Predicated region
      $region29: #{tpu_custom_call.1} parent=11 // pred_check
        %p196 = pneg %p143
      $region30: #{tpu_custom_call.1} parent=11 // pred_check_branch
        %198 = sbr.rel (%p196) target = $region32
      $region31: #{tpu_custom_call.1} parent=11 // pred_region
        _
      $region32: #{tpu_custom_call.1} parent=11 // pred_fallthru
        _
    $region12: #{tpu_custom_call.1} parent=5 // pred_fallthru
      _
    %p199 = scmp.lt.s32.totalorder %s12, 2
    // Predicated region
    $region33: #{tpu_custom_call.1} parent=5 // pred_check
      %p200 = pneg %p199
    $region34: #{tpu_custom_call.1} parent=5 // pred_check_branch
      %202 = sbr.rel (%p200) target = $region36
    $region35: #{tpu_custom_call.1} parent=5 // pred_region
      // Predicated region
      $region37: #{tpu_custom_call.1} parent=35 // pred_check
        %p203 = pneg %p32
      $region38: #{tpu_custom_call.1} parent=35 // pred_check_branch
        %205 = sbr.rel (%p203) target = $region40
      $region39: #{tpu_custom_call.1} parent=35 // pred_region
        %p206 = scmp.lt.s32.totalorder %s12, 1
        %s207 = scalar_select %p206, %s12, 1
        %s208 = smul.addr %s207, 2
        %s209 = smul.addr %s208, 8
        %s210 = scalar_lea.vmem %s0, %s209
      $region40: #{tpu_custom_call.1} parent=35 // pred_fallthru
        _
    $region36: #{tpu_custom_call.1} parent=5 // pred_fallthru
      _
    %p211 = scmp.le.s32.totalorder 1, %s12
    %p212 = scmp.lt.s32.totalorder %s12, 3
    %p213 = pnand %p211, %p212
    %p214 = pneg %p213
    // Predicated region
    $region41: #{tpu_custom_call.1} parent=5 // pred_check
      _
    $region42: #{tpu_custom_call.1} parent=5 // pred_check_branch
      %216 = sbr.rel (%p213) target = $region44
    $region43: #{tpu_custom_call.1} parent=5 // pred_region
      %s217 = ssub.s32 %s12, 1
      %p218 = scmp.lt.s32.totalorder %s17, 1
      %s219 = scalar_select %p218, %s17, 1
      %s220 = smul.addr %s219, 2
      %s221 = smul.addr %s220, 8
      %s222 = scalar_lea.vmem %s0, %s221
      %p223 = pneg %p38
      %p224 = pneg %p35
      %p225 = pneg %p59
      %p226 = pneg %p56
      %p227 = pneg %p80
      %p228 = pneg %p77
      %p229 = pneg %p101
      %p230 = pneg %p98
      %p231 = pneg %p122
      %p232 = pneg %p119
      %p233 = pneg %p143
      %p234 = pneg %p140
      %p235 = pneg %p169
      %p236 = pneg %p166
      %p237 = scmp.lt.s32.totalorder %s17, 1
      %s238 = scalar_select %p237, %s17, 1
      %s239 = smul.addr %s238, 6
      %s240 = smul.addr %s239, 8
      %s241 = scalar_lea.vmem %s6, %s240
      %p242 = scmp.lt.s32.totalorder %s17, 1
      %s243 = scalar_select %p242, %s17, 1
      %s244 = smul.addr %s243, 2
      %s245 = smul.addr %s244, 8
      %s246 = scalar_lea.vmem %s0, %s245
      %p247 = scmp.lt.s32.totalorder %s17, 1
      %s248 = scalar_select %p247, %s17, 1
      %s249 = smul.addr %s248, 6
      %s250 = smul.addr %s249, 8
      %s251 = scalar_lea.vmem %s6, %s250
      %252 = vst [vmem:[#allocation2] sm:$0xff] 0.0
      %253 = vst [vmem:[#allocation2 + $0x8] sm:$0xff] 0.0
      %254 = vst [vmem:[#allocation2 + $0x10] sm:$0xff] 0.0
      %255 = vst [vmem:[#allocation2 + $0x18] sm:$0xff] 0.0
      %256 = vst [vmem:[#allocation2 + $0x20] sm:$0xff] 0.0
      %257 = vst [vmem:[#allocation2 + $0x28] sm:$0xff] 0.0
      %258 = vst [vmem:[#allocation2 + $0x30] sm:$0xff] 0.0
      %259 = vst [vmem:[#allocation2 + $0x38] sm:$0xff] 0.0
      %v260 = vld [vmem:[%s246] sm:$0xff]
      %v261 = vld [vmem:[%s246 + $0x8] sm:$0xff]
      %262 = vst [vmem:[#allocation2] sm:$0xff] %v260
      %263 = vst [vmem:[#allocation2 + $0x8] sm:$0xff] %v261
      %v264 = vld [vmem:[#allocation2] sm:$0xff]
      %v265 = vld [vmem:[#allocation2 + $0x8] sm:$0xff]
      %v266 = vld [vmem:[#allocation2 + $0x10] sm:$0xff]
      %v267 = vld [vmem:[#allocation2 + $0x18] sm:$0xff]
      %v268 = vld [vmem:[#allocation2 + $0x20] sm:$0xff]
      %v269 = vld [vmem:[#allocation2 + $0x28] sm:$0xff]
      %v270 = vld [vmem:[#allocation2 + $0x30] sm:$0xff]
      %v271 = vld [vmem:[#allocation2 + $0x38] sm:$0xff]
      %v272 = vld [vmem:[%s1] sm:$0xff]
      %v273 = vld [vmem:[%s1 + $0x8] sm:$0xff]
      %v274 = vld [vmem:[%s1 + $0x10] sm:$0xff]
      %v275 = vld [vmem:[%s1 + $0x18] sm:$0xff]
      %277 = vset.pattern.permute.xlu0 0
      %278 = vperm.xlu0 %277, %v272
      %v279 = vpop.permute.xlu0 %278
      %282 = vset.pattern.permute.xlu0 0
      %283 = vperm.xlu0 %282, %v273
      %v284 = vpop.permute.xlu0 %283
      %287 = vset.pattern.permute.xlu0 0
      %288 = vperm.xlu0 %287, %v274
      %v289 = vpop.permute.xlu0 %288
      %292 = vset.pattern.permute.xlu0 0
      %293 = vperm.xlu0 %292, %v275
      %v294 = vpop.permute.xlu0 %293
      %v296 = vadd.f32 %v264, %v279
      %v297 = vadd.f32 %v265, %v279
      %v298 = vadd.f32 %v266, %v284
      %v299 = vadd.f32 %v267, %v284
      %v300 = vadd.f32 %v268, %v289
      %v301 = vadd.f32 %v269, %v289
      %v302 = vadd.f32 %v270, %v294
      %v303 = vadd.f32 %v271, %v294
      %v304 = vmax.f32 %v296, 0.0
      %v305 = vmax.f32 %v297, 0.0
      %v306 = vmax.f32 %v298, 0.0
      %v307 = vmax.f32 %v299, 0.0
      %v308 = vmax.f32 %v300, 0.0
      %v309 = vmax.f32 %v301, 0.0
      %v310 = vmax.f32 %v302, 0.0
      %v311 = vmax.f32 %v303, 0.0
      %v312 = vld [vmem:[%s2] sm:$0xff]
      %v313 = vld [vmem:[%s3] sm:$0xff]
      %315 = vset.pattern.permute.xlu0 0
      %316 = vperm.xlu0 %315, %v313
      %v317 = vpop.permute.xlu0 %316
      %vm319 = vcmask 261120
      %v321 = vsel %vm319, %v312, 0
      %323 = vmatprep.subr.mxu0 %v305
      %324 = vmatpush1.msra.mxu0 %v304
      %325 = vmatprep.subr.mxu0 %v307
      %326 = vmatpush1.msra.mxu0 %v306
      %327 = vmatprep.subr.mxu0 %v309
      %328 = vmatpush1.msra.mxu0 %v308
      %329 = vmatprep.subr.mxu0 %v311
      %330 = vmatpush1.msra.mxu0 %v310
      %331 = vmatprep.subr.mxu0 0.0
      %332 = vmatpush1.msra.mxu0 0.0
      %333 = vmatprep.subr.mxu0 0.0
      %334 = vmatpush1.msra.mxu0 0.0
      %335 = vmatprep.subr.mxu0 0.0
      %336 = vmatpush1.msra.mxu0 0.0
      %337 = vmatprep.subr.mxu0 0.0
      %338 = vmatpush1.msra.mxu0 0.0
      %339 = vmatprep.subr.mxu0 0.0
      %340 = vmatpush1.msra.mxu0 0.0
      %341 = vmatprep.subr.mxu0 0.0
      %342 = vmatpush1.msra.mxu0 0.0
      %343 = vmatprep.subr.mxu0 0.0
      %344 = vmatpush1.msra.mxu0 0.0
      %345 = vmatprep.subr.mxu0 0.0
      %346 = vmatpush1.msra.mxu0 0.0
      %347 = vmatprep.subr.mxu0 0.0
      %348 = vmatpush1.msra.mxu0 0.0
      %349 = vmatprep.subr.mxu0 0.0
      %350 = vmatpush1.msra.mxu0 0.0
      %351 = vmatprep.subr.mxu0 0.0
      %352 = vmatpush1.msra.mxu0 0.0
      %353 = vmatprep.subr.mxu0 0.0
      %354 = vmatpush1.msra.mxu0 0.0
      %355 = vmatprep.subr.mxu0 0.0
      %356 = vmatpush1.msra.mxu0 0.0
      %357 = vmatprep.subr.mxu0 0.0
      %358 = vmatpush1.msra.mxu0 0.0
      %359 = vmatprep.subr.mxu0 0.0
      %360 = vmatpush1.msra.mxu0 0.0
      %361 = vmatprep.subr.mxu0 0.0
      %362 = vmatpush1.msra.mxu0 0.0
      %363 = vmatprep.subr.mxu0 0.0
      %364 = vmatpush1.msra.mxu0 0.0
      %365 = vmatprep.subr.mxu0 0.0
      %366 = vmatpush1.msra.mxu0 0.0
      %367 = vmatprep.subr.mxu0 0.0
      %368 = vmatpush1.msra.mxu0 0.0
      %369 = vmatprep.subr.mxu0 0.0
      %370 = vmatpush1.msra.mxu0 0.0
      %371 = vmatprep.subr.mxu0 0.0
      %372 = vmatpush1.msra.mxu0 0.0
      %373 = vmatprep.subr.mxu0 0.0
      %374 = vmatpush1.msra.mxu0 0.0
      %375 = vmatprep.subr.mxu0 0.0
      %376 = vmatpush1.msra.mxu0 0.0
      %377 = vmatprep.subr.mxu0 0.0
      %378 = vmatpush1.msra.mxu0 0.0
      %379 = vmatprep.subr.mxu0 0.0
      %380 = vmatpush1.msra.mxu0 0.0
      %381 = vmatprep.subr.mxu0 0.0
      %382 = vmatpush1.msra.mxu0 0.0
      %383 = vmatprep.subr.mxu0 0.0
      %384 = vmatpush1.msra.mxu0 0.0
      %385 = vmatprep.subr.mxu0 0.0
      %386 = vmatpush1.msra.mxu0 0.0
      %387 = vmatprep.mubr.f32.mxu0 0.0
      %388 = vmatmul.mubr.f32.gmra.mrb[0].mxu0 %v321
      %v389 = vpop.f32.mrb[0].mxu0
      %v390 = vadd.f32 %v317, %v389
      %v391 = vpop.f32.mrb[0].mxu0
      %v392 = vadd.f32 %v317, %v391
      %393 = vdwg.mxu0
      %v394 = vmax.f32 %v390, 0.0
      %v395 = vmax.f32 %v392, 0.0
      %396 = vrot.lane.b32.xlu0 %v394, 17
      %v397 = vpop.permute.xlu0 %396
      %398 = vrot.lane.b32.xlu0 %v395, 17
      %v399 = vpop.permute.xlu0 %398
      %v400 = vlaneseq
      %v401 = vand.u32 %v400, 127
      %vm402 = vcmp.lt.s32.totalorder %v401, 17
      %v403 = vsel %vm402, %v397, %v399
      %v404 = vsel %vm402, %v399, %v397
      %v405 = vld [vmem:[%s4] sm:$0xff]
      %vm406 = vcmask 64512
      %v408 = vsel %vm406, %v405, 0
      %410 = vmatprep.subr.mxu0 %v403
      %411 = vmatpush1.msra.mxu0 %v404
      %412 = vmatprep.subr.mxu0 0.0
      %413 = vmatpush1.msra.mxu0 0.0
      %414 = vmatprep.subr.mxu0 0.0
      %415 = vmatpush1.msra.mxu0 0.0
      %416 = vmatprep.subr.mxu0 0.0
      %417 = vmatpush1.msra.mxu0 0.0
      %418 = vmatprep.subr.mxu0 0.0
      %419 = vmatpush1.msra.mxu0 0.0
      %420 = vmatprep.subr.mxu0 0.0
      %421 = vmatpush1.msra.mxu0 0.0
      %422 = vmatprep.subr.mxu0 0.0
      %423 = vmatpush1.msra.mxu0 0.0
      %424 = vmatprep.subr.mxu0 0.0
      %425 = vmatpush1.msra.mxu0 0.0
      %426 = vmatprep.subr.mxu0 0.0
      %427 = vmatpush1.msra.mxu0 0.0
      %428 = vmatprep.subr.mxu0 0.0
      %429 = vmatpush1.msra.mxu0 0.0
      %430 = vmatprep.subr.mxu0 0.0
      %431 = vmatpush1.msra.mxu0 0.0
      %432 = vmatprep.subr.mxu0 0.0
      %433 = vmatpush1.msra.mxu0 0.0
      %434 = vmatprep.subr.mxu0 0.0
      %435 = vmatpush1.msra.mxu0 0.0
      %436 = vmatprep.subr.mxu0 0.0
      %437 = vmatpush1.msra.mxu0 0.0
      %438 = vmatprep.subr.mxu0 0.0
      %439 = vmatpush1.msra.mxu0 0.0
      %440 = vmatprep.subr.mxu0 0.0
      %441 = vmatpush1.msra.mxu0 0.0
      %442 = vmatprep.subr.mxu0 0.0
      %443 = vmatpush1.msra.mxu0 0.0
      %444 = vmatprep.subr.mxu0 0.0
      %445 = vmatpush1.msra.mxu0 0.0
      %446 = vmatprep.subr.mxu0 0.0
      %447 = vmatpush1.msra.mxu0 0.0
      %448 = vmatprep.subr.mxu0 0.0
      %449 = vmatpush1.msra.mxu0 0.0
      %450 = vmatprep.subr.mxu0 0.0
      %451 = vmatpush1.msra.mxu0 0.0
      %452 = vmatprep.subr.mxu0 0.0
      %453 = vmatpush1.msra.mxu0 0.0
      %454 = vmatprep.subr.mxu0 0.0
      %455 = vmatpush1.msra.mxu0 0.0
      %456 = vmatprep.subr.mxu0 0.0
      %457 = vmatpush1.msra.mxu0 0.0
      %458 = vmatprep.subr.mxu0 0.0
      %459 = vmatpush1.msra.mxu0 0.0
      %460 = vmatprep.subr.mxu0 0.0
      %461 = vmatpush1.msra.mxu0 0.0
      %462 = vmatprep.subr.mxu0 0.0
      %463 = vmatpush1.msra.mxu0 0.0
      %464 = vmatprep.subr.mxu0 0.0
      %465 = vmatpush1.msra.mxu0 0.0
      %466 = vmatprep.subr.mxu0 0.0
      %467 = vmatpush1.msra.mxu0 0.0
      %468 = vmatprep.subr.mxu0 0.0
      %469 = vmatpush1.msra.mxu0 0.0
      %470 = vmatprep.subr.mxu0 0.0
      %471 = vmatpush1.msra.mxu0 0.0
      %472 = vmatprep.subr.mxu0 0.0
      %473 = vmatpush1.msra.mxu0 0.0
      %474 = vmatprep.mubr.f32.mxu0 0.0
      %475 = vmatmul.mubr.f32.gmra.mrb[0].mxu0 %v408
      %v476 = vpop.f32.mrb[0].mxu0
      %v477 = vadd.f32 0.0, %v476
      %v478 = vpop.f32.mrb[0].mxu0
      %v479 = vadd.f32 0.0, %v478
      %480 = vdwg.mxu0
      %v481 = vld [vmem:[%s5] ss:$8 sm:$0x3]
      %v483 = vlaneseq
      %v484 = vshrl.u32 %v483, 7
      %v485 = vsub.s32 0, %v484
      %v486 = vrot.slane %v481, %v485
      %v487 = vlaneseq
      %v488 = vshrl.u32 %v487, 7
      %v489 = vsub.s32 1, %v488
      %v490 = vrot.slane %v481, %v489
      %v493 = vmul.f32 %v477, %v486
      %v494 = vmul.f32 %v479, %v490
      %v495 = vadd.f32 %v493, 0.0
      %v496 = vadd.f32 %v494, 0.0
      %497 = vrot.lane.b32.xlu0 %v394, 16
      %v498 = vpop.permute.xlu0 %497
      %499 = vrot.lane.b32.xlu0 %v395, 16
      %v500 = vpop.permute.xlu0 %499
      %vm501 = vcmp.lt.s32.totalorder %v401, 16
      %v502 = vsel %vm501, %v498, %v500
      %v503 = vsel %vm501, %v500, %v498
      %s504 = scalar_lea.vmem %s4, 8
      %v505 = vld [vmem:[%s504] sm:$0xff]
      %v507 = vsel %vm406, %v505, 0
      %509 = vmatprep.subr.mxu0 %v502
      %510 = vmatpush1.msra.mxu0 %v503
      %511 = vmatprep.subr.mxu0 0.0
      %512 = vmatpush1.msra.mxu0 0.0
      %513 = vmatprep.subr.mxu0 0.0
      %514 = vmatpush1.msra.mxu0 0.0
      %515 = vmatprep.subr.mxu0 0.0
      %516 = vmatpush1.msra.mxu0 0.0
      %517 = vmatprep.subr.mxu0 0.0
      %518 = vmatpush1.msra.mxu0 0.0
      %519 = vmatprep.subr.mxu0 0.0
      %520 = vmatpush1.msra.mxu0 0.0
      %521 = vmatprep.subr.mxu0 0.0
      %522 = vmatpush1.msra.mxu0 0.0
      %523 = vmatprep.subr.mxu0 0.0
      %524 = vmatpush1.msra.mxu0 0.0
      %525 = vmatprep.subr.mxu0 0.0
      %526 = vmatpush1.msra.mxu0 0.0
      %527 = vmatprep.subr.mxu0 0.0
      %528 = vmatpush1.msra.mxu0 0.0
      %529 = vmatprep.subr.mxu0 0.0
      %530 = vmatpush1.msra.mxu0 0.0
      %531 = vmatprep.subr.mxu0 0.0
      %532 = vmatpush1.msra.mxu0 0.0
      %533 = vmatprep.subr.mxu0 0.0
      %534 = vmatpush1.msra.mxu0 0.0
      %535 = vmatprep.subr.mxu0 0.0
      %536 = vmatpush1.msra.mxu0 0.0
      %537 = vmatprep.subr.mxu0 0.0
      %538 = vmatpush1.msra.mxu0 0.0
      %539 = vmatprep.subr.mxu0 0.0
      %540 = vmatpush1.msra.mxu0 0.0
      %541 = vmatprep.subr.mxu0 0.0
      %542 = vmatpush1.msra.mxu0 0.0
      %543 = vmatprep.subr.mxu0 0.0
      %544 = vmatpush1.msra.mxu0 0.0
      %545 = vmatprep.subr.mxu0 0.0
      %546 = vmatpush1.msra.mxu0 0.0
      %547 = vmatprep.subr.mxu0 0.0
      %548 = vmatpush1.msra.mxu0 0.0
      %549 = vmatprep.subr.mxu0 0.0
      %550 = vmatpush1.msra.mxu0 0.0
      %551 = vmatprep.subr.mxu0 0.0
      %552 = vmatpush1.msra.mxu0 0.0
      %553 = vmatprep.subr.mxu0 0.0
      %554 = vmatpush1.msra.mxu0 0.0
      %555 = vmatprep.subr.mxu0 0.0
      %556 = vmatpush1.msra.mxu0 0.0
      %557 = vmatprep.subr.mxu0 0.0
      %558 = vmatpush1.msra.mxu0 0.0
      %559 = vmatprep.subr.mxu0 0.0
      %560 = vmatpush1.msra.mxu0 0.0
      %561 = vmatprep.subr.mxu0 0.0
      %562 = vmatpush1.msra.mxu0 0.0
      %563 = vmatprep.subr.mxu0 0.0
      %564 = vmatpush1.msra.mxu0 0.0
      %565 = vmatprep.subr.mxu0 0.0
      %566 = vmatpush1.msra.mxu0 0.0
      %567 = vmatprep.subr.mxu0 0.0
      %568 = vmatpush1.msra.mxu0 0.0
      %569 = vmatprep.subr.mxu0 0.0
      %570 = vmatpush1.msra.mxu0 0.0
      %571 = vmatprep.subr.mxu0 0.0
      %572 = vmatpush1.msra.mxu0 0.0
      %573 = vmatprep.mubr.f32.mxu0 0.0
      %574 = vmatmul.mubr.f32.gmra.mrb[0].mxu0 %v507
      %v575 = vpop.f32.mrb[0].mxu0
      %v576 = vadd.f32 0.0, %v575
      %v577 = vpop.f32.mrb[0].mxu0
      %v578 = vadd.f32 0.0, %v577
      %579 = vdwg.mxu0
      %s580 = scalar_lea.vmem %s5, 1
      %v581 = vld [vmem:[%s580] ss:$8 sm:$0x3]
      %v583 = vlaneseq
      %v584 = vshrl.u32 %v583, 7
      %v585 = vsub.s32 0, %v584
      %v586 = vrot.slane %v581, %v585
      %v587 = vlaneseq
      %v588 = vshrl.u32 %v587, 7
      %v589 = vsub.s32 1, %v588
      %v590 = vrot.slane %v581, %v589
      %v593 = vmul.f32 %v576, %v586
      %v594 = vmul.f32 %v578, %v590
      %v595 = vadd.f32 %v495, %v593
      %v596 = vadd.f32 %v496, %v594
      %597 = vrot.lane.b32.xlu0 %v394, 15
      %v598 = vpop.permute.xlu0 %597
      %599 = vrot.lane.b32.xlu0 %v395, 15
      %v600 = vpop.permute.xlu0 %599
      %vm601 = vcmp.lt.s32.totalorder %v401, 15
      %v602 = vsel %vm601, %v598, %v600
      %v603 = vsel %vm601, %v600, %v598
      %s604 = scalar_lea.vmem %s4, 16
      %v605 = vld [vmem:[%s604] sm:$0xff]
      %v607 = vsel %vm406, %v605, 0
      %609 = vmatprep.subr.mxu0 %v602
      %610 = vmatpush1.msra.mxu0 %v603
      %611 = vmatprep.subr.mxu0 0.0
      %612 = vmatpush1.msra.mxu0 0.0
      %613 = vmatprep.subr.mxu0 0.0
      %614 = vmatpush1.msra.mxu0 0.0
      %615 = vmatprep.subr.mxu0 0.0
      %616 = vmatpush1.msra.mxu0 0.0
      %617 = vmatprep.subr.mxu0 0.0
      %618 = vmatpush1.msra.mxu0 0.0
      %619 = vmatprep.subr.mxu0 0.0
      %620 = vmatpush1.msra.mxu0 0.0
      %621 = vmatprep.subr.mxu0 0.0
      %622 = vmatpush1.msra.mxu0 0.0
      %623 = vmatprep.subr.mxu0 0.0
      %624 = vmatpush1.msra.mxu0 0.0
      %625 = vmatprep.subr.mxu0 0.0
      %626 = vmatpush1.msra.mxu0 0.0
      %627 = vmatprep.subr.mxu0 0.0
      %628 = vmatpush1.msra.mxu0 0.0
      %629 = vmatprep.subr.mxu0 0.0
      %630 = vmatpush1.msra.mxu0 0.0
      %631 = vmatprep.subr.mxu0 0.0
      %632 = vmatpush1.msra.mxu0 0.0
      %633 = vmatprep.subr.mxu0 0.0
      %634 = vmatpush1.msra.mxu0 0.0
      %635 = vmatprep.subr.mxu0 0.0
      %636 = vmatpush1.msra.mxu0 0.0
      %637 = vmatprep.subr.mxu0 0.0
      %638 = vmatpush1.msra.mxu0 0.0
      %639 = vmatprep.subr.mxu0 0.0
      %640 = vmatpush1.msra.mxu0 0.0
      %641 = vmatprep.subr.mxu0 0.0
      %642 = vmatpush1.msra.mxu0 0.0
      %643 = vmatprep.subr.mxu0 0.0
      %644 = vmatpush1.msra.mxu0 0.0
      %645 = vmatprep.subr.mxu0 0.0
      %646 = vmatpush1.msra.mxu0 0.0
      %647 = vmatprep.subr.mxu0 0.0
      %648 = vmatpush1.msra.mxu0 0.0
      %649 = vmatprep.subr.mxu0 0.0
      %650 = vmatpush1.msra.mxu0 0.0
      %651 = vmatprep.subr.mxu0 0.0
      %652 = vmatpush1.msra.mxu0 0.0
      %653 = vmatprep.subr.mxu0 0.0
      %654 = vmatpush1.msra.mxu0 0.0
      %655 = vmatprep.subr.mxu0 0.0
      %656 = vmatpush1.msra.mxu0 0.0
      %657 = vmatprep.subr.mxu0 0.0
      %658 = vmatpush1.msra.mxu0 0.0
      %659 = vmatprep.subr.mxu0 0.0
      %660 = vmatpush1.msra.mxu0 0.0
      %661 = vmatprep.subr.mxu0 0.0
      %662 = vmatpush1.msra.mxu0 0.0
      %663 = vmatprep.subr.mxu0 0.0
      %664 = vmatpush1.msra.mxu0 0.0
      %665 = vmatprep.subr.mxu0 0.0
      %666 = vmatpush1.msra.mxu0 0.0
      %667 = vmatprep.subr.mxu0 0.0
      %668 = vmatpush1.msra.mxu0 0.0
      %669 = vmatprep.subr.mxu0 0.0
      %670 = vmatpush1.msra.mxu0 0.0
      %671 = vmatprep.subr.mxu0 0.0
      %672 = vmatpush1.msra.mxu0 0.0
      %673 = vmatprep.mubr.f32.mxu0 0.0
      %674 = vmatmul.mubr.f32.gmra.mrb[0].mxu0 %v607
      %v675 = vpop.f32.mrb[0].mxu0
      %v676 = vadd.f32 0.0, %v675
      %v677 = vpop.f32.mrb[0].mxu0
      %v678 = vadd.f32 0.0, %v677
      %679 = vdwg.mxu0
      %s680 = scalar_lea.vmem %s5, 2
      %v681 = vld [vmem:[%s680] ss:$8 sm:$0x3]
      %v683 = vlaneseq
      %v684 = vshrl.u32 %v683, 7
      %v685 = vsub.s32 0, %v684
      %v686 = vrot.slane %v681, %v685
      %v687 = vlaneseq
      %v688 = vshrl.u32 %v687, 7
      %v689 = vsub.s32 1, %v688
      %v690 = vrot.slane %v681, %v689
      %v693 = vmul.f32 %v676, %v686
      %v694 = vmul.f32 %v678, %v690
      %v695 = vadd.f32 %v595, %v693
      %v696 = vadd.f32 %v596, %v694
      %697 = vrot.lane.b32.xlu0 %v394, 1
      %v698 = vpop.permute.xlu0 %697
      %699 = vrot.lane.b32.xlu0 %v395, 1
      %v700 = vpop.permute.xlu0 %699
      %vm701 = vcmp.lt.s32.totalorder %v401, 1
      %v702 = vsel %vm701, %v698, %v700
      %v703 = vsel %vm701, %v700, %v698
      %s704 = scalar_lea.vmem %s4, 24
      %v705 = vld [vmem:[%s704] sm:$0xff]
      %v707 = vsel %vm406, %v705, 0
      %709 = vmatprep.subr.mxu0 %v702
      %710 = vmatpush1.msra.mxu0 %v703
      %711 = vmatprep.subr.mxu0 0.0
      %712 = vmatpush1.msra.mxu0 0.0
      %713 = vmatprep.subr.mxu0 0.0
      %714 = vmatpush1.msra.mxu0 0.0
      %715 = vmatprep.subr.mxu0 0.0
      %716 = vmatpush1.msra.mxu0 0.0
      %717 = vmatprep.subr.mxu0 0.0
      %718 = vmatpush1.msra.mxu0 0.0
      %719 = vmatprep.subr.mxu0 0.0
      %720 = vmatpush1.msra.mxu0 0.0
      %721 = vmatprep.subr.mxu0 0.0
      %722 = vmatpush1.msra.mxu0 0.0
      %723 = vmatprep.subr.mxu0 0.0
      %724 = vmatpush1.msra.mxu0 0.0
      %725 = vmatprep.subr.mxu0 0.0
      %726 = vmatpush1.msra.mxu0 0.0
      %727 = vmatprep.subr.mxu0 0.0
      %728 = vmatpush1.msra.mxu0 0.0
      %729 = vmatprep.subr.mxu0 0.0
      %730 = vmatpush1.msra.mxu0 0.0
      %731 = vmatprep.subr.mxu0 0.0
      %732 = vmatpush1.msra.mxu0 0.0
      %733 = vmatprep.subr.mxu0 0.0
      %734 = vmatpush1.msra.mxu0 0.0
      %735 = vmatprep.subr.mxu0 0.0
      %736 = vmatpush1.msra.mxu0 0.0
      %737 = vmatprep.subr.mxu0 0.0
      %738 = vmatpush1.msra.mxu0 0.0
      %739 = vmatprep.subr.mxu0 0.0
      %740 = vmatpush1.msra.mxu0 0.0
      %741 = vmatprep.subr.mxu0 0.0
      %742 = vmatpush1.msra.mxu0 0.0
      %743 = vmatprep.subr.mxu0 0.0
      %744 = vmatpush1.msra.mxu0 0.0
      %745 = vmatprep.subr.mxu0 0.0
      %746 = vmatpush1.msra.mxu0 0.0
      %747 = vmatprep.subr.mxu0 0.0
      %748 = vmatpush1.msra.mxu0 0.0
      %749 = vmatprep.subr.mxu0 0.0
      %750 = vmatpush1.msra.mxu0 0.0
      %751 = vmatprep.subr.mxu0 0.0
      %752 = vmatpush1.msra.mxu0 0.0
      %753 = vmatprep.subr.mxu0 0.0
      %754 = vmatpush1.msra.mxu0 0.0
      %755 = vmatprep.subr.mxu0 0.0
      %756 = vmatpush1.msra.mxu0 0.0
      %757 = vmatprep.subr.mxu0 0.0
      %758 = vmatpush1.msra.mxu0 0.0
      %759 = vmatprep.subr.mxu0 0.0
      %760 = vmatpush1.msra.mxu0 0.0
      %761 = vmatprep.subr.mxu0 0.0
      %762 = vmatpush1.msra.mxu0 0.0
      %763 = vmatprep.subr.mxu0 0.0
      %764 = vmatpush1.msra.mxu0 0.0
      %765 = vmatprep.subr.mxu0 0.0
      %766 = vmatpush1.msra.mxu0 0.0
      %767 = vmatprep.subr.mxu0 0.0
      %768 = vmatpush1.msra.mxu0 0.0
      %769 = vmatprep.subr.mxu0 0.0
      %770 = vmatpush1.msra.mxu0 0.0
      %771 = vmatprep.subr.mxu0 0.0
      %772 = vmatpush1.msra.mxu0 0.0
      %773 = vmatprep.mubr.f32.mxu0 0.0
      %774 = vmatmul.mubr.f32.gmra.mrb[0].mxu0 %v707
      %v775 = vpop.f32.mrb[0].mxu0
      %v776 = vadd.f32 0.0, %v775
      %v777 = vpop.f32.mrb[0].mxu0
      %v778 = vadd.f32 0.0, %v777
      %779 = vdwg.mxu0
      %s780 = scalar_lea.vmem %s5, 3
      %v781 = vld [vmem:[%s780] ss:$8 sm:$0x3]
      %v783 = vlaneseq
      %v784 = vshrl.u32 %v783, 7
      %v785 = vsub.s32 0, %v784
      %v786 = vrot.slane %v781, %v785
      %v787 = vlaneseq
      %v788 = vshrl.u32 %v787, 7
      %v789 = vsub.s32 1, %v788
      %v790 = vrot.slane %v781, %v789
      %v793 = vmul.f32 %v776, %v786
      %v794 = vmul.f32 %v778, %v790
      %v795 = vadd.f32 %v695, %v793
      %v796 = vadd.f32 %v696, %v794
      %s797 = scalar_lea.vmem %s4, 32
      %v798 = vld [vmem:[%s797] sm:$0xff]
      %v800 = vsel %vm406, %v798, 0
      %802 = vmatprep.subr.mxu0 %v395
      %803 = vmatpush1.msra.mxu0 %v394
      %804 = vmatprep.subr.mxu0 0.0
      %805 = vmatpush1.msra.mxu0 0.0
      %806 = vmatprep.subr.mxu0 0.0
      %807 = vmatpush1.msra.mxu0 0.0
      %808 = vmatprep.subr.mxu0 0.0
      %809 = vmatpush1.msra.mxu0 0.0
      %810 = vmatprep.subr.mxu0 0.0
      %811 = vmatpush1.msra.mxu0 0.0
      %812 = vmatprep.subr.mxu0 0.0
      %813 = vmatpush1.msra.mxu0 0.0
      %814 = vmatprep.subr.mxu0 0.0
      %815 = vmatpush1.msra.mxu0 0.0
      %816 = vmatprep.subr.mxu0 0.0
      %817 = vmatpush1.msra.mxu0 0.0
      %818 = vmatprep.subr.mxu0 0.0
      %819 = vmatpush1.msra.mxu0 0.0
      %820 = vmatprep.subr.mxu0 0.0
      %821 = vmatpush1.msra.mxu0 0.0
      %822 = vmatprep.subr.mxu0 0.0
      %823 = vmatpush1.msra.mxu0 0.0
      %824 = vmatprep.subr.mxu0 0.0
      %825 = vmatpush1.msra.mxu0 0.0
      %826 = vmatprep.subr.mxu0 0.0
      %827 = vmatpush1.msra.mxu0 0.0
      %828 = vmatprep.subr.mxu0 0.0
      %829 = vmatpush1.msra.mxu0 0.0
      %830 = vmatprep.subr.mxu0 0.0
      %831 = vmatpush1.msra.mxu0 0.0
      %832 = vmatprep.subr.mxu0 0.0
      %833 = vmatpush1.msra.mxu0 0.0
      %834 = vmatprep.subr.mxu0 0.0
      %835 = vmatpush1.msra.mxu0 0.0
      %836 = vmatprep.subr.mxu0 0.0
      %837 = vmatpush1.msra.mxu0 0.0
      %838 = vmatprep.subr.mxu0 0.0
      %839 = vmatpush1.msra.mxu0 0.0
      %840 = vmatprep.subr.mxu0 0.0
      %841 = vmatpush1.msra.mxu0 0.0
      %842 = vmatprep.subr.mxu0 0.0
      %843 = vmatpush1.msra.mxu0 0.0
      %844 = vmatprep.subr.mxu0 0.0
      %845 = vmatpush1.msra.mxu0 0.0
      %846 = vmatprep.subr.mxu0 0.0
      %847 = vmatpush1.msra.mxu0 0.0
      %848 = vmatprep.subr.mxu0 0.0
      %849 = vmatpush1.msra.mxu0 0.0
      %850 = vmatprep.subr.mxu0 0.0
      %851 = vmatpush1.msra.mxu0 0.0
      %852 = vmatprep.subr.mxu0 0.0
      %853 = vmatpush1.msra.mxu0 0.0
      %854 = vmatprep.subr.mxu0 0.0
      %855 = vmatpush1.msra.mxu0 0.0
      %856 = vmatprep.subr.mxu0 0.0
      %857 = vmatpush1.msra.mxu0 0.0
      %858 = vmatprep.subr.mxu0 0.0
      %859 = vmatpush1.msra.mxu0 0.0
      %860 = vmatprep.subr.mxu0 0.0
      %861 = vmatpush1.msra.mxu0 0.0
      %862 = vmatprep.subr.mxu0 0.0
      %863 = vmatpush1.msra.mxu0 0.0
      %864 = vmatprep.subr.mxu0 0.0
      %865 = vmatpush1.msra.mxu0 0.0
      %866 = vmatprep.mubr.f32.mxu0 0.0
      %867 = vmatmul.mubr.f32.gmra.mrb[0].mxu0 %v800
      %v868 = vpop.f32.mrb[0].mxu0
      %v869 = vadd.f32 0.0, %v868
      %v870 = vpop.f32.mrb[0].mxu0
      %v871 = vadd.f32 0.0, %v870
      %872 = vdwg.mxu0
      %v873 = vadd.f32 %v795, %v869
      %v874 = vadd.f32 %v796, %v871
      %875 = vrot.lane.b32.xlu0 %v394, 127
      %v876 = vpop.permute.xlu0 %875
      %877 = vrot.lane.b32.xlu0 %v395, 127
      %v878 = vpop.permute.xlu0 %877
      %vm879 = vcmp.lt.s32.totalorder %v401, 127
      %v880 = vsel %vm879, %v876, %v878
      %v881 = vsel %vm879, %v878, %v876
      %s882 = scalar_lea.vmem %s4, 40
      %v883 = vld [vmem:[%s882] sm:$0xff]
      %v885 = vsel %vm406, %v883, 0
      %887 = vmatprep.subr.mxu0 %v881
      %888 = vmatpush1.msra.mxu0 %v880
      %889 = vmatprep.subr.mxu0 0.0
      %890 = vmatpush1.msra.mxu0 0.0
      %891 = vmatprep.subr.mxu0 0.0
      %892 = vmatpush1.msra.mxu0 0.0
      %893 = vmatprep.subr.mxu0 0.0
      %894 = vmatpush1.msra.mxu0 0.0
      %895 = vmatprep.subr.mxu0 0.0
      %896 = vmatpush1.msra.mxu0 0.0
      %897 = vmatprep.subr.mxu0 0.0
      %898 = vmatpush1.msra.mxu0 0.0
      %899 = vmatprep.subr.mxu0 0.0
      %900 = vmatpush1.msra.mxu0 0.0
      %901 = vmatprep.subr.mxu0 0.0
      %902 = vmatpush1.msra.mxu0 0.0
      %903 = vmatprep.subr.mxu0 0.0
      %904 = vmatpush1.msra.mxu0 0.0
      %905 = vmatprep.subr.mxu0 0.0
      %906 = vmatpush1.msra.mxu0 0.0
      %907 = vmatprep.subr.mxu0 0.0
      %908 = vmatpush1.msra.mxu0 0.0
      %909 = vmatprep.subr.mxu0 0.0
      %910 = vmatpush1.msra.mxu0 0.0
      %911 = vmatprep.subr.mxu0 0.0
      %912 = vmatpush1.msra.mxu0 0.0
      %913 = vmatprep.subr.mxu0 0.0
      %914 = vmatpush1.msra.mxu0 0.0
      %915 = vmatprep.subr.mxu0 0.0
      %916 = vmatpush1.msra.mxu0 0.0
      %917 = vmatprep.subr.mxu0 0.0
      %918 = vmatpush1.msra.mxu0 0.0
      %919 = vmatprep.subr.mxu0 0.0
      %920 = vmatpush1.msra.mxu0 0.0
      %921 = vmatprep.subr.mxu0 0.0
      %922 = vmatpush1.msra.mxu0 0.0
      %923 = vmatprep.subr.mxu0 0.0
      %924 = vmatpush1.msra.mxu0 0.0
      %925 = vmatprep.subr.mxu0 0.0
      %926 = vmatpush1.msra.mxu0 0.0
      %927 = vmatprep.subr.mxu0 0.0
      %928 = vmatpush1.msra.mxu0 0.0
      %929 = vmatprep.subr.mxu0 0.0
      %930 = vmatpush1.msra.mxu0 0.0
      %931 = vmatprep.subr.mxu0 0.0
      %932 = vmatpush1.msra.mxu0 0.0
      %933 = vmatprep.subr.mxu0 0.0
      %934 = vmatpush1.msra.mxu0 0.0
      %935 = vmatprep.subr.mxu0 0.0
      %936 = vmatpush1.msra.mxu0 0.0
      %937 = vmatprep.subr.mxu0 0.0
      %938 = vmatpush1.msra.mxu0 0.0
      %939 = vmatprep.subr.mxu0 0.0
      %940 = vmatpush1.msra.mxu0 0.0
      %941 = vmatprep.subr.mxu0 0.0
      %942 = vmatpush1.msra.mxu0 0.0
      %943 = vmatprep.subr.mxu0 0.0
      %944 = vmatpush1.msra.mxu0 0.0
      %945 = vmatprep.subr.mxu0 0.0
      %946 = vmatpush1.msra.mxu0 0.0
      %947 = vmatprep.subr.mxu0 0.0
      %948 = vmatpush1.msra.mxu0 0.0
      %949 = vmatprep.subr.mxu0 0.0
      %950 = vmatpush1.msra.mxu0 0.0
      %951 = vmatprep.mubr.f32.mxu0 0.0
      %952 = vmatmul.mubr.f32.gmra.mrb[0].mxu0 %v885
      %v953 = vpop.f32.mrb[0].mxu0
      %v954 = vadd.f32 0.0, %v953
      %v955 = vpop.f32.mrb[0].mxu0
      %v956 = vadd.f32 0.0, %v955
      %957 = vdwg.mxu0
      %s958 = scalar_lea.vmem %s5, 5
      %v959 = vld [vmem:[%s958] ss:$8 sm:$0x3]
      %v961 = vlaneseq
      %v962 = vshrl.u32 %v961, 7
      %v963 = vsub.s32 0, %v962
      %v964 = vrot.slane %v959, %v963
      %v965 = vlaneseq
      %v966 = vshrl.u32 %v965, 7
      %v967 = vsub.s32 1, %v966
      %v968 = vrot.slane %v959, %v967
      %v971 = vmul.f32 %v954, %v964
      %v972 = vmul.f32 %v956, %v968
      %v973 = vadd.f32 %v873, %v971
      %v974 = vadd.f32 %v874, %v972
      %975 = vrot.lane.b32.xlu0 %v394, 113
      %v976 = vpop.permute.xlu0 %975
      %977 = vrot.lane.b32.xlu0 %v395, 113
      %v978 = vpop.permute.xlu0 %977
      %vm979 = vcmp.lt.s32.totalorder %v401, 113
      %v980 = vsel %vm979, %v976, %v978
      %v981 = vsel %vm979, %v978, %v976
      %s982 = scalar_lea.vmem %s4, 48
      %v983 = vld [vmem:[%s982] sm:$0xff]
      %v985 = vsel %vm406, %v983, 0
      %987 = vmatprep.subr.mxu0 %v981
      %988 = vmatpush1.msra.mxu0 %v980
      %989 = vmatprep.subr.mxu0 0.0
      %990 = vmatpush1.msra.mxu0 0.0
      %991 = vmatprep.subr.mxu0 0.0
      %992 = vmatpush1.msra.mxu0 0.0
      %993 = vmatprep.subr.mxu0 0.0
      %994 = vmatpush1.msra.mxu0 0.0
      %995 = vmatprep.subr.mxu0 0.0
      %996 = vmatpush1.msra.mxu0 0.0
      %997 = vmatprep.subr.mxu0 0.0
      %998 = vmatpush1.msra.mxu0 0.0
      %999 = vmatprep.subr.mxu0 0.0
      %1000 = vmatpush1.msra.mxu0 0.0
      %1001 = vmatprep.subr.mxu0 0.0
      %1002 = vmatpush1.msra.mxu0 0.0
      %1003 = vmatprep.subr.mxu0 0.0
      %1004 = vmatpush1.msra.mxu0 0.0
      %1005 = vmatprep.subr.mxu0 0.0
      %1006 = vmatpush1.msra.mxu0 0.0
      %1007 = vmatprep.subr.mxu0 0.0
      %1008 = vmatpush1.msra.mxu0 0.0
      %1009 = vmatprep.subr.mxu0 0.0
      %1010 = vmatpush1.msra.mxu0 0.0
      %1011 = vmatprep.subr.mxu0 0.0
      %1012 = vmatpush1.msra.mxu0 0.0
      %1013 = vmatprep.subr.mxu0 0.0
      %1014 = vmatpush1.msra.mxu0 0.0
      %1015 = vmatprep.subr.mxu0 0.0
      %1016 = vmatpush1.msra.mxu0 0.0
      %1017 = vmatprep.subr.mxu0 0.0
      %1018 = vmatpush1.msra.mxu0 0.0
      %1019 = vmatprep.subr.mxu0 0.0
      %1020 = vmatpush1.msra.mxu0 0.0
      %1021 = vmatprep.subr.mxu0 0.0
      %1022 = vmatpush1.msra.mxu0 0.0
      %1023 = vmatprep.subr.mxu0 0.0
      %1024 = vmatpush1.msra.mxu0 0.0
      %1025 = vmatprep.subr.mxu0 0.0
      %1026 = vmatpush1.msra.mxu0 0.0
      %1027 = vmatprep.subr.mxu0 0.0
      %1028 = vmatpush1.msra.mxu0 0.0
      %1029 = vmatprep.subr.mxu0 0.0
      %1030 = vmatpush1.msra.mxu0 0.0
      %1031 = vmatprep.subr.mxu0 0.0
      %1032 = vmatpush1.msra.mxu0 0.0
      %1033 = vmatprep.subr.mxu0 0.0
      %1034 = vmatpush1.msra.mxu0 0.0
      %1035 = vmatprep.subr.mxu0 0.0
      %1036 = vmatpush1.msra.mxu0 0.0
      %1037 = vmatprep.subr.mxu0 0.0
      %1038 = vmatpush1.msra.mxu0 0.0
      %1039 = vmatprep.subr.mxu0 0.0
      %1040 = vmatpush1.msra.mxu0 0.0
      %1041 = vmatprep.subr.mxu0 0.0
      %1042 = vmatpush1.msra.mxu0 0.0
      %1043 = vmatprep.subr.mxu0 0.0
      %1044 = vmatpush1.msra.mxu0 0.0
      %1045 = vmatprep.subr.mxu0 0.0
      %1046 = vmatpush1.msra.mxu0 0.0
      %1047 = vmatprep.subr.mxu0 0.0
      %1048 = vmatpush1.msra.mxu0 0.0
      %1049 = vmatprep.subr.mxu0 0.0
      %1050 = vmatpush1.msra.mxu0 0.0
      %1051 = vmatprep.mubr.f32.mxu0 0.0
      %1052 = vmatmul.mubr.f32.gmra.mrb[0].mxu0 %v985
      %v1053 = vpop.f32.mrb[0].mxu0
      %v1054 = vadd.f32 0.0, %v1053
      %v1055 = vpop.f32.mrb[0].mxu0
      %v1056 = vadd.f32 0.0, %v1055
      %1057 = vdwg.mxu0
      %s1058 = scalar_lea.vmem %s5, 6
      %v1059 = vld [vmem:[%s1058] ss:$8 sm:$0x3]
      %v1061 = vlaneseq
      %v1062 = vshrl.u32 %v1061, 7
      %v1063 = vsub.s32 0, %v1062
      %v1064 = vrot.slane %v1059, %v1063
      %v1065 = vlaneseq
      %v1066 = vshrl.u32 %v1065, 7
      %v1067 = vsub.s32 1, %v1066
      %v1068 = vrot.slane %v1059, %v1067
      %v1071 = vmul.f32 %v1054, %v1064
      %v1072 = vmul.f32 %v1056, %v1068
      %v1073 = vadd.f32 %v973, %v1071
      %v1074 = vadd.f32 %v974, %v1072
      %1075 = vrot.lane.b32.xlu0 %v394, 112
      %v1076 = vpop.permute.xlu0 %1075
      %1077 = vrot.lane.b32.xlu0 %v395, 112
      %v1078 = vpop.permute.xlu0 %1077
      %vm1079 = vcmp.lt.s32.totalorder %v401, 112
      %v1080 = vsel %vm1079, %v1076, %v1078
      %v1081 = vsel %vm1079, %v1078, %v1076
      %s1082 = scalar_lea.vmem %s4, 56
      %v1083 = vld [vmem:[%s1082] sm:$0xff]
      %v1085 = vsel %vm406, %v1083, 0
      %1087 = vmatprep.subr.mxu0 %v1081
      %1088 = vmatpush1.msra.mxu0 %v1080
      %1089 = vmatprep.subr.mxu0 0.0
      %1090 = vmatpush1.msra.mxu0 0.0
      %1091 = vmatprep.subr.mxu0 0.0
      %1092 = vmatpush1.msra.mxu0 0.0
      %1093 = vmatprep.subr.mxu0 0.0
      %1094 = vmatpush1.msra.mxu0 0.0
      %1095 = vmatprep.subr.mxu0 0.0
      %1096 = vmatpush1.msra.mxu0 0.0
      %1097 = vmatprep.subr.mxu0 0.0
      %1098 = vmatpush1.msra.mxu0 0.0
      %1099 = vmatprep.subr.mxu0 0.0
      %1100 = vmatpush1.msra.mxu0 0.0
      %1101 = vmatprep.subr.mxu0 0.0
      %1102 = vmatpush1.msra.mxu0 0.0
      %1103 = vmatprep.subr.mxu0 0.0
      %1104 = vmatpush1.msra.mxu0 0.0
      %1105 = vmatprep.subr.mxu0 0.0
      %1106 = vmatpush1.msra.mxu0 0.0
      %1107 = vmatprep.subr.mxu0 0.0
      %1108 = vmatpush1.msra.mxu0 0.0
      %1109 = vmatprep.subr.mxu0 0.0
      %1110 = vmatpush1.msra.mxu0 0.0
      %1111 = vmatprep.subr.mxu0 0.0
      %1112 = vmatpush1.msra.mxu0 0.0
      %1113 = vmatprep.subr.mxu0 0.0
      %1114 = vmatpush1.msra.mxu0 0.0
      %1115 = vmatprep.subr.mxu0 0.0
      %1116 = vmatpush1.msra.mxu0 0.0
      %1117 = vmatprep.subr.mxu0 0.0
      %1118 = vmatpush1.msra.mxu0 0.0
      %1119 = vmatprep.subr.mxu0 0.0
      %1120 = vmatpush1.msra.mxu0 0.0
      %1121 = vmatprep.subr.mxu0 0.0
      %1122 = vmatpush1.msra.mxu0 0.0
      %1123 = vmatprep.subr.mxu0 0.0
      %1124 = vmatpush1.msra.mxu0 0.0
      %1125 = vmatprep.subr.mxu0 0.0
      %1126 = vmatpush1.msra.mxu0 0.0
      %1127 = vmatprep.subr.mxu0 0.0
      %1128 = vmatpush1.msra.mxu0 0.0
      %1129 = vmatprep.subr.mxu0 0.0
      %1130 = vmatpush1.msra.mxu0 0.0
      %1131 = vmatprep.subr.mxu0 0.0
      %1132 = vmatpush1.msra.mxu0 0.0
      %1133 = vmatprep.subr.mxu0 0.0
      %1134 = vmatpush1.msra.mxu0 0.0
      %1135 = vmatprep.subr.mxu0 0.0
      %1136 = vmatpush1.msra.mxu0 0.0
      %1137 = vmatprep.subr.mxu0 0.0
      %1138 = vmatpush1.msra.mxu0 0.0
      %1139 = vmatprep.subr.mxu0 0.0
      %1140 = vmatpush1.msra.mxu0 0.0
      %1141 = vmatprep.subr.mxu0 0.0
      %1142 = vmatpush1.msra.mxu0 0.0
      %1143 = vmatprep.subr.mxu0 0.0
      %1144 = vmatpush1.msra.mxu0 0.0
      %1145 = vmatprep.subr.mxu0 0.0
      %1146 = vmatpush1.msra.mxu0 0.0
      %1147 = vmatprep.subr.mxu0 0.0
      %1148 = vmatpush1.msra.mxu0 0.0
      %1149 = vmatprep.subr.mxu0 0.0
      %1150 = vmatpush1.msra.mxu0 0.0
      %1151 = vmatprep.mubr.f32.mxu0 0.0
      %1152 = vmatmul.mubr.f32.gmra.mrb[0].mxu0 %v1085
      %v1153 = vpop.f32.mrb[0].mxu0
      %v1154 = vadd.f32 0.0, %v1153
      %v1155 = vpop.f32.mrb[0].mxu0
      %v1156 = vadd.f32 0.0, %v1155
      %1157 = vdwg.mxu0
      %s1158 = scalar_lea.vmem %s5, 7
      %v1159 = vld [vmem:[%s1158] ss:$8 sm:$0x3]
      %v1161 = vlaneseq
      %v1162 = vshrl.u32 %v1161, 7
      %v1163 = vsub.s32 0, %v1162
      %v1164 = vrot.slane %v1159, %v1163
      %v1165 = vlaneseq
      %v1166 = vshrl.u32 %v1165, 7
      %v1167 = vsub.s32 1, %v1166
      %v1168 = vrot.slane %v1159, %v1167
      %v1171 = vmul.f32 %v1154, %v1164
      %v1172 = vmul.f32 %v1156, %v1168
      %v1173 = vadd.f32 %v1073, %v1171
      %v1174 = vadd.f32 %v1074, %v1172
      %1175 = vrot.lane.b32.xlu0 %v394, 111
      %v1176 = vpop.permute.xlu0 %1175
      %1177 = vrot.lane.b32.xlu0 %v395, 111
      %v1178 = vpop.permute.xlu0 %1177
      %vm1179 = vcmp.lt.s32.totalorder %v401, 111
      %v1180 = vsel %vm1179, %v1176, %v1178
      %v1181 = vsel %vm1179, %v1178, %v1176
      %s1182 = scalar_lea.vmem %s4, 64
      %v1183 = vld [vmem:[%s1182] sm:$0xff]
      %v1185 = vsel %vm406, %v1183, 0
      %1187 = vmatprep.subr.mxu0 %v1181
      %1188 = vmatpush1.msra.mxu0 %v1180
      %1189 = vmatprep.subr.mxu0 0.0
      %1190 = vmatpush1.msra.mxu0 0.0
      %1191 = vmatprep.subr.mxu0 0.0
      %1192 = vmatpush1.msra.mxu0 0.0
      %1193 = vmatprep.subr.mxu0 0.0
      %1194 = vmatpush1.msra.mxu0 0.0
      %1195 = vmatprep.subr.mxu0 0.0
      %1196 = vmatpush1.msra.mxu0 0.0
      %1197 = vmatprep.subr.mxu0 0.0
      %1198 = vmatpush1.msra.mxu0 0.0
      %1199 = vmatprep.subr.mxu0 0.0
      %1200 = vmatpush1.msra.mxu0 0.0
      %1201 = vmatprep.subr.mxu0 0.0
      %1202 = vmatpush1.msra.mxu0 0.0
      %1203 = vmatprep.subr.mxu0 0.0
      %1204 = vmatpush1.msra.mxu0 0.0
      %1205 = vmatprep.subr.mxu0 0.0
      %1206 = vmatpush1.msra.mxu0 0.0
      %1207 = vmatprep.subr.mxu0 0.0
      %1208 = vmatpush1.msra.mxu0 0.0
      %1209 = vmatprep.subr.mxu0 0.0
      %1210 = vmatpush1.msra.mxu0 0.0
      %1211 = vmatprep.subr.mxu0 0.0
      %1212 = vmatpush1.msra.mxu0 0.0
      %1213 = vmatprep.subr.mxu0 0.0
      %1214 = vmatpush1.msra.mxu0 0.0
      %1215 = vmatprep.subr.mxu0 0.0
      %1216 = vmatpush1.msra.mxu0 0.0
      %1217 = vmatprep.subr.mxu0 0.0
      %1218 = vmatpush1.msra.mxu0 0.0
      %1219 = vmatprep.subr.mxu0 0.0
      %1220 = vmatpush1.msra.mxu0 0.0
      %1221 = vmatprep.subr.mxu0 0.0
      %1222 = vmatpush1.msra.mxu0 0.0
      %1223 = vmatprep.subr.mxu0 0.0
      %1224 = vmatpush1.msra.mxu0 0.0
      %1225 = vmatprep.subr.mxu0 0.0
      %1226 = vmatpush1.msra.mxu0 0.0
      %1227 = vmatprep.subr.mxu0 0.0
      %1228 = vmatpush1.msra.mxu0 0.0
      %1229 = vmatprep.subr.mxu0 0.0
      %1230 = vmatpush1.msra.mxu0 0.0
      %1231 = vmatprep.subr.mxu0 0.0
      %1232 = vmatpush1.msra.mxu0 0.0
      %1233 = vmatprep.subr.mxu0 0.0
      %1234 = vmatpush1.msra.mxu0 0.0
      %1235 = vmatprep.subr.mxu0 0.0
      %1236 = vmatpush1.msra.mxu0 0.0
      %1237 = vmatprep.subr.mxu0 0.0
      %1238 = vmatpush1.msra.mxu0 0.0
      %1239 = vmatprep.subr.mxu0 0.0
      %1240 = vmatpush1.msra.mxu0 0.0
      %1241 = vmatprep.subr.mxu0 0.0
      %1242 = vmatpush1.msra.mxu0 0.0
      %1243 = vmatprep.subr.mxu0 0.0
      %1244 = vmatpush1.msra.mxu0 0.0
      %1245 = vmatprep.subr.mxu0 0.0
      %1246 = vmatpush1.msra.mxu0 0.0
      %1247 = vmatprep.subr.mxu0 0.0
      %1248 = vmatpush1.msra.mxu0 0.0
      %1249 = vmatprep.subr.mxu0 0.0
      %1250 = vmatpush1.msra.mxu0 0.0
      %1251 = vmatprep.mubr.f32.mxu0 0.0
      %1252 = vmatmul.mubr.f32.gmra.mrb[0].mxu0 %v1185
      %v1253 = vpop.f32.mrb[0].mxu0
      %v1254 = vadd.f32 0.0, %v1253
      %v1255 = vpop.f32.mrb[0].mxu0
      %v1256 = vadd.f32 0.0, %v1255
      %1257 = vdwg.mxu0
      %s1258 = scalar_lea.vmem %s5, 16
      %v1259 = vld [vmem:[%s1258] ss:$8 sm:$0x3]
      %v1261 = vlaneseq
      %v1262 = vshrl.u32 %v1261, 7
      %v1263 = vsub.s32 0, %v1262
      %v1264 = vrot.slane %v1259, %v1263
      %v1265 = vlaneseq
      %v1266 = vshrl.u32 %v1265, 7
      %v1267 = vsub.s32 1, %v1266
      %v1268 = vrot.slane %v1259, %v1267
      %v1271 = vmul.f32 %v1254, %v1264
      %v1272 = vmul.f32 %v1256, %v1268
      %v1273 = vadd.f32 %v1173, %v1271
      %v1274 = vadd.f32 %v1174, %v1272
      %1275 = vst [vmem:[#allocation2 + $0x10] sm:$0xff] %v1273
      %1276 = vst [vmem:[#allocation2 + $0x18] sm:$0xff] %v1274
      %v1277 = vld [vmem:[#allocation2] sm:$0xff]
      %v1278 = vld [vmem:[#allocation2 + $0x8] sm:$0xff]
      %v1279 = vld [vmem:[#allocation2 + $0x10] sm:$0xff]
      %v1280 = vld [vmem:[#allocation2 + $0x18] sm:$0xff]
      %v1281 = vld [vmem:[#allocation2 + $0x20] sm:$0xff]
      %v1282 = vld [vmem:[#allocation2 + $0x28] sm:$0xff]
      %v1283 = vld [vmem:[#allocation2 + $0x30] sm:$0xff]
      %v1284 = vld [vmem:[#allocation2 + $0x38] sm:$0xff]
      %s1285 = scalar_lea.vmem %s1, 32
      %v1286 = vld [vmem:[%s1285] sm:$0xff]
      %v1287 = vld [vmem:[%s1285 + $0x8] sm:$0xff]
      %v1288 = vld [vmem:[%s1285 + $0x10] sm:$0xff]
      %v1289 = vld [vmem:[%s1285 + $0x18] sm:$0xff]
      %1291 = vset.pattern.permute.xlu0 0
      %1292 = vperm.xlu0 %1291, %v1286
      %v1293 = vpop.permute.xlu0 %1292
      %1296 = vset.pattern.permute.xlu0 0
      %1297 = vperm.xlu0 %1296, %v1287
      %v1298 = vpop.permute.xlu0 %1297
      %1301 = vset.pattern.permute.xlu0 0
      %1302 = vperm.xlu0 %1301, %v1288
      %v1303 = vpop.permute.xlu0 %1302
      %1306 = vset.pattern.permute.xlu0 0
      %1307 = vperm.xlu0 %1306, %v1289
      %v1308 = vpop.permute.xlu0 %1307
      %v1310 = vadd.f32 %v1277, %v1293
      %v1311 = vadd.f32 %v1278, %v1293
      %v1312 = vadd.f32 %v1279, %v1298
      %v1313 = vadd.f32 %v1280, %v1298
      %v1314 = vadd.f32 %v1281, %v1303
      %v1315 = vadd.f32 %v1282, %v1303
      %v1316 = vadd.f32 %v1283, %v1308
      %v1317 = vadd.f32 %v1284, %v1308
      %v1318 = vmax.f32 %v1310, 0.0
      %v1319 = vmax.f32 %v1311, 0.0
      %v1320 = vmax.f32 %v1312, 0.0
      %v1321 = vmax.f32 %v1313, 0.0
      %v1322 = vmax.f32 %v1314, 0.0
      %v1323 = vmax.f32 %v1315, 0.0
      %v1324 = vmax.f32 %v1316, 0.0
      %v1325 = vmax.f32 %v1317, 0.0
      %s1326 = scalar_lea.vmem %s2, 8
      %v1327 = vld [vmem:[%s1326] sm:$0xff]
      %s1328 = scalar_lea.vmem %s3, 8
      %v1329 = vld [vmem:[%s1328] sm:$0xff]
      %1331 = vset.pattern.permute.xlu0 0
      %1332 = vperm.xlu0 %1331, %v1329
      %v1333 = vpop.permute.xlu0 %1332
      %v1336 = vsel %vm319, %v1327, 0
      %1338 = vmatprep.subr.mxu0 %v1319
      %1339 = vmatpush1.msra.mxu0 %v1318
      %1340 = vmatprep.subr.mxu0 %v1321
      %1341 = vmatpush1.msra.mxu0 %v1320
      %1342 = vmatprep.subr.mxu0 %v1323
      %1343 = vmatpush1.msra.mxu0 %v1322
      %1344 = vmatprep.subr.mxu0 %v1325
      %1345 = vmatpush1.msra.mxu0 %v1324
      %1346 = vmatprep.subr.mxu0 0.0
      %1347 = vmatpush1.msra.mxu0 0.0
      %1348 = vmatprep.subr.mxu0 0.0
      %1349 = vmatpush1.msra.mxu0 0.0
      %1350 = vmatprep.subr.mxu0 0.0
      %1351 = vmatpush1.msra.mxu0 0.0
      %1352 = vmatprep.subr.mxu0 0.0
      %1353 = vmatpush1.msra.mxu0 0.0
      %1354 = vmatprep.subr.mxu0 0.0
      %1355 = vmatpush1.msra.mxu0 0.0
      %1356 = vmatprep.subr.mxu0 0.0
      %1357 = vmatpush1.msra.mxu0 0.0
      %1358 = vmatprep.subr.mxu0 0.0
      %1359 = vmatpush1.msra.mxu0 0.0
      %1360 = vmatprep.subr.mxu0 0.0
      %1361 = vmatpush1.msra.mxu0 0.0
      %1362 = vmatprep.subr.mxu0 0.0
      %1363 = vmatpush1.msra.mxu0 0.0
      %1364 = vmatprep.subr.mxu0 0.0
      %1365 = vmatpush1.msra.mxu0 0.0
      %1366 = vmatprep.subr.mxu0 0.0
      %1367 = vmatpush1.msra.mxu0 0.0
      %1368 = vmatprep.subr.mxu0 0.0
      %1369 = vmatpush1.msra.mxu0 0.0
      %1370 = vmatprep.subr.mxu0 0.0
      %1371 = vmatpush1.msra.mxu0 0.0
      %1372 = vmatprep.subr.mxu0 0.0
      %1373 = vmatpush1.msra.mxu0 0.0
      %1374 = vmatprep.subr.mxu0 0.0
      %1375 = vmatpush1.msra.mxu0 0.0
      %1376 = vmatprep.subr.mxu0 0.0
      %1377 = vmatpush1.msra.mxu0 0.0
      %1378 = vmatprep.subr.mxu0 0.0
      %1379 = vmatpush1.msra.mxu0 0.0
      %1380 = vmatprep.subr.mxu0 0.0
      %1381 = vmatpush1.msra.mxu0 0.0
      %1382 = vmatprep.subr.mxu0 0.0
      %1383 = vmatpush1.msra.mxu0 0.0
      %1384 = vmatprep.subr.mxu0 0.0
      %1385 = vmatpush1.msra.mxu0 0.0
      %1386 = vmatprep.subr.mxu0 0.0
      %1387 = vmatpush1.msra.mxu0 0.0
      %1388 = vmatprep.subr.mxu0 0.0
      %1389 = vmatpush1.msra.mxu0 0.0
      %1390 = vmatprep.subr.mxu0 0.0
      %1391 = vmatpush1.msra.mxu0 0.0
      %1392 = vmatprep.subr.mxu0 0.0
      %1393 = vmatpush1.msra.mxu0 0.0
      %1394 = vmatprep.subr.mxu0 0.0
      %1395 = vmatpush1.msra.mxu0 0.0
      %1396 = vmatprep.subr.mxu0 0.0
      %1397 = vmatpush1.msra.mxu0 0.0
      %1398 = vmatprep.subr.mxu0 0.0
      %1399 = vmatpush1.msra.mxu0 0.0
      %1400 = vmatprep.subr.mxu0 0.0
      %1401 = vmatpush1.msra.mxu0 0.0
      %1402 = vmatprep.mubr.f32.mxu0 0.0
      %1403 = vmatmul.mubr.f32.gmra.mrb[0].mxu0 %v1336
      %v1404 = vpop.f32.mrb[0].mxu0
      %v1405 = vadd.f32 %v1333, %v1404
      %v1406 = vpop.f32.mrb[0].mxu0
      %v1407 = vadd.f32 %v1333, %v1406
      %1408 = vdwg.mxu0
      %v1409 = vmax.f32 %v1405, 0.0
      %v1410 = vmax.f32 %v1407, 0.0
      %1411 = vrot.lane.b32.xlu0 %v1409, 17
      %v1412 = vpop.permute.xlu0 %1411
      %1413 = vrot.lane.b32.xlu0 %v1410, 17
      %v1414 = vpop.permute.xlu0 %1413
      %v1415 = vsel %vm402, %v1412, %v1414
      %v1416 = vsel %vm402, %v1414, %v1412
      %s1417 = scalar_lea.vmem %s4, 72
      %v1418 = vld [vmem:[%s1417] sm:$0xff]
      %v1420 = vsel %vm406, %v1418, 0
      %1422 = vmatprep.subr.mxu0 %v1415
      %1423 = vmatpush1.msra.mxu0 %v1416
      %1424 = vmatprep.subr.mxu0 0.0
      %1425 = vmatpush1.msra.mxu0 0.0
      %1426 = vmatprep.subr.mxu0 0.0
      %1427 = vmatpush1.msra.mxu0 0.0
      %1428 = vmatprep.subr.mxu0 0.0
      %1429 = vmatpush1.msra.mxu0 0.0
      %1430 = vmatprep.subr.mxu0 0.0
      %1431 = vmatpush1.msra.mxu0 0.0
      %1432 = vmatprep.subr.mxu0 0.0
      %1433 = vmatpush1.msra.mxu0 0.0
      %1434 = vmatprep.subr.mxu0 0.0
      %1435 = vmatpush1.msra.mxu0 0.0
      %1436 = vmatprep.subr.mxu0 0.0
      %1437 = vmatpush1.msra.mxu0 0.0
      %1438 = vmatprep.subr.mxu0 0.0
      %1439 = vmatpush1.msra.mxu0 0.0
      %1440 = vmatprep.subr.mxu0 0.0
      %1441 = vmatpush1.msra.mxu0 0.0
      %1442 = vmatprep.subr.mxu0 0.0
      %1443 = vmatpush1.msra.mxu0 0.0
      %1444 = vmatprep.subr.mxu0 0.0
      %1445 = vmatpush1.msra.mxu0 0.0
      %1446 = vmatprep.subr.mxu0 0.0
      %1447 = vmatpush1.msra.mxu0 0.0
      %1448 = vmatprep.subr.mxu0 0.0
      %1449 = vmatpush1.msra.mxu0 0.0
      %1450 = vmatprep.subr.mxu0 0.0
      %1451 = vmatpush1.msra.mxu0 0.0
      %1452 = vmatprep.subr.mxu0 0.0
      %1453 = vmatpush1.msra.mxu0 0.0
      %1454 = vmatprep.subr.mxu0 0.0
      %1455 = vmatpush1.msra.mxu0 0.0
      %1456 = vmatprep.subr.mxu0 0.0
      %1457 = vmatpush1.msra.mxu0 0.0
      %1458 = vmatprep.subr.mxu0 0.0
      %1459 = vmatpush1.msra.mxu0 0.0
      %1460 = vmatprep.subr.mxu0 0.0
      %1461 = vmatpush1.msra.mxu0 0.0
      %1462 = vmatprep.subr.mxu0 0.0
      %1463 = vmatpush1.msra.mxu0 0.0
      %1464 = vmatprep.subr.mxu0 0.0
      %1465 = vmatpush1.msra.mxu0 0.0
      %1466 = vmatprep.subr.mxu0 0.0
      %1467 = vmatpush1.msra.mxu0 0.0
      %1468 = vmatprep.subr.mxu0 0.0
      %1469 = vmatpush1.msra.mxu0 0.0
      %1470 = vmatprep.subr.mxu0 0.0
      %1471 = vmatpush1.msra.mxu0 0.0
      %1472 = vmatprep.subr.mxu0 0.0
      %1473 = vmatpush1.msra.mxu0 0.0
      %1474 = vmatprep.subr.mxu0 0.0
      %1475 = vmatpush1.msra.mxu0 0.0
      %1476 = vmatprep.subr.mxu0 0.0
      %1477 = vmatpush1.msra.mxu0 0.0
      %1478 = vmatprep.subr.mxu0 0.0
      %1479 = vmatpush1.msra.mxu0 0.0
      %1480 = vmatprep.subr.mxu0 0.0
      %1481 = vmatpush1.msra.mxu0 0.0
      %1482 = vmatprep.subr.mxu0 0.0
      %1483 = vmatpush1.msra.mxu0 0.0
      %1484 = vmatprep.subr.mxu0 0.0
      %1485 = vmatpush1.msra.mxu0 0.0
      %1486 = vmatprep.mubr.f32.mxu0 0.0
      %1487 = vmatmul.mubr.f32.gmra.mrb[0].mxu0 %v1420
      %v1488 = vpop.f32.mrb[0].mxu0
      %v1489 = vadd.f32 0.0, %v1488
      %v1490 = vpop.f32.mrb[0].mxu0
      %v1491 = vadd.f32 0.0, %v1490
      %1492 = vdwg.mxu0
      %v1493 = vld [vmem:[%s5] ss:$8 sm:$0x3]
      %v1495 = vlaneseq
      %v1496 = vshrl.u32 %v1495, 7
      %v1497 = vsub.s32 0, %v1496
      %v1498 = vrot.slane %v1493, %v1497
      %v1499 = vlaneseq
      %v1500 = vshrl.u32 %v1499, 7
      %v1501 = vsub.s32 1, %v1500
      %v1502 = vrot.slane %v1493, %v1501
      %v1505 = vmul.f32 %v1489, %v1498
      %v1506 = vmul.f32 %v1491, %v1502
      %v1507 = vadd.f32 %v1505, 0.0
      %v1508 = vadd.f32 %v1506, 0.0
      %1509 = vrot.lane.b32.xlu0 %v1409, 16
      %v1510 = vpop.permute.xlu0 %1509
      %1511 = vrot.lane.b32.xlu0 %v1410, 16
      %v1512 = vpop.permute.xlu0 %1511
      %v1513 = vsel %vm501, %v1510, %v1512
      %v1514 = vsel %vm501, %v1512, %v1510
      %s1515 = scalar_lea.vmem %s4, 80
      %v1516 = vld [vmem:[%s1515] sm:$0xff]
      %v1518 = vsel %vm406, %v1516, 0
      %1520 = vmatprep.subr.mxu0 %v1513
      %1521 = vmatpush1.msra.mxu0 %v1514
      %1522 = vmatprep.subr.mxu0 0.0
      %1523 = vmatpush1.msra.mxu0 0.0
      %1524 = vmatprep.subr.mxu0 0.0
      %1525 = vmatpush1.msra.mxu0 0.0
      %1526 = vmatprep.subr.mxu0 0.0
      %1527 = vmatpush1.msra.mxu0 0.0
      %1528 = vmatprep.subr.mxu0 0.0
      %1529 = vmatpush1.msra.mxu0 0.0
      %1530 = vmatprep.subr.mxu0 0.0
      %1531 = vmatpush1.msra.mxu0 0.0
      %1532 = vmatprep.subr.mxu0 0.0
      %1533 = vmatpush1.msra.mxu0 0.0
      %1534 = vmatprep.subr.mxu0 0.0
      %1535 = vmatpush1.msra.mxu0 0.0
      %1536 = vmatprep.subr.mxu0 0.0
      %1537 = vmatpush1.msra.mxu0 0.0
      %1538 = vmatprep.subr.mxu0 0.0
      %1539 = vmatpush1.msra.mxu0 0.0
      %1540 = vmatprep.subr.mxu0 0.0
      %1541 = vmatpush1.msra.mxu0 0.0
      %1542 = vmatprep.subr.mxu0 0.0
      %1543 = vmatpush1.msra.mxu0 0.0
      %1544 = vmatprep.subr.mxu0 0.0
      %1545 = vmatpush1.msra.mxu0 0.0
      %1546 = vmatprep.subr.mxu0 0.0
      %1547 = vmatpush1.msra.mxu0 0.0
      %1548 = vmatprep.subr.mxu0 0.0
      %1549 = vmatpush1.msra.mxu0 0.0
      %1550 = vmatprep.subr.mxu0 0.0
      %1551 = vmatpush1.msra.mxu0 0.0
      %1552 = vmatprep.subr.mxu0 0.0
      %1553 = vmatpush1.msra.mxu0 0.0
      %1554 = vmatprep.subr.mxu0 0.0
      %1555 = vmatpush1.msra.mxu0 0.0
      %1556 = vmatprep.subr.mxu0 0.0
      %1557 = vmatpush1.msra.mxu0 0.0
      %1558 = vmatprep.subr.mxu0 0.0
      %1559 = vmatpush1.msra.mxu0 0.0
      %1560 = vmatprep.subr.mxu0 0.0
      %1561 = vmatpush1.msra.mxu0 0.0
      %1562 = vmatprep.subr.mxu0 0.0
      %1563 = vmatpush1.msra.mxu0 0.0
      %1564 = vmatprep.subr.mxu0 0.0
      %1565 = vmatpush1.msra.mxu0 0.0
      %1566 = vmatprep.subr.mxu0 0.0
      %1567 = vmatpush1.msra.mxu0 0.0
      %1568 = vmatprep.subr.mxu0 0.0
      %1569 = vmatpush1.msra.mxu0 0.0
      %1570 = vmatprep.subr.mxu0 0.0
      %1571 = vmatpush1.msra.mxu0 0.0
      %1572 = vmatprep.subr.mxu0 0.0
      %1573 = vmatpush1.msra.mxu0 0.0
      %1574 = vmatprep.subr.mxu0 0.0
      %1575 = vmatpush1.msra.mxu0 0.0
      %1576 = vmatprep.subr.mxu0 0.0
      %1577 = vmatpush1.msra.mxu0 0.0
      %1578 = vmatprep.subr.mxu0 0.0
      %1579 = vmatpush1.msra.mxu0 0.0
      %1580 = vmatprep.subr.mxu0 0.0
      %1581 = vmatpush1.msra.mxu0 0.0
      %1582 = vmatprep.subr.mxu0 0.0
      %1583 = vmatpush1.msra.mxu0 0.0
      %1584 = vmatprep.mubr.f32.mxu0 0.0
      %1585 = vmatmul.mubr.f32.gmra.mrb[0].mxu0 %v1518
      %v1586 = vpop.f32.mrb[0].mxu0
      %v1587 = vadd.f32 0.0, %v1586
      %v1588 = vpop.f32.mrb[0].mxu0
      %v1589 = vadd.f32 0.0, %v1588
      %1590 = vdwg.mxu0
      %v1591 = vld [vmem:[%s580] ss:$8 sm:$0x3]
      %v1593 = vlaneseq
      %v1594 = vshrl.u32 %v1593, 7
      %v1595 = vsub.s32 0, %v1594
      %v1596 = vrot.slane %v1591, %v1595
      %v1597 = vlaneseq
      %v1598 = vshrl.u32 %v1597, 7
      %v1599 = vsub.s32 1, %v1598
      %v1600 = vrot.slane %v1591, %v1599
      %v1603 = vmul.f32 %v1587, %v1596
      %v1604 = vmul.f32 %v1589, %v1600
      %v1605 = vadd.f32 %v1507, %v1603
      %v1606 = vadd.f32 %v1508, %v1604
      %1607 = vrot.lane.b32.xlu0 %v1409, 15
      %v1608 = vpop.permute.xlu0 %1607
      %1609 = vrot.lane.b32.xlu0 %v1410, 15
      %v1610 = vpop.permute.xlu0 %1609
      %v1611 = vsel %vm601, %v1608, %v1610
      %v1612 = vsel %vm601, %v1610, %v1608
      %s1613 = scalar_lea.vmem %s4, 88
      %v1614 = vld [vmem:[%s1613] sm:$0xff]
      %v1616 = vsel %vm406, %v1614, 0
      %1618 = vmatprep.subr.mxu0 %v1611
      %1619 = vmatpush1.msra.mxu0 %v1612
      %1620 = vmatprep.subr.mxu0 0.0
      %1621 = vmatpush1.msra.mxu0 0.0
      %1622 = vmatprep.subr.mxu0 0.0
      %1623 = vmatpush1.msra.mxu0 0.0
      %1624 = vmatprep.subr.mxu0 0.0
      %1625 = vmatpush1.msra.mxu0 0.0
      %1626 = vmatprep.subr.mxu0 0.0
      %1627 = vmatpush1.msra.mxu0 0.0
      %1628 = vmatprep.subr.mxu0 0.0
      %1629 = vmatpush1.msra.mxu0 0.0
      %1630 = vmatprep.subr.mxu0 0.0
      %1631 = vmatpush1.msra.mxu0 0.0
      %1632 = vmatprep.subr.mxu0 0.0
      %1633 = vmatpush1.msra.mxu0 0.0
      %1634 = vmatprep.subr.mxu0 0.0
      %1635 = vmatpush1.msra.mxu0 0.0
      %1636 = vmatprep.subr.mxu0 0.0
      %1637 = vmatpush1.msra.mxu0 0.0
      %1638 = vmatprep.subr.mxu0 0.0
      %1639 = vmatpush1.msra.mxu0 0.0
      %1640 = vmatprep.subr.mxu0 0.0
      %1641 = vmatpush1.msra.mxu0 0.0
      %1642 = vmatprep.subr.mxu0 0.0
      %1643 = vmatpush1.msra.mxu0 0.0
      %1644 = vmatprep.subr.mxu0 0.0
      %1645 = vmatpush1.msra.mxu0 0.0
      %1646 = vmatprep.subr.mxu0 0.0
      %1647 = vmatpush1.msra.mxu0 0.0
      %1648 = vmatprep.subr.mxu0 0.0
      %1649 = vmatpush1.msra.mxu0 0.0
      %1650 = vmatprep.subr.mxu0 0.0
      %1651 = vmatpush1.msra.mxu0 0.0
      %1652 = vmatprep.subr.mxu0 0.0
      %1653 = vmatpush1.msra.mxu0 0.0
      %1654 = vmatprep.subr.mxu0 0.0
      %1655 = vmatpush1.msra.mxu0 0.0
      %1656 = vmatprep.subr.mxu0 0.0
      %1657 = vmatpush1.msra.mxu0 0.0
      %1658 = vmatprep.subr.mxu0 0.0
      %1659 = vmatpush1.msra.mxu0 0.0
      %1660 = vmatprep.subr.mxu0 0.0
      %1661 = vmatpush1.msra.mxu0 0.0
      %1662 = vmatprep.subr.mxu0 0.0
      %1663 = vmatpush1.msra.mxu0 0.0
      %1664 = vmatprep.subr.mxu0 0.0
      %1665 = vmatpush1.msra.mxu0 0.0
      %1666 = vmatprep.subr.mxu0 0.0
      %1667 = vmatpush1.msra.mxu0 0.0
      %1668 = vmatprep.subr.mxu0 0.0
      %1669 = vmatpush1.msra.mxu0 0.0
      %1670 = vmatprep.subr.mxu0 0.0
      %1671 = vmatpush1.msra.mxu0 0.0
      %1672 = vmatprep.subr.mxu0 0.0
      %1673 = vmatpush1.msra.mxu0 0.0
      %1674 = vmatprep.subr.mxu0 0.0
      %1675 = vmatpush1.msra.mxu0 0.0
      %1676 = vmatprep.subr.mxu0 0.0
      %1677 = vmatpush1.msra.mxu0 0.0
      %1678 = vmatprep.subr.mxu0 0.0
      %1679 = vmatpush1.msra.mxu0 0.0
      %1680 = vmatprep.subr.mxu0 0.0
      %1681 = vmatpush1.msra.mxu0 0.0
      %1682 = vmatprep.mubr.f32.mxu0 0.0
      %1683 = vmatmul.mubr.f32.gmra.mrb[0].mxu0 %v1616
      %v1684 = vpop.f32.mrb[0].mxu0
      %v1685 = vadd.f32 0.0, %v1684
      %v1686 = vpop.f32.mrb[0].mxu0
      %v1687 = vadd.f32 0.0, %v1686
      %1688 = vdwg.mxu0
      %v1689 = vld [vmem:[%s680] ss:$8 sm:$0x3]
      %v1691 = vlaneseq
      %v1692 = vshrl.u32 %v1691, 7
      %v1693 = vsub.s32 0, %v1692
      %v1694 = vrot.slane %v1689, %v1693
      %v1695 = vlaneseq
      %v1696 = vshrl.u32 %v1695, 7
      %v1697 = vsub.s32 1, %v1696
      %v1698 = vrot.slane %v1689, %v1697
      %v1701 = vmul.f32 %v1685, %v1694
      %v1702 = vmul.f32 %v1687, %v1698
      %v1703 = vadd.f32 %v1605, %v1701
      %v1704 = vadd.f32 %v1606, %v1702
      %1705 = vrot.lane.b32.xlu0 %v1409, 1
      %v1706 = vpop.permute.xlu0 %1705
      %1707 = vrot.lane.b32.xlu0 %v1410, 1
      %v1708 = vpop.permute.xlu0 %1707
      %v1709 = vsel %vm701, %v1706, %v1708
      %v1710 = vsel %vm701, %v1708, %v1706
      %s1711 = scalar_lea.vmem %s4, 96
      %v1712 = vld [vmem:[%s1711] sm:$0xff]
      %v1714 = vsel %vm406, %v1712, 0
      %1716 = vmatprep.subr.mxu0 %v1709
      %1717 = vmatpush1.msra.mxu0 %v1710
      %1718 = vmatprep.subr.mxu0 0.0
      %1719 = vmatpush1.msra.mxu0 0.0
      %1720 = vmatprep.subr.mxu0 0.0
      %1721 = vmatpush1.msra.mxu0 0.0
      %1722 = vmatprep.subr.mxu0 0.0
      %1723 = vmatpush1.msra.mxu0 0.0
      %1724 = vmatprep.subr.mxu0 0.0
      %1725 = vmatpush1.msra.mxu0 0.0
      %1726 = vmatprep.subr.mxu0 0.0
      %1727 = vmatpush1.msra.mxu0 0.0
      %1728 = vmatprep.subr.mxu0 0.0
      %1729 = vmatpush1.msra.mxu0 0.0
      %1730 = vmatprep.subr.mxu0 0.0
      %1731 = vmatpush1.msra.mxu0 0.0
      %1732 = vmatprep.subr.mxu0 0.0
      %1733 = vmatpush1.msra.mxu0 0.0
      %1734 = vmatprep.subr.mxu0 0.0
      %1735 = vmatpush1.msra.mxu0 0.0
      %1736 = vmatprep.subr.mxu0 0.0
      %1737 = vmatpush1.msra.mxu0 0.0
      %1738 = vmatprep.subr.mxu0 0.0
      %1739 = vmatpush1.msra.mxu0 0.0
      %1740 = vmatprep.subr.mxu0 0.0
      %1741 = vmatpush1.msra.mxu0 0.0
      %1742 = vmatprep.subr.mxu0 0.0
      %1743 = vmatpush1.msra.mxu0 0.0
      %1744 = vmatprep.subr.mxu0 0.0
      %1745 = vmatpush1.msra.mxu0 0.0
      %1746 = vmatprep.subr.mxu0 0.0
      %1747 = vmatpush1.msra.mxu0 0.0
      %1748 = vmatprep.subr.mxu0 0.0
      %1749 = vmatpush1.msra.mxu0 0.0
      %1750 = vmatprep.subr.mxu0 0.0
      %1751 = vmatpush1.msra.mxu0 0.0
      %1752 = vmatprep.subr.mxu0 0.0
      %1753 = vmatpush1.msra.mxu0 0.0
      %1754 = vmatprep.subr.mxu0 0.0
      %1755 = vmatpush1.msra.mxu0 0.0
      %1756 = vmatprep.subr.mxu0 0.0
      %1757 = vmatpush1.msra.mxu0 0.0
      %1758 = vmatprep.subr.mxu0 0.0
      %1759 = vmatpush1.msra.mxu0 0.0
      %1760 = vmatprep.subr.mxu0 0.0
      %1761 = vmatpush1.msra.mxu0 0.0
      %1762 = vmatprep.subr.mxu0 0.0
      %1763 = vmatpush1.msra.mxu0 0.0
      %1764 = vmatprep.subr.mxu0 0.0
      %1765 = vmatpush1.msra.mxu0 0.0
      %1766 = vmatprep.subr.mxu0 0.0
      %1767 = vmatpush1.msra.mxu0 0.0
      %1768 = vmatprep.subr.mxu0 0.0
      %1769 = vmatpush1.msra.mxu0 0.0
      %1770 = vmatprep.subr.mxu0 0.0
      %1771 = vmatpush1.msra.mxu0 0.0
      %1772 = vmatprep.subr.mxu0 0.0
      %1773 = vmatpush1.msra.mxu0 0.0
      %1774 = vmatprep.subr.mxu0 0.0
      %1775 = vmatpush1.msra.mxu0 0.0
      %1776 = vmatprep.subr.mxu0 0.0
      %1777 = vmatpush1.msra.mxu0 0.0
      %1778 = vmatprep.subr.mxu0 0.0
      %1779 = vmatpush1.msra.mxu0 0.0
      %1780 = vmatprep.mubr.f32.mxu0 0.0
      %1781 = vmatmul.mubr.f32.gmra.mrb[0].mxu0 %v1714
      %v1782 = vpop.f32.mrb[0].mxu0
      %v1783 = vadd.f32 0.0, %v1782
      %v1784 = vpop.f32.mrb[0].mxu0
      %v1785 = vadd.f32 0.0, %v1784
      %1786 = vdwg.mxu0
      %v1787 = vld [vmem:[%s780] ss:$8 sm:$0x3]
      %v1789 = vlaneseq
      %v1790 = vshrl.u32 %v1789, 7
      %v1791 = vsub.s32 0, %v1790
      %v1792 = vrot.slane %v1787, %v1791
      %v1793 = vlaneseq
      %v1794 = vshrl.u32 %v1793, 7
      %v1795 = vsub.s32 1, %v1794
      %v1796 = vrot.slane %v1787, %v1795
      %v1799 = vmul.f32 %v1783, %v1792
      %v1800 = vmul.f32 %v1785, %v1796
      %v1801 = vadd.f32 %v1703, %v1799
      %v1802 = vadd.f32 %v1704, %v1800
      %s1803 = scalar_lea.vmem %s4, 104
      %v1804 = vld [vmem:[%s1803] sm:$0xff]
      %v1806 = vsel %vm406, %v1804, 0
      %1808 = vmatprep.subr.mxu0 %v1410
      %1809 = vmatpush1.msra.mxu0 %v1409
      %1810 = vmatprep.subr.mxu0 0.0
      %1811 = vmatpush1.msra.mxu0 0.0
      %1812 = vmatprep.subr.mxu0 0.0
      %1813 = vmatpush1.msra.mxu0 0.0
      %1814 = vmatprep.subr.mxu0 0.0
      %1815 = vmatpush1.msra.mxu0 0.0
      %1816 = vmatprep.subr.mxu0 0.0
      %1817 = vmatpush1.msra.mxu0 0.0
      %1818 = vmatprep.subr.mxu0 0.0
      %1819 = vmatpush1.msra.mxu0 0.0
      %1820 = vmatprep.subr.mxu0 0.0
      %1821 = vmatpush1.msra.mxu0 0.0
      %1822 = vmatprep.subr.mxu0 0.0
      %1823 = vmatpush1.msra.mxu0 0.0
      %1824 = vmatprep.subr.mxu0 0.0
      %1825 = vmatpush1.msra.mxu0 0.0
      %1826 = vmatprep.subr.mxu0 0.0
      %1827 = vmatpush1.msra.mxu0 0.0
      %1828 = vmatprep.subr.mxu0 0.0
      %1829 = vmatpush1.msra.mxu0 0.0
      %1830 = vmatprep.subr.mxu0 0.0
      %1831 = vmatpush1.msra.mxu0 0.0
      %1832 = vmatprep.subr.mxu0 0.0
      %1833 = vmatpush1.msra.mxu0 0.0
      %1834 = vmatprep.subr.mxu0 0.0
      %1835 = vmatpush1.msra.mxu0 0.0
      %1836 = vmatprep.subr.mxu0 0.0
      %1837 = vmatpush1.msra.mxu0 0.0
      %1838 = vmatprep.subr.mxu0 0.0
      %1839 = vmatpush1.msra.mxu0 0.0
      %1840 = vmatprep.subr.mxu0 0.0
      %1841 = vmatpush1.msra.mxu0 0.0
      %1842 = vmatprep.subr.mxu0 0.0
      %1843 = vmatpush1.msra.mxu0 0.0
      %1844 = vmatprep.subr.mxu0 0.0
      %1845 = vmatpush1.msra.mxu0 0.0
      %1846 = vmatprep.subr.mxu0 0.0
      %1847 = vmatpush1.msra.mxu0 0.0
      %1848 = vmatprep.subr.mxu0 0.0
      %1849 = vmatpush1.msra.mxu0 0.0
      %1850 = vmatprep.subr.mxu0 0.0
      %1851 = vmatpush1.msra.mxu0 0.0
      %1852 = vmatprep.subr.mxu0 0.0
      %1853 = vmatpush1.msra.mxu0 0.0
      %1854 = vmatprep.subr.mxu0 0.0
      %1855 = vmatpush1.msra.mxu0 0.0
      %1856 = vmatprep.subr.mxu0 0.0
      %1857 = vmatpush1.msra.mxu0 0.0
      %1858 = vmatprep.subr.mxu0 0.0
      %1859 = vmatpush1.msra.mxu0 0.0
      %1860 = vmatprep.subr.mxu0 0.0
      %1861 = vmatpush1.msra.mxu0 0.0
      %1862 = vmatprep.subr.mxu0 0.0
      %1863 = vmatpush1.msra.mxu0 0.0
      %1864 = vmatprep.subr.mxu0 0.0
      %1865 = vmatpush1.msra.mxu0 0.0
      %1866 = vmatprep.subr.mxu0 0.0
      %1867 = vmatpush1.msra.mxu0 0.0
      %1868 = vmatprep.subr.mxu0 0.0
      %1869 = vmatpush1.msra.mxu0 0.0
      %1870 = vmatprep.subr.mxu0 0.0
      %1871 = vmatpush1.msra.mxu0 0.0
      %1872 = vmatprep.mubr.f32.mxu0 0.0
      %1873 = vmatmul.mubr.f32.gmra.mrb[0].mxu0 %v1806
      %v1874 = vpop.f32.mrb[0].mxu0
      %v1875 = vadd.f32 0.0, %v1874
      %v1876 = vpop.f32.mrb[0].mxu0
      %v1877 = vadd.f32 0.0, %v1876
      %1878 = vdwg.mxu0
      %v1879 = vadd.f32 %v1801, %v1875
      %v1880 = vadd.f32 %v1802, %v1877
      %1881 = vrot.lane.b32.xlu0 %v1409, 127
      %v1882 = vpop.permute.xlu0 %1881
      %1883 = vrot.lane.b32.xlu0 %v1410, 127
      %v1884 = vpop.permute.xlu0 %1883
      %v1885 = vsel %vm879, %v1882, %v1884
      %v1886 = vsel %vm879, %v1884, %v1882
      %s1887 = scalar_lea.vmem %s4, 112
      %v1888 = vld [vmem:[%s1887] sm:$0xff]
      %v1890 = vsel %vm406, %v1888, 0
      %1892 = vmatprep.subr.mxu0 %v1886
      %1893 = vmatpush1.msra.mxu0 %v1885
      %1894 = vmatprep.subr.mxu0 0.0
      %1895 = vmatpush1.msra.mxu0 0.0
      %1896 = vmatprep.subr.mxu0 0.0
      %1897 = vmatpush1.msra.mxu0 0.0
      %1898 = vmatprep.subr.mxu0 0.0
      %1899 = vmatpush1.msra.mxu0 0.0
      %1900 = vmatprep.subr.mxu0 0.0
      %1901 = vmatpush1.msra.mxu0 0.0
      %1902 = vmatprep.subr.mxu0 0.0
      %1903 = vmatpush1.msra.mxu0 0.0
      %1904 = vmatprep.subr.mxu0 0.0
      %1905 = vmatpush1.msra.mxu0 0.0
      %1906 = vmatprep.subr.mxu0 0.0
      %1907 = vmatpush1.msra.mxu0 0.0
      %1908 = vmatprep.subr.mxu0 0.0
      %1909 = vmatpush1.msra.mxu0 0.0
      %1910 = vmatprep.subr.mxu0 0.0
      %1911 = vmatpush1.msra.mxu0 0.0
      %1912 = vmatprep.subr.mxu0 0.0
      %1913 = vmatpush1.msra.mxu0 0.0
      %1914 = vmatprep.subr.mxu0 0.0
      %1915 = vmatpush1.msra.mxu0 0.0
      %1916 = vmatprep.subr.mxu0 0.0
      %1917 = vmatpush1.msra.mxu0 0.0
      %1918 = vmatprep.subr.mxu0 0.0
      %1919 = vmatpush1.msra.mxu0 0.0
      %1920 = vmatprep.subr.mxu0 0.0
      %1921 = vmatpush1.msra.mxu0 0.0
      %1922 = vmatprep.subr.mxu0 0.0
      %1923 = vmatpush1.msra.mxu0 0.0
      %1924 = vmatprep.subr.mxu0 0.0
      %1925 = vmatpush1.msra.mxu0 0.0
      %1926 = vmatprep.subr.mxu0 0.0
      %1927 = vmatpush1.msra.mxu0 0.0
      %1928 = vmatprep.subr.mxu0 0.0
      %1929 = vmatpush1.msra.mxu0 0.0
      %1930 = vmatprep.subr.mxu0 0.0
      %1931 = vmatpush1.msra.mxu0 0.0
      %1932 = vmatprep.subr.mxu0 0.0
      %1933 = vmatpush1.msra.mxu0 0.0
      %1934 = vmatprep.subr.mxu0 0.0
      %1935 = vmatpush1.msra.mxu0 0.0
      %1936 = vmatprep.subr.mxu0 0.0
      %1937 = vmatpush1.msra.mxu0 0.0
      %1938 = vmatprep.subr.mxu0 0.0
      %1939 = vmatpush1.msra.mxu0 0.0
      %1940 = vmatprep.subr.mxu0 0.0
      %1941 = vmatpush1.msra.mxu0 0.0
      %1942 = vmatprep.subr.mxu0 0.0
      %1943 = vmatpush1.msra.mxu0 0.0
      %1944 = vmatprep.subr.mxu0 0.0
      %1945 = vmatpush1.msra.mxu0 0.0
      %1946 = vmatprep.subr.mxu0 0.0
      %1947 = vmatpush1.msra.mxu0 0.0
      %1948 = vmatprep.subr.mxu0 0.0
      %1949 = vmatpush1.msra.mxu0 0.0
      %1950 = vmatprep.subr.mxu0 0.0
      %1951 = vmatpush1.msra.mxu0 0.0
      %1952 = vmatprep.subr.mxu0 0.0
      %1953 = vmatpush1.msra.mxu0 0.0
      %1954 = vmatprep.subr.mxu0 0.0
      %1955 = vmatpush1.msra.mxu0 0.0
      %1956 = vmatprep.mubr.f32.mxu0 0.0
      %1957 = vmatmul.mubr.f32.gmra.mrb[0].mxu0 %v1890
      %v1958 = vpop.f32.mrb[0].mxu0
      %v1959 = vadd.f32 0.0, %v1958
      %v1960 = vpop.f32.mrb[0].mxu0
      %v1961 = vadd.f32 0.0, %v1960
      %1962 = vdwg.mxu0
      %v1963 = vld [vmem:[%s958] ss:$8 sm:$0x3]
      %v1965 = vlaneseq
      %v1966 = vshrl.u32 %v1965, 7
      %v1967 = vsub.s32 0, %v1966
      %v1968 = vrot.slane %v1963, %v1967
      %v1969 = vlaneseq
      %v1970 = vshrl.u32 %v1969, 7
      %v1971 = vsub.s32 1, %v1970
      %v1972 = vrot.slane %v1963, %v1971
      %v1975 = vmul.f32 %v1959, %v1968
      %v1976 = vmul.f32 %v1961, %v1972
      %v1977 = vadd.f32 %v1879, %v1975
      %v1978 = vadd.f32 %v1880, %v1976
      %1979 = vrot.lane.b32.xlu0 %v1409, 113
      %v1980 = vpop.permute.xlu0 %1979
      %1981 = vrot.lane.b32.xlu0 %v1410, 113
      %v1982 = vpop.permute.xlu0 %1981
      %v1983 = vsel %vm979, %v1980, %v1982
      %v1984 = vsel %vm979, %v1982, %v1980
      %s1985 = scalar_lea.vmem %s4, 120
      %v1986 = vld [vmem:[%s1985] sm:$0xff]
      %v1988 = vsel %vm406, %v1986, 0
      %1990 = vmatprep.subr.mxu0 %v1984
      %1991 = vmatpush1.msra.mxu0 %v1983
      %1992 = vmatprep.subr.mxu0 0.0
      %1993 = vmatpush1.msra.mxu0 0.0
      %1994 = vmatprep.subr.mxu0 0.0
      %1995 = vmatpush1.msra.mxu0 0.0
      %1996 = vmatprep.subr.mxu0 0.0
      %1997 = vmatpush1.msra.mxu0 0.0
      %1998 = vmatprep.subr.mxu0 0.0
      %1999 = vmatpush1.msra.mxu0 0.0
      %2000 = vmatprep.subr.mxu0 0.0
      %2001 = vmatpush1.msra.mxu0 0.0
      %2002 = vmatprep.subr.mxu0 0.0
      %2003 = vmatpush1.msra.mxu0 0.0
      %2004 = vmatprep.subr.mxu0 0.0
      %2005 = vmatpush1.msra.mxu0 0.0
      %2006 = vmatprep.subr.mxu0 0.0
      %2007 = vmatpush1.msra.mxu0 0.0
      %2008 = vmatprep.subr.mxu0 0.0
      %2009 = vmatpush1.msra.mxu0 0.0
      %2010 = vmatprep.subr.mxu0 0.0
      %2011 = vmatpush1.msra.mxu0 0.0
      %2012 = vmatprep.subr.mxu0 0.0
      %2013 = vmatpush1.msra.mxu0 0.0
      %2014 = vmatprep.subr.mxu0 0.0
      %2015 = vmatpush1.msra.mxu0 0.0
      %2016 = vmatprep.subr.mxu0 0.0
      %2017 = vmatpush1.msra.mxu0 0.0
      %2018 = vmatprep.subr.mxu0 0.0
      %2019 = vmatpush1.msra.mxu0 0.0
      %2020 = vmatprep.subr.mxu0 0.0
      %2021 = vmatpush1.msra.mxu0 0.0
      %2022 = vmatprep.subr.mxu0 0.0
      %2023 = vmatpush1.msra.mxu0 0.0
      %2024 = vmatprep.subr.mxu0 0.0
      %2025 = vmatpush1.msra.mxu0 0.0
      %2026 = vmatprep.subr.mxu0 0.0
      %2027 = vmatpush1.msra.mxu0 0.0
      %2028 = vmatprep.subr.mxu0 0.0
      %2029 = vmatpush1.msra.mxu0 0.0
      %2030 = vmatprep.subr.mxu0 0.0
      %2031 = vmatpush1.msra.mxu0 0.0
      %2032 = vmatprep.subr.mxu0 0.0
      %2033 = vmatpush1.msra.mxu0 0.0
      %2034 = vmatprep.subr.mxu0 0.0
      %2035 = vmatpush1.msra.mxu0 0.0
      %2036 = vmatprep.subr.mxu0 0.0
      %2037 = vmatpush1.msra.mxu0 0.0
      %2038 = vmatprep.subr.mxu0 0.0
      %2039 = vmatpush1.msra.mxu0 0.0
      %2040 = vmatprep.subr.mxu0 0.0
      %2041 = vmatpush1.msra.mxu0 0.0
      %2042 = vmatprep.subr.mxu0 0.0
      %2043 = vmatpush1.msra.mxu0 0.0
      %2044 = vmatprep.subr.mxu0 0.0
      %2045 = vmatpush1.msra.mxu0 0.0
      %2046 = vmatprep.subr.mxu0 0.0
      %2047 = vmatpush1.msra.mxu0 0.0
      %2048 = vmatprep.subr.mxu0 0.0
      %2049 = vmatpush1.msra.mxu0 0.0
      %2050 = vmatprep.subr.mxu0 0.0
      %2051 = vmatpush1.msra.mxu0 0.0
      %2052 = vmatprep.subr.mxu0 0.0
      %2053 = vmatpush1.msra.mxu0 0.0
      %2054 = vmatprep.mubr.f32.mxu0 0.0
      %2055 = vmatmul.mubr.f32.gmra.mrb[0].mxu0 %v1988
      %v2056 = vpop.f32.mrb[0].mxu0
      %v2057 = vadd.f32 0.0, %v2056
      %v2058 = vpop.f32.mrb[0].mxu0
      %v2059 = vadd.f32 0.0, %v2058
      %2060 = vdwg.mxu0
      %v2061 = vld [vmem:[%s1058] ss:$8 sm:$0x3]
      %v2063 = vlaneseq
      %v2064 = vshrl.u32 %v2063, 7
      %v2065 = vsub.s32 0, %v2064
      %v2066 = vrot.slane %v2061, %v2065
      %v2067 = vlaneseq
      %v2068 = vshrl.u32 %v2067, 7
      %v2069 = vsub.s32 1, %v2068
      %v2070 = vrot.slane %v2061, %v2069
      %v2073 = vmul.f32 %v2057, %v2066
      %v2074 = vmul.f32 %v2059, %v2070
      %v2075 = vadd.f32 %v1977, %v2073
      %v2076 = vadd.f32 %v1978, %v2074
      %2077 = vrot.lane.b32.xlu0 %v1409, 112
      %v2078 = vpop.permute.xlu0 %2077
      %2079 = vrot.lane.b32.xlu0 %v1410, 112
      %v2080 = vpop.permute.xlu0 %2079
      %v2081 = vsel %vm1079, %v2078, %v2080
      %v2082 = vsel %vm1079, %v2080, %v2078
      %s2083 = scalar_lea.vmem %s4, 128
      %v2084 = vld [vmem:[%s2083] sm:$0xff]
      %v2086 = vsel %vm406, %v2084, 0
      %2088 = vmatprep.subr.mxu0 %v2082
      %2089 = vmatpush1.msra.mxu0 %v2081
      %2090 = vmatprep.subr.mxu0 0.0
      %2091 = vmatpush1.msra.mxu0 0.0
      %2092 = vmatprep.subr.mxu0 0.0
      %2093 = vmatpush1.msra.mxu0 0.0
      %2094 = vmatprep.subr.mxu0 0.0
      %2095 = vmatpush1.msra.mxu0 0.0
      %2096 = vmatprep.subr.mxu0 0.0
      %2097 = vmatpush1.msra.mxu0 0.0
      %2098 = vmatprep.subr.mxu0 0.0
      %2099 = vmatpush1.msra.mxu0 0.0
      %2100 = vmatprep.subr.mxu0 0.0
      %2101 = vmatpush1.msra.mxu0 0.0
      %2102 = vmatprep.subr.mxu0 0.0
      %2103 = vmatpush1.msra.mxu0 0.0
      %2104 = vmatprep.subr.mxu0 0.0
      %2105 = vmatpush1.msra.mxu0 0.0
      %2106 = vmatprep.subr.mxu0 0.0
      %2107 = vmatpush1.msra.mxu0 0.0
      %2108 = vmatprep.subr.mxu0 0.0
      %2109 = vmatpush1.msra.mxu0 0.0
      %2110 = vmatprep.subr.mxu0 0.0
      %2111 = vmatpush1.msra.mxu0 0.0
      %2112 = vmatprep.subr.mxu0 0.0
      %2113 = vmatpush1.msra.mxu0 0.0
      %2114 = vmatprep.subr.mxu0 0.0
      %2115 = vmatpush1.msra.mxu0 0.0
      %2116 = vmatprep.subr.mxu0 0.0
      %2117 = vmatpush1.msra.mxu0 0.0
      %2118 = vmatprep.subr.mxu0 0.0
      %2119 = vmatpush1.msra.mxu0 0.0
      %2120 = vmatprep.subr.mxu0 0.0
      %2121 = vmatpush1.msra.mxu0 0.0
      %2122 = vmatprep.subr.mxu0 0.0
      %2123 = vmatpush1.msra.mxu0 0.0
      %2124 = vmatprep.subr.mxu0 0.0
      %2125 = vmatpush1.msra.mxu0 0.0
      %2126 = vmatprep.subr.mxu0 0.0
      %2127 = vmatpush1.msra.mxu0 0.0
      %2128 = vmatprep.subr.mxu0 0.0
      %2129 = vmatpush1.msra.mxu0 0.0
      %2130 = vmatprep.subr.mxu0 0.0
      %2131 = vmatpush1.msra.mxu0 0.0
      %2132 = vmatprep.subr.mxu0 0.0
      %2133 = vmatpush1.msra.mxu0 0.0
      %2134 = vmatprep.subr.mxu0 0.0
      %2135 = vmatpush1.msra.mxu0 0.0
      %2136 = vmatprep.subr.mxu0 0.0
      %2137 = vmatpush1.msra.mxu0 0.0
      %2138 = vmatprep.subr.mxu0 0.0
      %2139 = vmatpush1.msra.mxu0 0.0
      %2140 = vmatprep.subr.mxu0 0.0
      %2141 = vmatpush1.msra.mxu0 0.0
      %2142 = vmatprep.subr.mxu0 0.0
      %2143 = vmatpush1.msra.mxu0 0.0
      %2144 = vmatprep.subr.mxu0 0.0
      %2145 = vmatpush1.msra.mxu0 0.0
      %2146 = vmatprep.subr.mxu0 0.0
      %2147 = vmatpush1.msra.mxu0 0.0
      %2148 = vmatprep.subr.mxu0 0.0
      %2149 = vmatpush1.msra.mxu0 0.0
      %2150 = vmatprep.subr.mxu0 0.0
      %2151 = vmatpush1.msra.mxu0 0.0
      %2152 = vmatprep.mubr.f32.mxu0 0.0
      %2153 = vmatmul.mubr.f32.gmra.mrb[0].mxu0 %v2086
      %v2154 = vpop.f32.mrb[0].mxu0
      %v2155 = vadd.f32 0.0, %v2154
      %v2156 = vpop.f32.mrb[0].mxu0
      %v2157 = vadd.f32 0.0, %v2156
      %2158 = vdwg.mxu0
      %v2159 = vld [vmem:[%s1158] ss:$8 sm:$0x3]
      %v2161 = vlaneseq
      %v2162 = vshrl.u32 %v2161, 7
      %v2163 = vsub.s32 0, %v2162
      %v2164 = vrot.slane %v2159, %v2163
      %v2165 = vlaneseq
      %v2166 = vshrl.u32 %v2165, 7
      %v2167 = vsub.s32 1, %v2166
      %v2168 = vrot.slane %v2159, %v2167
      %v2171 = vmul.f32 %v2155, %v2164
      %v2172 = vmul.f32 %v2157, %v2168
      %v2173 = vadd.f32 %v2075, %v2171
      %v2174 = vadd.f32 %v2076, %v2172
      %2175 = vrot.lane.b32.xlu0 %v1409, 111
      %v2176 = vpop.permute.xlu0 %2175
      %2177 = vrot.lane.b32.xlu0 %v1410, 111
      %v2178 = vpop.permute.xlu0 %2177
      %v2179 = vsel %vm1179, %v2176, %v2178
      %v2180 = vsel %vm1179, %v2178, %v2176
      %s2181 = scalar_lea.vmem %s4, 136
      %v2182 = vld [vmem:[%s2181] sm:$0xff]
      %v2184 = vsel %vm406, %v2182, 0
      %2186 = vmatprep.subr.mxu0 %v2180
      %2187 = vmatpush1.msra.mxu0 %v2179
      %2188 = vmatprep.subr.mxu0 0.0
      %2189 = vmatpush1.msra.mxu0 0.0
      %2190 = vmatprep.subr.mxu0 0.0
      %2191 = vmatpush1.msra.mxu0 0.0
      %2192 = vmatprep.subr.mxu0 0.0
      %2193 = vmatpush1.msra.mxu0 0.0
      %2194 = vmatprep.subr.mxu0 0.0
      %2195 = vmatpush1.msra.mxu0 0.0
      %2196 = vmatprep.subr.mxu0 0.0
      %2197 = vmatpush1.msra.mxu0 0.0
      %2198 = vmatprep.subr.mxu0 0.0
      %2199 = vmatpush1.msra.mxu0 0.0
      %2200 = vmatprep.subr.mxu0 0.0
      %2201 = vmatpush1.msra.mxu0 0.0
      %2202 = vmatprep.subr.mxu0 0.0
      %2203 = vmatpush1.msra.mxu0 0.0
      %2204 = vmatprep.subr.mxu0 0.0
      %2205 = vmatpush1.msra.mxu0 0.0
      %2206 = vmatprep.subr.mxu0 0.0
      %2207 = vmatpush1.msra.mxu0 0.0
      %2208 = vmatprep.subr.mxu0 0.0
      %2209 = vmatpush1.msra.mxu0 0.0
      %2210 = vmatprep.subr.mxu0 0.0
      %2211 = vmatpush1.msra.mxu0 0.0
      %2212 = vmatprep.subr.mxu0 0.0
      %2213 = vmatpush1.msra.mxu0 0.0
      %2214 = vmatprep.subr.mxu0 0.0
      %2215 = vmatpush1.msra.mxu0 0.0
      %2216 = vmatprep.subr.mxu0 0.0
      %2217 = vmatpush1.msra.mxu0 0.0
      %2218 = vmatprep.subr.mxu0 0.0
      %2219 = vmatpush1.msra.mxu0 0.0
      %2220 = vmatprep.subr.mxu0 0.0
      %2221 = vmatpush1.msra.mxu0 0.0
      %2222 = vmatprep.subr.mxu0 0.0
      %2223 = vmatpush1.msra.mxu0 0.0
      %2224 = vmatprep.subr.mxu0 0.0
      %2225 = vmatpush1.msra.mxu0 0.0
      %2226 = vmatprep.subr.mxu0 0.0
      %2227 = vmatpush1.msra.mxu0 0.0
      %2228 = vmatprep.subr.mxu0 0.0
      %2229 = vmatpush1.msra.mxu0 0.0
      %2230 = vmatprep.subr.mxu0 0.0
      %2231 = vmatpush1.msra.mxu0 0.0
      %2232 = vmatprep.subr.mxu0 0.0
      %2233 = vmatpush1.msra.mxu0 0.0
      %2234 = vmatprep.subr.mxu0 0.0
      %2235 = vmatpush1.msra.mxu0 0.0
      %2236 = vmatprep.subr.mxu0 0.0
      %2237 = vmatpush1.msra.mxu0 0.0
      %2238 = vmatprep.subr.mxu0 0.0
      %2239 = vmatpush1.msra.mxu0 0.0
      %2240 = vmatprep.subr.mxu0 0.0
      %2241 = vmatpush1.msra.mxu0 0.0
      %2242 = vmatprep.subr.mxu0 0.0
      %2243 = vmatpush1.msra.mxu0 0.0
      %2244 = vmatprep.subr.mxu0 0.0
      %2245 = vmatpush1.msra.mxu0 0.0
      %2246 = vmatprep.subr.mxu0 0.0
      %2247 = vmatpush1.msra.mxu0 0.0
      %2248 = vmatprep.subr.mxu0 0.0
      %2249 = vmatpush1.msra.mxu0 0.0
      %2250 = vmatprep.mubr.f32.mxu0 0.0
      %2251 = vmatmul.mubr.f32.gmra.mrb[0].mxu0 %v2184
      %v2252 = vpop.f32.mrb[0].mxu0
      %v2253 = vadd.f32 0.0, %v2252
      %v2254 = vpop.f32.mrb[0].mxu0
      %v2255 = vadd.f32 0.0, %v2254
      %2256 = vdwg.mxu0
      %v2257 = vld [vmem:[%s1258] ss:$8 sm:$0x3]
      %v2259 = vlaneseq
      %v2260 = vshrl.u32 %v2259, 7
      %v2261 = vsub.s32 0, %v2260
      %v2262 = vrot.slane %v2257, %v2261
      %v2263 = vlaneseq
      %v2264 = vshrl.u32 %v2263, 7
      %v2265 = vsub.s32 1, %v2264
      %v2266 = vrot.slane %v2257, %v2265
      %v2269 = vmul.f32 %v2253, %v2262
      %v2270 = vmul.f32 %v2255, %v2266
      %v2271 = vadd.f32 %v2173, %v2269
      %v2272 = vadd.f32 %v2174, %v2270
      %2273 = vst [vmem:[#allocation2 + $0x20] sm:$0xff] %v2271
      %2274 = vst [vmem:[#allocation2 + $0x28] sm:$0xff] %v2272
      %v2275 = vld [vmem:[#allocation2] sm:$0xff]
      %v2276 = vld [vmem:[#allocation2 + $0x8] sm:$0xff]
      %v2277 = vld [vmem:[#allocation2 + $0x10] sm:$0xff]
      %v2278 = vld [vmem:[#allocation2 + $0x18] sm:$0xff]
      %v2279 = vld [vmem:[#allocation2 + $0x20] sm:$0xff]
      %v2280 = vld [vmem:[#allocation2 + $0x28] sm:$0xff]
      %v2281 = vld [vmem:[#allocation2 + $0x30] sm:$0xff]
      %v2282 = vld [vmem:[#allocation2 + $0x38] sm:$0xff]
      %s2283 = scalar_lea.vmem %s1, 64
      %v2284 = vld [vmem:[%s2283] sm:$0xff]
      %v2285 = vld [vmem:[%s2283 + $0x8] sm:$0xff]
      %v2286 = vld [vmem:[%s2283 + $0x10] sm:$0xff]
      %v2287 = vld [vmem:[%s2283 + $0x18] sm:$0xff]
      %2289 = vset.pattern.permute.xlu0 0
      %2290 = vperm.xlu0 %2289, %v2284
      %v2291 = vpop.permute.xlu0 %2290
      %2294 = vset.pattern.permute.xlu0 0
      %2295 = vperm.xlu0 %2294, %v2285
      %v2296 = vpop.permute.xlu0 %2295
      %2299 = vset.pattern.permute.xlu0 0
      %2300 = vperm.xlu0 %2299, %v2286
      %v2301 = vpop.permute.xlu0 %2300
      %2304 = vset.pattern.permute.xlu0 0
      %2305 = vperm.xlu0 %2304, %v2287
      %v2306 = vpop.permute.xlu0 %2305
      %v2308 = vadd.f32 %v2275, %v2291
      %v2309 = vadd.f32 %v2276, %v2291
      %v2310 = vadd.f32 %v2277, %v2296
      %v2311 = vadd.f32 %v2278, %v2296
      %v2312 = vadd.f32 %v2279, %v2301
      %v2313 = vadd.f32 %v2280, %v2301
      %v2314 = vadd.f32 %v2281, %v2306
      %v2315 = vadd.f32 %v2282, %v2306
      %v2316 = vmax.f32 %v2308, 0.0
      %v2317 = vmax.f32 %v2309, 0.0
      %v2318 = vmax.f32 %v2310, 0.0
      %v2319 = vmax.f32 %v2311, 0.0
      %v2320 = vmax.f32 %v2312, 0.0
      %v2321 = vmax.f32 %v2313, 0.0
      %v2322 = vmax.f32 %v2314, 0.0
      %v2323 = vmax.f32 %v2315, 0.0
      %s2324 = scalar_lea.vmem %s2, 16
      %v2325 = vld [vmem:[%s2324] sm:$0xff]
      %s2326 = scalar_lea.vmem %s3, 16
      %v2327 = vld [vmem:[%s2326] sm:$0xff]
      %2329 = vset.pattern.permute.xlu0 0
      %2330 = vperm.xlu0 %2329, %v2327
      %v2331 = vpop.permute.xlu0 %2330
      %v2334 = vsel %vm319, %v2325, 0
      %2336 = vmatprep.subr.mxu0 %v2317
      %2337 = vmatpush1.msra.mxu0 %v2316
      %2338 = vmatprep.subr.mxu0 %v2319
      %2339 = vmatpush1.msra.mxu0 %v2318
      %2340 = vmatprep.subr.mxu0 %v2321
      %2341 = vmatpush1.msra.mxu0 %v2320
      %2342 = vmatprep.subr.mxu0 %v2323
      %2343 = vmatpush1.msra.mxu0 %v2322
      %2344 = vmatprep.subr.mxu0 0.0
      %2345 = vmatpush1.msra.mxu0 0.0
      %2346 = vmatprep.subr.mxu0 0.0
      %2347 = vmatpush1.msra.mxu0 0.0
      %2348 = vmatprep.subr.mxu0 0.0
      %2349 = vmatpush1.msra.mxu0 0.0
      %2350 = vmatprep.subr.mxu0 0.0
      %2351 = vmatpush1.msra.mxu0 0.0
      %2352 = vmatprep.subr.mxu0 0.0
      %2353 = vmatpush1.msra.mxu0 0.0
      %2354 = vmatprep.subr.mxu0 0.0
      %2355 = vmatpush1.msra.mxu0 0.0
      %2356 = vmatprep.subr.mxu0 0.0
      %2357 = vmatpush1.msra.mxu0 0.0
      %2358 = vmatprep.subr.mxu0 0.0
      %2359 = vmatpush1.msra.mxu0 0.0
      %2360 = vmatprep.subr.mxu0 0.0
      %2361 = vmatpush1.msra.mxu0 0.0
      %2362 = vmatprep.subr.mxu0 0.0
      %2363 = vmatpush1.msra.mxu0 0.0
      %2364 = vmatprep.subr.mxu0 0.0
      %2365 = vmatpush1.msra.mxu0 0.0
      %2366 = vmatprep.subr.mxu0 0.0
      %2367 = vmatpush1.msra.mxu0 0.0
      %2368 = vmatprep.subr.mxu0 0.0
      %2369 = vmatpush1.msra.mxu0 0.0
      %2370 = vmatprep.subr.mxu0 0.0
      %2371 = vmatpush1.msra.mxu0 0.0
      %2372 = vmatprep.subr.mxu0 0.0
      %2373 = vmatpush1.msra.mxu0 0.0
      %2374 = vmatprep.subr.mxu0 0.0
      %2375 = vmatpush1.msra.mxu0 0.0
      %2376 = vmatprep.subr.mxu0 0.0
      %2377 = vmatpush1.msra.mxu0 0.0
      %2378 = vmatprep.subr.mxu0 0.0
      %2379 = vmatpush1.msra.mxu0 0.0
      %2380 = vmatprep.subr.mxu0 0.0
      %2381 = vmatpush1.msra.mxu0 0.0
      %2382 = vmatprep.subr.mxu0 0.0
      %2383 = vmatpush1.msra.mxu0 0.0
      %2384 = vmatprep.subr.mxu0 0.0
      %2385 = vmatpush1.msra.mxu0 0.0
      %2386 = vmatprep.subr.mxu0 0.0
      %2387 = vmatpush1.msra.mxu0 0.0
      %2388 = vmatprep.subr.mxu0 0.0
      %2389 = vmatpush1.msra.mxu0 0.0
      %2390 = vmatprep.subr.mxu0 0.0
      %2391 = vmatpush1.msra.mxu0 0.0
      %2392 = vmatprep.subr.mxu0 0.0
      %2393 = vmatpush1.msra.mxu0 0.0
      %2394 = vmatprep.subr.mxu0 0.0
      %2395 = vmatpush1.msra.mxu0 0.0
      %2396 = vmatprep.subr.mxu0 0.0
      %2397 = vmatpush1.msra.mxu0 0.0
      %2398 = vmatprep.subr.mxu0 0.0
      %2399 = vmatpush1.msra.mxu0 0.0
      %2400 = vmatprep.mubr.f32.mxu0 0.0
      %2401 = vmatmul.mubr.f32.gmra.mrb[0].mxu0 %v2334
      %v2402 = vpop.f32.mrb[0].mxu0
      %v2403 = vadd.f32 %v2331, %v2402
      %v2404 = vpop.f32.mrb[0].mxu0
      %v2405 = vadd.f32 %v2331, %v2404
      %2406 = vdwg.mxu0
      %v2407 = vmax.f32 %v2403, 0.0
      %v2408 = vmax.f32 %v2405, 0.0
      %2409 = vrot.lane.b32.xlu0 %v2407, 17
      %v2410 = vpop.permute.xlu0 %2409
      %2411 = vrot.lane.b32.xlu0 %v2408, 17
      %v2412 = vpop.permute.xlu0 %2411
      %v2413 = vsel %vm402, %v2410, %v2412
      %v2414 = vsel %vm402, %v2412, %v2410
      %s2415 = scalar_lea.vmem %s4, 144
      %v2416 = vld [vmem:[%s2415] sm:$0xff]
      %v2418 = vsel %vm406, %v2416, 0
      %2420 = vmatprep.subr.mxu0 %v2413
      %2421 = vmatpush1.msra.mxu0 %v2414
      %2422 = vmatprep.subr.mxu0 0.0
      %2423 = vmatpush1.msra.mxu0 0.0
      %2424 = vmatprep.subr.mxu0 0.0
      %2425 = vmatpush1.msra.mxu0 0.0
      %2426 = vmatprep.subr.mxu0 0.0
      %2427 = vmatpush1.msra.mxu0 0.0
      %2428 = vmatprep.subr.mxu0 0.0
      %2429 = vmatpush1.msra.mxu0 0.0
      %2430 = vmatprep.subr.mxu0 0.0
      %2431 = vmatpush1.msra.mxu0 0.0
      %2432 = vmatprep.subr.mxu0 0.0
      %2433 = vmatpush1.msra.mxu0 0.0
      %2434 = vmatprep.subr.mxu0 0.0
      %2435 = vmatpush1.msra.mxu0 0.0
      %2436 = vmatprep.subr.mxu0 0.0
      %2437 = vmatpush1.msra.mxu0 0.0
      %2438 = vmatprep.subr.mxu0 0.0
      %2439 = vmatpush1.msra.mxu0 0.0
      %2440 = vmatprep.subr.mxu0 0.0
      %2441 = vmatpush1.msra.mxu0 0.0
      %2442 = vmatprep.subr.mxu0 0.0
      %2443 = vmatpush1.msra.mxu0 0.0
      %2444 = vmatprep.subr.mxu0 0.0
      %2445 = vmatpush1.msra.mxu0 0.0
      %2446 = vmatprep.subr.mxu0 0.0
      %2447 = vmatpush1.msra.mxu0 0.0
      %2448 = vmatprep.subr.mxu0 0.0
      %2449 = vmatpush1.msra.mxu0 0.0
      %2450 = vmatprep.subr.mxu0 0.0
      %2451 = vmatpush1.msra.mxu0 0.0
      %2452 = vmatprep.subr.mxu0 0.0
      %2453 = vmatpush1.msra.mxu0 0.0
      %2454 = vmatprep.subr.mxu0 0.0
      %2455 = vmatpush1.msra.mxu0 0.0
      %2456 = vmatprep.subr.mxu0 0.0
      %2457 = vmatpush1.msra.mxu0 0.0
      %2458 = vmatprep.subr.mxu0 0.0
      %2459 = vmatpush1.msra.mxu0 0.0
      %2460 = vmatprep.subr.mxu0 0.0
      %2461 = vmatpush1.msra.mxu0 0.0
      %2462 = vmatprep.subr.mxu0 0.0
      %2463 = vmatpush1.msra.mxu0 0.0
      %2464 = vmatprep.subr.mxu0 0.0
      %2465 = vmatpush1.msra.mxu0 0.0
      %2466 = vmatprep.subr.mxu0 0.0
      %2467 = vmatpush1.msra.mxu0 0.0
      %2468 = vmatprep.subr.mxu0 0.0
      %2469 = vmatpush1.msra.mxu0 0.0
      %2470 = vmatprep.subr.mxu0 0.0
      %2471 = vmatpush1.msra.mxu0 0.0
      %2472 = vmatprep.subr.mxu0 0.0
      %2473 = vmatpush1.msra.mxu0 0.0
      %2474 = vmatprep.subr.mxu0 0.0
      %2475 = vmatpush1.msra.mxu0 0.0
      %2476 = vmatprep.subr.mxu0 0.0
      %2477 = vmatpush1.msra.mxu0 0.0
      %2478 = vmatprep.subr.mxu0 0.0
      %2479 = vmatpush1.msra.mxu0 0.0
      %2480 = vmatprep.subr.mxu0 0.0
      %2481 = vmatpush1.msra.mxu0 0.0
      %2482 = vmatprep.subr.mxu0 0.0
      %2483 = vmatpush1.msra.mxu0 0.0
      %2484 = vmatprep.mubr.f32.mxu0 0.0
      %2485 = vmatmul.mubr.f32.gmra.mrb[0].mxu0 %v2418
      %v2486 = vpop.f32.mrb[0].mxu0
      %v2487 = vadd.f32 0.0, %v2486
      %v2488 = vpop.f32.mrb[0].mxu0
      %v2489 = vadd.f32 0.0, %v2488
      %2490 = vdwg.mxu0
      %v2491 = vld [vmem:[%s5] ss:$8 sm:$0x3]
      %v2493 = vlaneseq
      %v2494 = vshrl.u32 %v2493, 7
      %v2495 = vsub.s32 0, %v2494
      %v2496 = vrot.slane %v2491, %v2495
      %v2497 = vlaneseq
      %v2498 = vshrl.u32 %v2497, 7
      %v2499 = vsub.s32 1, %v2498
      %v2500 = vrot.slane %v2491, %v2499
      %v2503 = vmul.f32 %v2487, %v2496
      %v2504 = vmul.f32 %v2489, %v2500
      %v2505 = vadd.f32 %v2503, 0.0
      %v2506 = vadd.f32 %v2504, 0.0
      %2507 = vrot.lane.b32.xlu0 %v2407, 16
      %v2508 = vpop.permute.xlu0 %2507
      %2509 = vrot.lane.b32.xlu0 %v2408, 16
      %v2510 = vpop.permute.xlu0 %2509
      %v2511 = vsel %vm501, %v2508, %v2510
      %v2512 = vsel %vm501, %v2510, %v2508
      %s2513 = scalar_lea.vmem %s4, 152
      %v2514 = vld [vmem:[%s2513] sm:$0xff]
      %v2516 = vsel %vm406, %v2514, 0
      %2518 = vmatprep.subr.mxu0 %v2511
      %2519 = vmatpush1.msra.mxu0 %v2512
      %2520 = vmatprep.subr.mxu0 0.0
      %2521 = vmatpush1.msra.mxu0 0.0
      %2522 = vmatprep.subr.mxu0 0.0
      %2523 = vmatpush1.msra.mxu0 0.0
      %2524 = vmatprep.subr.mxu0 0.0
      %2525 = vmatpush1.msra.mxu0 0.0
      %2526 = vmatprep.subr.mxu0 0.0
      %2527 = vmatpush1.msra.mxu0 0.0
      %2528 = vmatprep.subr.mxu0 0.0
      %2529 = vmatpush1.msra.mxu0 0.0
      %2530 = vmatprep.subr.mxu0 0.0
      %2531 = vmatpush1.msra.mxu0 0.0
      %2532 = vmatprep.subr.mxu0 0.0
      %2533 = vmatpush1.msra.mxu0 0.0
      %2534 = vmatprep.subr.mxu0 0.0
      %2535 = vmatpush1.msra.mxu0 0.0
      %2536 = vmatprep.subr.mxu0 0.0
      %2537 = vmatpush1.msra.mxu0 0.0
      %2538 = vmatprep.subr.mxu0 0.0
      %2539 = vmatpush1.msra.mxu0 0.0
      %2540 = vmatprep.subr.mxu0 0.0
      %2541 = vmatpush1.msra.mxu0 0.0
      %2542 = vmatprep.subr.mxu0 0.0
      %2543 = vmatpush1.msra.mxu0 0.0
      %2544 = vmatprep.subr.mxu0 0.0
      %2545 = vmatpush1.msra.mxu0 0.0
      %2546 = vmatprep.subr.mxu0 0.0
      %2547 = vmatpush1.msra.mxu0 0.0
      %2548 = vmatprep.subr.mxu0 0.0
      %2549 = vmatpush1.msra.mxu0 0.0
      %2550 = vmatprep.subr.mxu0 0.0
      %2551 = vmatpush1.msra.mxu0 0.0
      %2552 = vmatprep.subr.mxu0 0.0
      %2553 = vmatpush1.msra.mxu0 0.0
      %2554 = vmatprep.subr.mxu0 0.0
      %2555 = vmatpush1.msra.mxu0 0.0
      %2556 = vmatprep.subr.mxu0 0.0
      %2557 = vmatpush1.msra.mxu0 0.0
      %2558 = vmatprep.subr.mxu0 0.0
      %2559 = vmatpush1.msra.mxu0 0.0
      %2560 = vmatprep.subr.mxu0 0.0
      %2561 = vmatpush1.msra.mxu0 0.0
      %2562 = vmatprep.subr.mxu0 0.0
      %2563 = vmatpush1.msra.mxu0 0.0
      %2564 = vmatprep.subr.mxu0 0.0
      %2565 = vmatpush1.msra.mxu0 0.0
      %2566 = vmatprep.subr.mxu0 0.0
      %2567 = vmatpush1.msra.mxu0 0.0
      %2568 = vmatprep.subr.mxu0 0.0
      %2569 = vmatpush1.msra.mxu0 0.0
      %2570 = vmatprep.subr.mxu0 0.0
      %2571 = vmatpush1.msra.mxu0 0.0
      %2572 = vmatprep.subr.mxu0 0.0
      %2573 = vmatpush1.msra.mxu0 0.0
      %2574 = vmatprep.subr.mxu0 0.0
      %2575 = vmatpush1.msra.mxu0 0.0
      %2576 = vmatprep.subr.mxu0 0.0
      %2577 = vmatpush1.msra.mxu0 0.0
      %2578 = vmatprep.subr.mxu0 0.0
      %2579 = vmatpush1.msra.mxu0 0.0
      %2580 = vmatprep.subr.mxu0 0.0
      %2581 = vmatpush1.msra.mxu0 0.0
      %2582 = vmatprep.mubr.f32.mxu0 0.0
      %2583 = vmatmul.mubr.f32.gmra.mrb[0].mxu0 %v2516
      %v2584 = vpop.f32.mrb[0].mxu0
      %v2585 = vadd.f32 0.0, %v2584
      %v2586 = vpop.f32.mrb[0].mxu0
      %v2587 = vadd.f32 0.0, %v2586
      %2588 = vdwg.mxu0
      %v2589 = vld [vmem:[%s580] ss:$8 sm:$0x3]
      %v2591 = vlaneseq
      %v2592 = vshrl.u32 %v2591, 7
      %v2593 = vsub.s32 0, %v2592
      %v2594 = vrot.slane %v2589, %v2593
      %v2595 = vlaneseq
      %v2596 = vshrl.u32 %v2595, 7
      %v2597 = vsub.s32 1, %v2596
      %v2598 = vrot.slane %v2589, %v2597
      %v2601 = vmul.f32 %v2585, %v2594
      %v2602 = vmul.f32 %v2587, %v2598
      %v2603 = vadd.f32 %v2505, %v2601
      %v2604 = vadd.f32 %v2506, %v2602
      %2605 = vrot.lane.b32.xlu0 %v2407, 15
      %v2606 = vpop.permute.xlu0 %2605
      %2607 = vrot.lane.b32.xlu0 %v2408, 15
      %v2608 = vpop.permute.xlu0 %2607
      %v2609 = vsel %vm601, %v2606, %v2608
      %v2610 = vsel %vm601, %v2608, %v2606
      %s2611 = scalar_lea.vmem %s4, 160
      %v2612 = vld [vmem:[%s2611] sm:$0xff]
      %v2614 = vsel %vm406, %v2612, 0
      %2616 = vmatprep.subr.mxu0 %v2609
      %2617 = vmatpush1.msra.mxu0 %v2610
      %2618 = vmatprep.subr.mxu0 0.0
      %2619 = vmatpush1.msra.mxu0 0.0
      %2620 = vmatprep.subr.mxu0 0.0
      %2621 = vmatpush1.msra.mxu0 0.0
      %2622 = vmatprep.subr.mxu0 0.0
      %2623 = vmatpush1.msra.mxu0 0.0
      %2624 = vmatprep.subr.mxu0 0.0
      %2625 = vmatpush1.msra.mxu0 0.0
      %2626 = vmatprep.subr.mxu0 0.0
      %2627 = vmatpush1.msra.mxu0 0.0
      %2628 = vmatprep.subr.mxu0 0.0
      %2629 = vmatpush1.msra.mxu0 0.0
      %2630 = vmatprep.subr.mxu0 0.0
      %2631 = vmatpush1.msra.mxu0 0.0
      %2632 = vmatprep.subr.mxu0 0.0
      %2633 = vmatpush1.msra.mxu0 0.0
      %2634 = vmatprep.subr.mxu0 0.0
      %2635 = vmatpush1.msra.mxu0 0.0
      %2636 = vmatprep.subr.mxu0 0.0
      %2637 = vmatpush1.msra.mxu0 0.0
      %2638 = vmatprep.subr.mxu0 0.0
      %2639 = vmatpush1.msra.mxu0 0.0
      %2640 = vmatprep.subr.mxu0 0.0
      %2641 = vmatpush1.msra.mxu0 0.0
      %2642 = vmatprep.subr.mxu0 0.0
      %2643 = vmatpush1.msra.mxu0 0.0
      %2644 = vmatprep.subr.mxu0 0.0
      %2645 = vmatpush1.msra.mxu0 0.0
      %2646 = vmatprep.subr.mxu0 0.0
      %2647 = vmatpush1.msra.mxu0 0.0
      %2648 = vmatprep.subr.mxu0 0.0
      %2649 = vmatpush1.msra.mxu0 0.0
      %2650 = vmatprep.subr.mxu0 0.0
      %2651 = vmatpush1.msra.mxu0 0.0
      %2652 = vmatprep.subr.mxu0 0.0
      %2653 = vmatpush1.msra.mxu0 0.0
      %2654 = vmatprep.subr.mxu0 0.0
      %2655 = vmatpush1.msra.mxu0 0.0
      %2656 = vmatprep.subr.mxu0 0.0
      %2657 = vmatpush1.msra.mxu0 0.0
      %2658 = vmatprep.subr.mxu0 0.0
      %2659 = vmatpush1.msra.mxu0 0.0
      %2660 = vmatprep.subr.mxu0 0.0
      %2661 = vmatpush1.msra.mxu0 0.0
      %2662 = vmatprep.subr.mxu0 0.0
      %2663 = vmatpush1.msra.mxu0 0.0
      %2664 = vmatprep.subr.mxu0 0.0
      %2665 = vmatpush1.msra.mxu0 0.0
      %2666 = vmatprep.subr.mxu0 0.0
      %2667 = vmatpush1.msra.mxu0 0.0
      %2668 = vmatprep.subr.mxu0 0.0
      %2669 = vmatpush1.msra.mxu0 0.0
      %2670 = vmatprep.subr.mxu0 0.0
      %2671 = vmatpush1.msra.mxu0 0.0
      %2672 = vmatprep.subr.mxu0 0.0
      %2673 = vmatpush1.msra.mxu0 0.0
      %2674 = vmatprep.subr.mxu0 0.0
      %2675 = vmatpush1.msra.mxu0 0.0
      %2676 = vmatprep.subr.mxu0 0.0
      %2677 = vmatpush1.msra.mxu0 0.0
      %2678 = vmatprep.subr.mxu0 0.0
      %2679 = vmatpush1.msra.mxu0 0.0
      %2680 = vmatprep.mubr.f32.mxu0 0.0
      %2681 = vmatmul.mubr.f32.gmra.mrb[0].mxu0 %v2614
      %v2682 = vpop.f32.mrb[0].mxu0
      %v2683 = vadd.f32 0.0, %v2682
      %v2684 = vpop.f32.mrb[0].mxu0
      %v2685 = vadd.f32 0.0, %v2684
      %2686 = vdwg.mxu0
      %v2687 = vld [vmem:[%s680] ss:$8 sm:$0x3]
      %v2689 = vlaneseq
      %v2690 = vshrl.u32 %v2689, 7
      %v2691 = vsub.s32 0, %v2690
      %v2692 = vrot.slane %v2687, %v2691
      %v2693 = vlaneseq
      %v2694 = vshrl.u32 %v2693, 7
      %v2695 = vsub.s32 1, %v2694
      %v2696 = vrot.slane %v2687, %v2695
      %v2699 = vmul.f32 %v2683, %v2692
      %v2700 = vmul.f32 %v2685, %v2696
      %v2701 = vadd.f32 %v2603, %v2699
      %v2702 = vadd.f32 %v2604, %v2700
      %2703 = vrot.lane.b32.xlu0 %v2407, 1
      %v2704 = vpop.permute.xlu0 %2703
      %2705 = vrot.lane.b32.xlu0 %v2408, 1
      %v2706 = vpop.permute.xlu0 %2705
      %v2707 = vsel %vm701, %v2704, %v2706
      %v2708 = vsel %vm701, %v2706, %v2704
      %s2709 = scalar_lea.vmem %s4, 168
      %v2710 = vld [vmem:[%s2709] sm:$0xff]
      %v2712 = vsel %vm406, %v2710, 0
      %2714 = vmatprep.subr.mxu0 %v2707
      %2715 = vmatpush1.msra.mxu0 %v2708
      %2716 = vmatprep.subr.mxu0 0.0
      %2717 = vmatpush1.msra.mxu0 0.0
      %2718 = vmatprep.subr.mxu0 0.0
      %2719 = vmatpush1.msra.mxu0 0.0
      %2720 = vmatprep.subr.mxu0 0.0
      %2721 = vmatpush1.msra.mxu0 0.0
      %2722 = vmatprep.subr.mxu0 0.0
      %2723 = vmatpush1.msra.mxu0 0.0
      %2724 = vmatprep.subr.mxu0 0.0
      %2725 = vmatpush1.msra.mxu0 0.0
      %2726 = vmatprep.subr.mxu0 0.0
      %2727 = vmatpush1.msra.mxu0 0.0
      %2728 = vmatprep.subr.mxu0 0.0
      %2729 = vmatpush1.msra.mxu0 0.0
      %2730 = vmatprep.subr.mxu0 0.0
      %2731 = vmatpush1.msra.mxu0 0.0
      %2732 = vmatprep.subr.mxu0 0.0
      %2733 = vmatpush1.msra.mxu0 0.0
      %2734 = vmatprep.subr.mxu0 0.0
      %2735 = vmatpush1.msra.mxu0 0.0
      %2736 = vmatprep.subr.mxu0 0.0
      %2737 = vmatpush1.msra.mxu0 0.0
      %2738 = vmatprep.subr.mxu0 0.0
      %2739 = vmatpush1.msra.mxu0 0.0
      %2740 = vmatprep.subr.mxu0 0.0
      %2741 = vmatpush1.msra.mxu0 0.0
      %2742 = vmatprep.subr.mxu0 0.0
      %2743 = vmatpush1.msra.mxu0 0.0
      %2744 = vmatprep.subr.mxu0 0.0
      %2745 = vmatpush1.msra.mxu0 0.0
      %2746 = vmatprep.subr.mxu0 0.0
      %2747 = vmatpush1.msra.mxu0 0.0
      %2748 = vmatprep.subr.mxu0 0.0
      %2749 = vmatpush1.msra.mxu0 0.0
      %2750 = vmatprep.subr.mxu0 0.0
      %2751 = vmatpush1.msra.mxu0 0.0
      %2752 = vmatprep.subr.mxu0 0.0
      %2753 = vmatpush1.msra.mxu0 0.0
      %2754 = vmatprep.subr.mxu0 0.0
      %2755 = vmatpush1.msra.mxu0 0.0
      %2756 = vmatprep.subr.mxu0 0.0
      %2757 = vmatpush1.msra.mxu0 0.0
      %2758 = vmatprep.subr.mxu0 0.0
      %2759 = vmatpush1.msra.mxu0 0.0
      %2760 = vmatprep.subr.mxu0 0.0
      %2761 = vmatpush1.msra.mxu0 0.0
      %2762 = vmatprep.subr.mxu0 0.0
      %2763 = vmatpush1.msra.mxu0 0.0
      %2764 = vmatprep.subr.mxu0 0.0
      %2765 = vmatpush1.msra.mxu0 0.0
      %2766 = vmatprep.subr.mxu0 0.0
      %2767 = vmatpush1.msra.mxu0 0.0
      %2768 = vmatprep.subr.mxu0 0.0
      %2769 = vmatpush1.msra.mxu0 0.0
      %2770 = vmatprep.subr.mxu0 0.0
      %2771 = vmatpush1.msra.mxu0 0.0
      %2772 = vmatprep.subr.mxu0 0.0
      %2773 = vmatpush1.msra.mxu0 0.0
      %2774 = vmatprep.subr.mxu0 0.0
      %2775 = vmatpush1.msra.mxu0 0.0
      %2776 = vmatprep.subr.mxu0 0.0
      %2777 = vmatpush1.msra.mxu0 0.0
      %2778 = vmatprep.mubr.f32.mxu0 0.0
      %2779 = vmatmul.mubr.f32.gmra.mrb[0].mxu0 %v2712
      %v2780 = vpop.f32.mrb[0].mxu0
      %v2781 = vadd.f32 0.0, %v2780
      %v2782 = vpop.f32.mrb[0].mxu0
      %v2783 = vadd.f32 0.0, %v2782
      %2784 = vdwg.mxu0
      %v2785 = vld [vmem:[%s780] ss:$8 sm:$0x3]
      %v2787 = vlaneseq
      %v2788 = vshrl.u32 %v2787, 7
      %v2789 = vsub.s32 0, %v2788
      %v2790 = vrot.slane %v2785, %v2789
      %v2791 = vlaneseq
      %v2792 = vshrl.u32 %v2791, 7
      %v2793 = vsub.s32 1, %v2792
      %v2794 = vrot.slane %v2785, %v2793
      %v2797 = vmul.f32 %v2781, %v2790
      %v2798 = vmul.f32 %v2783, %v2794
      %v2799 = vadd.f32 %v2701, %v2797
      %v2800 = vadd.f32 %v2702, %v2798
      %s2801 = scalar_lea.vmem %s4, 176
      %v2802 = vld [vmem:[%s2801] sm:$0xff]
      %v2804 = vsel %vm406, %v2802, 0
      %2806 = vmatprep.subr.mxu0 %v2408
      %2807 = vmatpush1.msra.mxu0 %v2407
      %2808 = vmatprep.subr.mxu0 0.0
      %2809 = vmatpush1.msra.mxu0 0.0
      %2810 = vmatprep.subr.mxu0 0.0
      %2811 = vmatpush1.msra.mxu0 0.0
      %2812 = vmatprep.subr.mxu0 0.0
      %2813 = vmatpush1.msra.mxu0 0.0
      %2814 = vmatprep.subr.mxu0 0.0
      %2815 = vmatpush1.msra.mxu0 0.0
      %2816 = vmatprep.subr.mxu0 0.0
      %2817 = vmatpush1.msra.mxu0 0.0
      %2818 = vmatprep.subr.mxu0 0.0
      %2819 = vmatpush1.msra.mxu0 0.0
      %2820 = vmatprep.subr.mxu0 0.0
      %2821 = vmatpush1.msra.mxu0 0.0
      %2822 = vmatprep.subr.mxu0 0.0
      %2823 = vmatpush1.msra.mxu0 0.0
      %2824 = vmatprep.subr.mxu0 0.0
      %2825 = vmatpush1.msra.mxu0 0.0
      %2826 = vmatprep.subr.mxu0 0.0
      %2827 = vmatpush1.msra.mxu0 0.0
      %2828 = vmatprep.subr.mxu0 0.0
      %2829 = vmatpush1.msra.mxu0 0.0
      %2830 = vmatprep.subr.mxu0 0.0
      %2831 = vmatpush1.msra.mxu0 0.0
      %2832 = vmatprep.subr.mxu0 0.0
      %2833 = vmatpush1.msra.mxu0 0.0
      %2834 = vmatprep.subr.mxu0 0.0
      %2835 = vmatpush1.msra.mxu0 0.0
      %2836 = vmatprep.subr.mxu0 0.0
      %2837 = vmatpush1.msra.mxu0 0.0
      %2838 = vmatprep.subr.mxu0 0.0
      %2839 = vmatpush1.msra.mxu0 0.0
      %2840 = vmatprep.subr.mxu0 0.0
      %2841 = vmatpush1.msra.mxu0 0.0
      %2842 = vmatprep.subr.mxu0 0.0
      %2843 = vmatpush1.msra.mxu0 0.0
      %2844 = vmatprep.subr.mxu0 0.0
      %2845 = vmatpush1.msra.mxu0 0.0
      %2846 = vmatprep.subr.mxu0 0.0
      %2847 = vmatpush1.msra.mxu0 0.0
      %2848 = vmatprep.subr.mxu0 0.0
      %2849 = vmatpush1.msra.mxu0 0.0
      %2850 = vmatprep.subr.mxu0 0.0
      %2851 = vmatpush1.msra.mxu0 0.0
      %2852 = vmatprep.subr.mxu0 0.0
      %2853 = vmatpush1.msra.mxu0 0.0
      %2854 = vmatprep.subr.mxu0 0.0
      %2855 = vmatpush1.msra.mxu0 0.0
      %2856 = vmatprep.subr.mxu0 0.0
      %2857 = vmatpush1.msra.mxu0 0.0
      %2858 = vmatprep.subr.mxu0 0.0
      %2859 = vmatpush1.msra.mxu0 0.0
      %2860 = vmatprep.subr.mxu0 0.0
      %2861 = vmatpush1.msra.mxu0 0.0
      %2862 = vmatprep.subr.mxu0 0.0
      %2863 = vmatpush1.msra.mxu0 0.0
      %2864 = vmatprep.subr.mxu0 0.0
      %2865 = vmatpush1.msra.mxu0 0.0
      %2866 = vmatprep.subr.mxu0 0.0
      %2867 = vmatpush1.msra.mxu0 0.0
      %2868 = vmatprep.subr.mxu0 0.0
      %2869 = vmatpush1.msra.mxu0 0.0
      %2870 = vmatprep.mubr.f32.mxu0 0.0
      %2871 = vmatmul.mubr.f32.gmra.mrb[0].mxu0 %v2804
      %v2872 = vpop.f32.mrb[0].mxu0
      %v2873 = vadd.f32 0.0, %v2872
      %v2874 = vpop.f32.mrb[0].mxu0
      %v2875 = vadd.f32 0.0, %v2874
      %2876 = vdwg.mxu0
      %v2877 = vadd.f32 %v2799, %v2873
      %v2878 = vadd.f32 %v2800, %v2875
      %2879 = vrot.lane.b32.xlu0 %v2407, 127
      %v2880 = vpop.permute.xlu0 %2879
      %2881 = vrot.lane.b32.xlu0 %v2408, 127
      %v2882 = vpop.permute.xlu0 %2881
      %v2883 = vsel %vm879, %v2880, %v2882
      %v2884 = vsel %vm879, %v2882, %v2880
      %s2885 = scalar_lea.vmem %s4, 184
      %v2886 = vld [vmem:[%s2885] sm:$0xff]
      %v2888 = vsel %vm406, %v2886, 0
      %2890 = vmatprep.subr.mxu0 %v2884
      %2891 = vmatpush1.msra.mxu0 %v2883
      %2892 = vmatprep.subr.mxu0 0.0
      %2893 = vmatpush1.msra.mxu0 0.0
      %2894 = vmatprep.subr.mxu0 0.0
      %2895 = vmatpush1.msra.mxu0 0.0
      %2896 = vmatprep.subr.mxu0 0.0
      %2897 = vmatpush1.msra.mxu0 0.0
      %2898 = vmatprep.subr.mxu0 0.0
      %2899 = vmatpush1.msra.mxu0 0.0
      %2900 = vmatprep.subr.mxu0 0.0
      %2901 = vmatpush1.msra.mxu0 0.0
      %2902 = vmatprep.subr.mxu0 0.0
      %2903 = vmatpush1.msra.mxu0 0.0
      %2904 = vmatprep.subr.mxu0 0.0
      %2905 = vmatpush1.msra.mxu0 0.0
      %2906 = vmatprep.subr.mxu0 0.0
      %2907 = vmatpush1.msra.mxu0 0.0
      %2908 = vmatprep.subr.mxu0 0.0
      %2909 = vmatpush1.msra.mxu0 0.0
      %2910 = vmatprep.subr.mxu0 0.0
      %2911 = vmatpush1.msra.mxu0 0.0
      %2912 = vmatprep.subr.mxu0 0.0
      %2913 = vmatpush1.msra.mxu0 0.0
      %2914 = vmatprep.subr.mxu0 0.0
      %2915 = vmatpush1.msra.mxu0 0.0
      %2916 = vmatprep.subr.mxu0 0.0
      %2917 = vmatpush1.msra.mxu0 0.0
      %2918 = vmatprep.subr.mxu0 0.0
      %2919 = vmatpush1.msra.mxu0 0.0
      %2920 = vmatprep.subr.mxu0 0.0
      %2921 = vmatpush1.msra.mxu0 0.0
      %2922 = vmatprep.subr.mxu0 0.0
      %2923 = vmatpush1.msra.mxu0 0.0
      %2924 = vmatprep.subr.mxu0 0.0
      %2925 = vmatpush1.msra.mxu0 0.0
      %2926 = vmatprep.subr.mxu0 0.0
      %2927 = vmatpush1.msra.mxu0 0.0
      %2928 = vmatprep.subr.mxu0 0.0
      %2929 = vmatpush1.msra.mxu0 0.0
      %2930 = vmatprep.subr.mxu0 0.0
      %2931 = vmatpush1.msra.mxu0 0.0
      %2932 = vmatprep.subr.mxu0 0.0
      %2933 = vmatpush1.msra.mxu0 0.0
      %2934 = vmatprep.subr.mxu0 0.0
      %2935 = vmatpush1.msra.mxu0 0.0
      %2936 = vmatprep.subr.mxu0 0.0
      %2937 = vmatpush1.msra.mxu0 0.0
      %2938 = vmatprep.subr.mxu0 0.0
      %2939 = vmatpush1.msra.mxu0 0.0
      %2940 = vmatprep.subr.mxu0 0.0
      %2941 = vmatpush1.msra.mxu0 0.0
      %2942 = vmatprep.subr.mxu0 0.0
      %2943 = vmatpush1.msra.mxu0 0.0
      %2944 = vmatprep.subr.mxu0 0.0
      %2945 = vmatpush1.msra.mxu0 0.0
      %2946 = vmatprep.subr.mxu0 0.0
      %2947 = vmatpush1.msra.mxu0 0.0
      %2948 = vmatprep.subr.mxu0 0.0
      %2949 = vmatpush1.msra.mxu0 0.0
      %2950 = vmatprep.subr.mxu0 0.0
      %2951 = vmatpush1.msra.mxu0 0.0
      %2952 = vmatprep.subr.mxu0 0.0
      %2953 = vmatpush1.msra.mxu0 0.0
      %2954 = vmatprep.mubr.f32.mxu0 0.0
      %2955 = vmatmul.mubr.f32.gmra.mrb[0].mxu0 %v2888
      %v2956 = vpop.f32.mrb[0].mxu0
      %v2957 = vadd.f32 0.0, %v2956
      %v2958 = vpop.f32.mrb[0].mxu0
      %v2959 = vadd.f32 0.0, %v2958
      %2960 = vdwg.mxu0
      %v2961 = vld [vmem:[%s958] ss:$8 sm:$0x3]
      %v2963 = vlaneseq
      %v2964 = vshrl.u32 %v2963, 7
      %v2965 = vsub.s32 0, %v2964
      %v2966 = vrot.slane %v2961, %v2965
      %v2967 = vlaneseq
      %v2968 = vshrl.u32 %v2967, 7
      %v2969 = vsub.s32 1, %v2968
      %v2970 = vrot.slane %v2961, %v2969
      %v2973 = vmul.f32 %v2957, %v2966
      %v2974 = vmul.f32 %v2959, %v2970
      %v2975 = vadd.f32 %v2877, %v2973
      %v2976 = vadd.f32 %v2878, %v2974
      %2977 = vrot.lane.b32.xlu0 %v2407, 113
      %v2978 = vpop.permute.xlu0 %2977
      %2979 = vrot.lane.b32.xlu0 %v2408, 113
      %v2980 = vpop.permute.xlu0 %2979
      %v2981 = vsel %vm979, %v2978, %v2980
      %v2982 = vsel %vm979, %v2980, %v2978
      %s2983 = scalar_lea.vmem %s4, 192
      %v2984 = vld [vmem:[%s2983] sm:$0xff]
      %v2986 = vsel %vm406, %v2984, 0
      %2988 = vmatprep.subr.mxu0 %v2982
      %2989 = vmatpush1.msra.mxu0 %v2981
      %2990 = vmatprep.subr.mxu0 0.0
      %2991 = vmatpush1.msra.mxu0 0.0
      %2992 = vmatprep.subr.mxu0 0.0
      %2993 = vmatpush1.msra.mxu0 0.0
      %2994 = vmatprep.subr.mxu0 0.0
      %2995 = vmatpush1.msra.mxu0 0.0
      %2996 = vmatprep.subr.mxu0 0.0
      %2997 = vmatpush1.msra.mxu0 0.0
      %2998 = vmatprep.subr.mxu0 0.0
      %2999 = vmatpush1.msra.mxu0 0.0
      %3000 = vmatprep.subr.mxu0 0.0
      %3001 = vmatpush1.msra.mxu0 0.0
      %3002 = vmatprep.subr.mxu0 0.0
      %3003 = vmatpush1.msra.mxu0 0.0
      %3004 = vmatprep.subr.mxu0 0.0
      %3005 = vmatpush1.msra.mxu0 0.0
      %3006 = vmatprep.subr.mxu0 0.0
      %3007 = vmatpush1.msra.mxu0 0.0
      %3008 = vmatprep.subr.mxu0 0.0
      %3009 = vmatpush1.msra.mxu0 0.0
      %3010 = vmatprep.subr.mxu0 0.0
      %3011 = vmatpush1.msra.mxu0 0.0
      %3012 = vmatprep.subr.mxu0 0.0
      %3013 = vmatpush1.msra.mxu0 0.0
      %3014 = vmatprep.subr.mxu0 0.0
      %3015 = vmatpush1.msra.mxu0 0.0
      %3016 = vmatprep.subr.mxu0 0.0
      %3017 = vmatpush1.msra.mxu0 0.0
      %3018 = vmatprep.subr.mxu0 0.0
      %3019 = vmatpush1.msra.mxu0 0.0
      %3020 = vmatprep.subr.mxu0 0.0
      %3021 = vmatpush1.msra.mxu0 0.0
      %3022 = vmatprep.subr.mxu0 0.0
      %3023 = vmatpush1.msra.mxu0 0.0
      %3024 = vmatprep.subr.mxu0 0.0
      %3025 = vmatpush1.msra.mxu0 0.0
      %3026 = vmatprep.subr.mxu0 0.0
      %3027 = vmatpush1.msra.mxu0 0.0
      %3028 = vmatprep.subr.mxu0 0.0
      %3029 = vmatpush1.msra.mxu0 0.0
      %3030 = vmatprep.subr.mxu0 0.0
      %3031 = vmatpush1.msra.mxu0 0.0
      %3032 = vmatprep.subr.mxu0 0.0
      %3033 = vmatpush1.msra.mxu0 0.0
      %3034 = vmatprep.subr.mxu0 0.0
      %3035 = vmatpush1.msra.mxu0 0.0
      %3036 = vmatprep.subr.mxu0 0.0
      %3037 = vmatpush1.msra.mxu0 0.0
      %3038 = vmatprep.subr.mxu0 0.0
      %3039 = vmatpush1.msra.mxu0 0.0
      %3040 = vmatprep.subr.mxu0 0.0
      %3041 = vmatpush1.msra.mxu0 0.0
      %3042 = vmatprep.subr.mxu0 0.0
      %3043 = vmatpush1.msra.mxu0 0.0
      %3044 = vmatprep.subr.mxu0 0.0
      %3045 = vmatpush1.msra.mxu0 0.0
      %3046 = vmatprep.subr.mxu0 0.0
      %3047 = vmatpush1.msra.mxu0 0.0
      %3048 = vmatprep.subr.mxu0 0.0
      %3049 = vmatpush1.msra.mxu0 0.0
      %3050 = vmatprep.subr.mxu0 0.0
      %3051 = vmatpush1.msra.mxu0 0.0
      %3052 = vmatprep.mubr.f32.mxu0 0.0
      %3053 = vmatmul.mubr.f32.gmra.mrb[0].mxu0 %v2986
      %v3054 = vpop.f32.mrb[0].mxu0
      %v3055 = vadd.f32 0.0, %v3054
      %v3056 = vpop.f32.mrb[0].mxu0
      %v3057 = vadd.f32 0.0, %v3056
      %3058 = vdwg.mxu0
      %v3059 = vld [vmem:[%s1058] ss:$8 sm:$0x3]
      %v3061 = vlaneseq
      %v3062 = vshrl.u32 %v3061, 7
      %v3063 = vsub.s32 0, %v3062
      %v3064 = vrot.slane %v3059, %v3063
      %v3065 = vlaneseq
      %v3066 = vshrl.u32 %v3065, 7
      %v3067 = vsub.s32 1, %v3066
      %v3068 = vrot.slane %v3059, %v3067
      %v3071 = vmul.f32 %v3055, %v3064
      %v3072 = vmul.f32 %v3057, %v3068
      %v3073 = vadd.f32 %v2975, %v3071
      %v3074 = vadd.f32 %v2976, %v3072
      %3075 = vrot.lane.b32.xlu0 %v2407, 112
      %v3076 = vpop.permute.xlu0 %3075
      %3077 = vrot.lane.b32.xlu0 %v2408, 112
      %v3078 = vpop.permute.xlu0 %3077
      %v3079 = vsel %vm1079, %v3076, %v3078
      %v3080 = vsel %vm1079, %v3078, %v3076
      %s3081 = scalar_lea.vmem %s4, 200
      %v3082 = vld [vmem:[%s3081] sm:$0xff]
      %v3084 = vsel %vm406, %v3082, 0
      %3086 = vmatprep.subr.mxu0 %v3080
      %3087 = vmatpush1.msra.mxu0 %v3079
      %3088 = vmatprep.subr.mxu0 0.0
      %3089 = vmatpush1.msra.mxu0 0.0
      %3090 = vmatprep.subr.mxu0 0.0
      %3091 = vmatpush1.msra.mxu0 0.0
      %3092 = vmatprep.subr.mxu0 0.0
      %3093 = vmatpush1.msra.mxu0 0.0
      %3094 = vmatprep.subr.mxu0 0.0
      %3095 = vmatpush1.msra.mxu0 0.0
      %3096 = vmatprep.subr.mxu0 0.0
      %3097 = vmatpush1.msra.mxu0 0.0
      %3098 = vmatprep.subr.mxu0 0.0
      %3099 = vmatpush1.msra.mxu0 0.0
      %3100 = vmatprep.subr.mxu0 0.0
      %3101 = vmatpush1.msra.mxu0 0.0
      %3102 = vmatprep.subr.mxu0 0.0
      %3103 = vmatpush1.msra.mxu0 0.0
      %3104 = vmatprep.subr.mxu0 0.0
      %3105 = vmatpush1.msra.mxu0 0.0
      %3106 = vmatprep.subr.mxu0 0.0
      %3107 = vmatpush1.msra.mxu0 0.0
      %3108 = vmatprep.subr.mxu0 0.0
      %3109 = vmatpush1.msra.mxu0 0.0
      %3110 = vmatprep.subr.mxu0 0.0
      %3111 = vmatpush1.msra.mxu0 0.0
      %3112 = vmatprep.subr.mxu0 0.0
      %3113 = vmatpush1.msra.mxu0 0.0
      %3114 = vmatprep.subr.mxu0 0.0
      %3115 = vmatpush1.msra.mxu0 0.0
      %3116 = vmatprep.subr.mxu0 0.0
      %3117 = vmatpush1.msra.mxu0 0.0
      %3118 = vmatprep.subr.mxu0 0.0
      %3119 = vmatpush1.msra.mxu0 0.0
      %3120 = vmatprep.subr.mxu0 0.0
      %3121 = vmatpush1.msra.mxu0 0.0
      %3122 = vmatprep.subr.mxu0 0.0
      %3123 = vmatpush1.msra.mxu0 0.0
      %3124 = vmatprep.subr.mxu0 0.0
      %3125 = vmatpush1.msra.mxu0 0.0
      %3126 = vmatprep.subr.mxu0 0.0
      %3127 = vmatpush1.msra.mxu0 0.0
      %3128 = vmatprep.subr.mxu0 0.0
      %3129 = vmatpush1.msra.mxu0 0.0
      %3130 = vmatprep.subr.mxu0 0.0
      %3131 = vmatpush1.msra.mxu0 0.0
      %3132 = vmatprep.subr.mxu0 0.0
      %3133 = vmatpush1.msra.mxu0 0.0
      %3134 = vmatprep.subr.mxu0 0.0
      %3135 = vmatpush1.msra.mxu0 0.0
      %3136 = vmatprep.subr.mxu0 0.0
      %3137 = vmatpush1.msra.mxu0 0.0
      %3138 = vmatprep.subr.mxu0 0.0
      %3139 = vmatpush1.msra.mxu0 0.0
      %3140 = vmatprep.subr.mxu0 0.0
      %3141 = vmatpush1.msra.mxu0 0.0
      %3142 = vmatprep.subr.mxu0 0.0
      %3143 = vmatpush1.msra.mxu0 0.0
      %3144 = vmatprep.subr.mxu0 0.0
      %3145 = vmatpush1.msra.mxu0 0.0
      %3146 = vmatprep.subr.mxu0 0.0
      %3147 = vmatpush1.msra.mxu0 0.0
      %3148 = vmatprep.subr.mxu0 0.0
      %3149 = vmatpush1.msra.mxu0 0.0
      %3150 = vmatprep.mubr.f32.mxu0 0.0
      %3151 = vmatmul.mubr.f32.gmra.mrb[0].mxu0 %v3084
      %v3152 = vpop.f32.mrb[0].mxu0
      %v3153 = vadd.f32 0.0, %v3152
      %v3154 = vpop.f32.mrb[0].mxu0
      %v3155 = vadd.f32 0.0, %v3154
      %3156 = vdwg.mxu0
      %v3157 = vld [vmem:[%s1158] ss:$8 sm:$0x3]
      %v3159 = vlaneseq
      %v3160 = vshrl.u32 %v3159, 7
      %v3161 = vsub.s32 0, %v3160
      %v3162 = vrot.slane %v3157, %v3161
      %v3163 = vlaneseq
      %v3164 = vshrl.u32 %v3163, 7
      %v3165 = vsub.s32 1, %v3164
      %v3166 = vrot.slane %v3157, %v3165
      %v3169 = vmul.f32 %v3153, %v3162
      %v3170 = vmul.f32 %v3155, %v3166
      %v3171 = vadd.f32 %v3073, %v3169
      %v3172 = vadd.f32 %v3074, %v3170
      %3173 = vrot.lane.b32.xlu0 %v2407, 111
      %v3174 = vpop.permute.xlu0 %3173
      %3175 = vrot.lane.b32.xlu0 %v2408, 111
      %v3176 = vpop.permute.xlu0 %3175
      %v3177 = vsel %vm1179, %v3174, %v3176
      %v3178 = vsel %vm1179, %v3176, %v3174
      %s3179 = scalar_lea.vmem %s4, 208
      %v3180 = vld [vmem:[%s3179] sm:$0xff]
      %v3182 = vsel %vm406, %v3180, 0
      %3184 = vmatprep.subr.mxu0 %v3178
      %3185 = vmatpush1.msra.mxu0 %v3177
      %3186 = vmatprep.subr.mxu0 0.0
      %3187 = vmatpush1.msra.mxu0 0.0
      %3188 = vmatprep.subr.mxu0 0.0
      %3189 = vmatpush1.msra.mxu0 0.0
      %3190 = vmatprep.subr.mxu0 0.0
      %3191 = vmatpush1.msra.mxu0 0.0
      %3192 = vmatprep.subr.mxu0 0.0
      %3193 = vmatpush1.msra.mxu0 0.0
      %3194 = vmatprep.subr.mxu0 0.0
      %3195 = vmatpush1.msra.mxu0 0.0
      %3196 = vmatprep.subr.mxu0 0.0
      %3197 = vmatpush1.msra.mxu0 0.0
      %3198 = vmatprep.subr.mxu0 0.0
      %3199 = vmatpush1.msra.mxu0 0.0
      %3200 = vmatprep.subr.mxu0 0.0
      %3201 = vmatpush1.msra.mxu0 0.0
      %3202 = vmatprep.subr.mxu0 0.0
      %3203 = vmatpush1.msra.mxu0 0.0
      %3204 = vmatprep.subr.mxu0 0.0
      %3205 = vmatpush1.msra.mxu0 0.0
      %3206 = vmatprep.subr.mxu0 0.0
      %3207 = vmatpush1.msra.mxu0 0.0
      %3208 = vmatprep.subr.mxu0 0.0
      %3209 = vmatpush1.msra.mxu0 0.0
      %3210 = vmatprep.subr.mxu0 0.0
      %3211 = vmatpush1.msra.mxu0 0.0
      %3212 = vmatprep.subr.mxu0 0.0
      %3213 = vmatpush1.msra.mxu0 0.0
      %3214 = vmatprep.subr.mxu0 0.0
      %3215 = vmatpush1.msra.mxu0 0.0
      %3216 = vmatprep.subr.mxu0 0.0
      %3217 = vmatpush1.msra.mxu0 0.0
      %3218 = vmatprep.subr.mxu0 0.0
      %3219 = vmatpush1.msra.mxu0 0.0
      %3220 = vmatprep.subr.mxu0 0.0
      %3221 = vmatpush1.msra.mxu0 0.0
      %3222 = vmatprep.subr.mxu0 0.0
      %3223 = vmatpush1.msra.mxu0 0.0
      %3224 = vmatprep.subr.mxu0 0.0
      %3225 = vmatpush1.msra.mxu0 0.0
      %3226 = vmatprep.subr.mxu0 0.0
      %3227 = vmatpush1.msra.mxu0 0.0
      %3228 = vmatprep.subr.mxu0 0.0
      %3229 = vmatpush1.msra.mxu0 0.0
      %3230 = vmatprep.subr.mxu0 0.0
      %3231 = vmatpush1.msra.mxu0 0.0
      %3232 = vmatprep.subr.mxu0 0.0
      %3233 = vmatpush1.msra.mxu0 0.0
      %3234 = vmatprep.subr.mxu0 0.0
      %3235 = vmatpush1.msra.mxu0 0.0
      %3236 = vmatprep.subr.mxu0 0.0
      %3237 = vmatpush1.msra.mxu0 0.0
      %3238 = vmatprep.subr.mxu0 0.0
      %3239 = vmatpush1.msra.mxu0 0.0
      %3240 = vmatprep.subr.mxu0 0.0
      %3241 = vmatpush1.msra.mxu0 0.0
      %3242 = vmatprep.subr.mxu0 0.0
      %3243 = vmatpush1.msra.mxu0 0.0
      %3244 = vmatprep.subr.mxu0 0.0
      %3245 = vmatpush1.msra.mxu0 0.0
      %3246 = vmatprep.subr.mxu0 0.0
      %3247 = vmatpush1.msra.mxu0 0.0
      %3248 = vmatprep.mubr.f32.mxu0 0.0
      %3249 = vmatmul.mubr.f32.gmra.mrb[0].mxu0 %v3182
      %v3250 = vpop.f32.mrb[0].mxu0
      %v3251 = vadd.f32 0.0, %v3250
      %v3252 = vpop.f32.mrb[0].mxu0
      %v3253 = vadd.f32 0.0, %v3252
      %3254 = vdwg.mxu0
      %v3255 = vld [vmem:[%s1258] ss:$8 sm:$0x3]
      %v3257 = vlaneseq
      %v3258 = vshrl.u32 %v3257, 7
      %v3259 = vsub.s32 0, %v3258
      %v3260 = vrot.slane %v3255, %v3259
      %v3261 = vlaneseq
      %v3262 = vshrl.u32 %v3261, 7
      %v3263 = vsub.s32 1, %v3262
      %v3264 = vrot.slane %v3255, %v3263
      %v3267 = vmul.f32 %v3251, %v3260
      %v3268 = vmul.f32 %v3253, %v3264
      %v3269 = vadd.f32 %v3171, %v3267
      %v3270 = vadd.f32 %v3172, %v3268
      %3271 = vst [vmem:[#allocation2 + $0x30] sm:$0xff] %v3269
      %3272 = vst [vmem:[#allocation2 + $0x38] sm:$0xff] %v3270
      %v3273 = vld [vmem:[#allocation2] sm:$0xff]
      %v3274 = vld [vmem:[#allocation2 + $0x8] sm:$0xff]
      %v3277 = vrot.slane %v3273, 4
      %v3278 = vrot.slane %v3274, 4
      %3281 = vst [vmem:[%s251 + $0x10] sm:$0xf0] %v3277
      %3282 = vst [vmem:[%s251 + $0x18] sm:$0xf0] %v3278
      %3283 = vst [vmem:[%s251 + $0x20] sm:$0xf] %v3277
      %3284 = vst [vmem:[%s251 + $0x28] sm:$0xf] %v3278
      %v3285 = vld [vmem:[#allocation2 + $0x10] sm:$0xf]
      %v3286 = vld [vmem:[#allocation2 + $0x18] sm:$0xf]
      %3287 = vst [vmem:[%s251 + $0x10] sm:$0xf] %v3285
      %3288 = vst [vmem:[%s251 + $0x18] sm:$0xf] %v3286
      %v3289 = vld [vmem:[#allocation2 + $0x20] sm:$0xf]
      %v3290 = vld [vmem:[#allocation2 + $0x28] sm:$0xf]
      %v3293 = vrot.slane %v3289, 4
      %v3294 = vrot.slane %v3290, 4
      %3297 = vst [vmem:[%s251] sm:$0xf0] %v3293
      %3298 = vst [vmem:[%s251 + $0x8] sm:$0xf0] %v3294
      %v3299 = vld [vmem:[#allocation2 + $0x30] sm:$0xf]
      %v3300 = vld [vmem:[#allocation2 + $0x38] sm:$0xf]
      %3301 = vst [vmem:[%s251] sm:$0xf] %v3299
      %3302 = vst [vmem:[%s251 + $0x8] sm:$0xf] %v3300
      %p3303 = scmp.lt.s32.totalorder %s17, 1
      %s3304 = scalar_select %p3303, %s17, 1
      %s3305 = smul.addr %s3304, 6
      %s3306 = smul.addr %s3305, 8
      %s3307 = scalar_lea.vmem %s6, %s3306
      // Predicated region
      $region45: #{tpu_custom_call.1} parent=43 // pred_check
        %p3308 = pneg %p166
      $region46: #{tpu_custom_call.1} parent=43 // pred_check_branch
        %3310 = sbr.rel (%p3308) target = $region48
      $region47: #{tpu_custom_call.1} parent=43 // pred_region
        _
      $region48: #{tpu_custom_call.1} parent=43 // pred_fallthru
        _
    $region44: #{tpu_custom_call.1} parent=5 // pred_fallthru
      _
    %p3311 = scmp.le.s32.totalorder 2, %s12
    // Predicated region
    $region49: #{tpu_custom_call.1} parent=5 // pred_check
      %p3312 = pneg %p3311
    $region50: #{tpu_custom_call.1} parent=5 // pred_check_branch
      %3314 = sbr.rel (%p3312) target = $region52
    $region51: #{tpu_custom_call.1} parent=5 // pred_region
      %s3315 = ssub.s32 %s12, 2
      // Predicated region
      $region53: #{tpu_custom_call.1} parent=51 // pred_check
        %p3316 = pneg %p172
      $region54: #{tpu_custom_call.1} parent=51 // pred_check_branch
        %3318 = sbr.rel (%p3316) target = $region56
      $region55: #{tpu_custom_call.1} parent=51 // pred_region
        %p3319 = scmp.lt.s32.totalorder %s18, 1
        %s3320 = scalar_select %p3319, %s18, 1
        %s3321 = smul.addr %s3320, 6
        %s3322 = smul.addr %s3321, 8
        %s3323 = scalar_lea.vmem %s6, %s3322
      $region56: #{tpu_custom_call.1} parent=51 // pred_fallthru
        _
    $region52: #{tpu_custom_call.1} parent=5 // pred_fallthru
      _
  $region6: #{tpu_custom_call.1} parent=0 // loop_footer
    %s16 = sadd.s32 1, %s12
  $region7: #{tpu_custom_call.1} parent=0 // loop_footer_branch
    %11 = sbr.rel target = $region3
  $region8: #{tpu_custom_call.1} parent=0 // loop_exit
    _

</llo_original>
